<compile_context>
chip_gen: v7x
topology: tpu7x:2x2x1
jax: 0.10.0
libtpu: 0.0.40
codegen_flags: <defaults>
</compile_context>

<pallas_src>
import functools

import jax
import jax.numpy as jnp
from jax import lax
from jax.experimental import pallas as pl
from jax.experimental.pallas import tpu as pltpu


def _conv_block_kernel(x_ref, w1_ref, b1_ref, w2_ref, b2_ref, o_ref, *, H, W):
    """Fused conv3x3('same')+ReLU -> conv3x3('same')+ReLU, channels-on-sublane.

    x_ref : (B, Cin,  H*W)   images, spatial flattened onto the lane axis
    w1_ref: (9, Cmid, Cin)   conv1 weights, one (Cout, Cin) matrix per tap
    b1_ref: (Cmid, 1)
    w2_ref: (9, Cout, Cmid)  conv2 weights
    b2_ref: (Cout, 1)
    o_ref : (B, Cout, H*W)
    """
    B, _Cin, HW = x_ref.shape

    # ---- per-tap border-validity masks over the flattened spatial axis ----
    # Built once; reused by both layers and every image in the block.  No
    # vector integer division: the row condition is a plain range test on the
    # flat index, the column index is an AND for power-of-two W.
    offsets = [(dy, dx) for dy in (-1, 0, 1) for dx in (-1, 0, 1)]
    pos = lax.broadcasted_iota(jnp.int32, (1, HW), 1)
    col = pos & (W - 1) if (W & (W - 1)) == 0 else pos % W

    def tap_mask(dy, dx):
        conds = []
        if dy < 0:
            conds.append(pos >= (-dy) * W)
        if dy > 0:
            conds.append(pos < (H - dy) * W)
        if dx < 0:
            conds.append(col >= -dx)
        if dx > 0:
            conds.append(col <= W - 1 - dx)
        m = conds[0]
        for c in conds[1:]:
            m = m & c
        return m

    masks = [None if (dy == 0 and dx == 0) else tap_mask(dy, dx)
             for dy, dx in offsets]

    # Hoist the tiny per-tap weight matrices and biases out of the image loop.
    w1_taps = [w1_ref[t] for t in range(9)]
    w2_taps = [w2_ref[t] for t in range(9)]
    b1_col = b1_ref[...]
    b2_col = b2_ref[...]

    def conv3x3_relu(x, w_taps, b_col):
        # x: (C, HW) f32.  Shift on the XLU (pltpu.roll), zero the out-of-image
        # contributions, contract C on the MXU, accumulate in f32 registers.
        c_out = w_taps[0].shape[0]
        acc = jnp.zeros((c_out, HW), jnp.float32)
        for t, (dy, dx) in enumerate(offsets):
            d = dy * W + dx                    # tap[p] must read x[p + d]
            if d == 0:
                tap = x
            else:
                tap = pltpu.roll(x, shift=(-d) % HW, axis=1)
                tap = jnp.where(masks[t], tap, 0.0)
            acc = acc + jnp.dot(w_taps[t], tap,
                                preferred_element_type=jnp.float32)
        return jnp.maximum(acc + b_col, 0.0)

    for i in range(B):                         # static, unrolled per-image loop
        x = x_ref[i]                           # (Cin, HW), lane-dense load
        h1 = conv3x3_relu(x, w1_taps, b1_col)  # (Cmid, HW): stays in vregs
        out = conv3x3_relu(h1, w2_taps, b2_col)  # (Cout, HW)
        o_ref[i] = out.astype(o_ref.dtype)     # (8, 256): fully lane-dense store


def _prep_weight(w_hwio):
    """(kh, kw, Cin, Cout) -> (kh*kw, Cout, Cin): per-tap MXU LHS matrices."""
    kh, kw, cin, cout = w_hwio.shape
    return jnp.transpose(w_hwio, (0, 1, 3, 2)).reshape(kh * kw, cout, cin)


def _images_per_grid_step(batch):
    """v7x (2 TensorCores/chip): keep per-image grid steps so the 'parallel'
    axis spreads the batch across cores.  Single-TC v5e/v6e: fold the (small)
    batch into one grid step to avoid per-step pipeline overhead."""
    kind = ""
    try:
        kind = jax.devices()[0].device_kind.lower()
    except Exception:
        pass
    if "v7" in kind or "7x" in kind:
        return 1
    return batch if batch <= 8 else 1


def conv_block_forward(x_nchw, params):
    """PyTorch-facing ConvBlock.forward: NCHW in / NCHW out (one pallas_call)."""
    w1, b1, w2, b2 = params                    # w: (3,3,Cin,Cout); b: (Cout,)
    N, Cin, H, W = x_nchw.shape
    Cmid = w1.shape[-1]
    Cout = w2.shape[-1]
    HW = H * W

    B = _images_per_grid_step(N)
    if N % B:
        B = 1
    grid = (N // B,)

    # NCHW -> (N, C, H*W) is a free reshape: channels already sit on sublanes,
    # spatial is already contiguous -> contiguous, unmasked HBM->VMEM DMAs.
    x_flat = x_nchw.reshape(N, Cin, HW)

    kernel = pl.pallas_call(
        functools.partial(_conv_block_kernel, H=H, W=W),
        out_shape=jax.ShapeDtypeStruct((N, Cout, HW), jnp.float32),
        grid=grid,
        in_specs=[
            pl.BlockSpec((B, Cin, HW), lambda n: (n, 0, 0)),
            pl.BlockSpec((9, Cmid, Cin), lambda n: (0, 0, 0)),
            pl.BlockSpec((Cmid, 1), lambda n: (0, 0)),
            pl.BlockSpec((9, Cout, Cmid), lambda n: (0, 0, 0)),
            pl.BlockSpec((Cout, 1), lambda n: (0, 0)),
        ],
        out_specs=pl.BlockSpec((B, Cout, HW), lambda n: (n, 0, 0)),
        compiler_params=pltpu.CompilerParams(
            dimension_semantics=("parallel",)),
    )
    out = kernel(x_flat,
                 _prep_weight(w1), b1.reshape(Cmid, 1),
                 _prep_weight(w2), b2.reshape(Cout, 1))
    return out.reshape(N, Cout, H, W)


def init_conv_block_params(key, in_channels, out_channels, kernel_size=3):
    """Deterministic synthetic params (shapes match nn.Conv2d weights/bias)."""
    k1, k2, k3, k4 = jax.random.split(key, 4)
    fan1 = in_channels * kernel_size * kernel_size
    fan2 = out_channels * kernel_size * kernel_size
    bound1 = 1.0 / jnp.sqrt(fan1)
    bound2 = 1.0 / jnp.sqrt(fan2)
    # stored as (kh, kw, Cin, Cout) — HWIO
    w1 = jax.random.uniform(k1, (kernel_size, kernel_size, in_channels, out_channels),
                            jnp.float32, -bound1, bound1)
    b1 = jax.random.uniform(k2, (out_channels,), jnp.float32, -bound1, bound1)
    w2 = jax.random.uniform(k3, (kernel_size, kernel_size, out_channels, out_channels),
                            jnp.float32, -bound2, bound2)
    b2 = jax.random.uniform(k4, (out_channels,), jnp.float32, -bound2, bound2)
    return w1, b1, w2, b2


def _reference_forward(x_nchw, params):
    """Pure-JAX reference (lax conv) for the correctness check."""
    w1, b1, w2, b2 = params
    dn = jax.lax.conv_dimension_numbers(x_nchw.shape, (3, 3, 1, 1),
                                        ('NCHW', 'HWIO', 'NCHW'))

    def conv(x, w, b):
        y = jax.lax.conv_general_dilated(x, w, (1, 1), 'SAME',
                                         dimension_numbers=dn)
        return jnp.maximum(y + b[None, :, None, None], 0.0)

    y = conv(x_nchw, w1, b1)
    y = conv(y, w2, b2)
    return y


if __name__ == "__main__":
    key = jax.random.PRNGKey(0)
    k_x, k_p = jax.random.split(key)

    N, C_in, C_out, H, W = 2, 4, 8, 16, 16
    x = jax.random.normal(k_x, (N, C_in, H, W), jnp.float32)
    params = init_conv_block_params(k_p, C_in, C_out)

    out = jax.block_until_ready(conv_block_forward(x, params))
    ref = jax.block_until_ready(_reference_forward(x, params))

    assert out.shape == (N, C_out, H, W)
    assert jnp.allclose(out, ref, atol=1e-4, rtol=1e-4), "mismatch vs reference"

    print("KERNEL_OK")
</pallas_src>

<mosaic_0001>
module attributes {stable_mosaic.version = 11 : i64} {
  func.func @_conv_block_kernel(%arg0: i32, %arg1: memref<2x4x256xf32, #tpu.memory_space<vmem>>, %arg2: memref<9x8x4xf32, #tpu.memory_space<vmem>>, %arg3: memref<8x1xf32, #tpu.memory_space<vmem>>, %arg4: memref<9x8x8xf32, #tpu.memory_space<vmem>>, %arg5: memref<8x1xf32, #tpu.memory_space<vmem>>, %arg6: memref<2x8x256xf32, #tpu.memory_space<vmem>>) attributes {dimension_semantics = [#tpu.dimension_semantics<parallel>], iteration_bounds = array<i64: 1>, scalar_prefetch = 0 : i64, scratch_operands = 0 : i64, tpu.core_type = #tpu.core_type<tc>, window_params = [{transform_indices = @transform_0, window_bounds = array<i64: 2, 4, 256>}, {pipeline_mode = #tpu.pipeline_mode<synchronous>, transform_indices = @transform_1, window_bounds = array<i64: 9, 8, 4>}, {pipeline_mode = #tpu.pipeline_mode<synchronous>, transform_indices = @transform_2, window_bounds = array<i64: 8, 1>}, {pipeline_mode = #tpu.pipeline_mode<synchronous>, transform_indices = @transform_3, window_bounds = array<i64: 9, 8, 8>}, {pipeline_mode = #tpu.pipeline_mode<synchronous>, transform_indices = @transform_4, window_bounds = array<i64: 8, 1>}, {transform_indices = @transform_5, window_bounds = array<i64: 2, 8, 256>}]} {
    %0 = tpu.iota {dimensions = array<i32: 1>} : vector<1x256xi32>
    %c15_i32 = arith.constant 15 : i32
    %1 = vector.broadcast %c15_i32 : i32 to vector<1x256xi32>
    %2 = arith.andi %0, %1 : vector<1x256xi32>
    %c16_i32 = arith.constant 16 : i32
    %3 = vector.broadcast %c16_i32 : i32 to vector<1x256xi32>
    %4 = arith.cmpi sge, %0, %3 : vector<1x256xi32>
    %c1_i32 = arith.constant 1 : i32
    %5 = vector.broadcast %c1_i32 : i32 to vector<1x256xi32>
    %6 = arith.cmpi sge, %2, %5 : vector<1x256xi32>
    %7 = arith.andi %4, %6 : vector<1x256xi1>
    %c16_i32_0 = arith.constant 16 : i32
    %8 = vector.broadcast %c16_i32_0 : i32 to vector<1x256xi32>
    %9 = arith.cmpi sge, %0, %8 : vector<1x256xi32>
    %c16_i32_1 = arith.constant 16 : i32
    %10 = vector.broadcast %c16_i32_1 : i32 to vector<1x256xi32>
    %11 = arith.cmpi sge, %0, %10 : vector<1x256xi32>
    %c14_i32 = arith.constant 14 : i32
    %12 = vector.broadcast %c14_i32 : i32 to vector<1x256xi32>
    %13 = arith.cmpi sle, %2, %12 : vector<1x256xi32>
    %14 = arith.andi %11, %13 : vector<1x256xi1>
    %c1_i32_2 = arith.constant 1 : i32
    %15 = vector.broadcast %c1_i32_2 : i32 to vector<1x256xi32>
    %16 = arith.cmpi sge, %2, %15 : vector<1x256xi32>
    %c14_i32_3 = arith.constant 14 : i32
    %17 = vector.broadcast %c14_i32_3 : i32 to vector<1x256xi32>
    %18 = arith.cmpi sle, %2, %17 : vector<1x256xi32>
    %c240_i32 = arith.constant 240 : i32
    %19 = vector.broadcast %c240_i32 : i32 to vector<1x256xi32>
    %20 = arith.cmpi slt, %0, %19 : vector<1x256xi32>
    %c1_i32_4 = arith.constant 1 : i32
    %21 = vector.broadcast %c1_i32_4 : i32 to vector<1x256xi32>
    %22 = arith.cmpi sge, %2, %21 : vector<1x256xi32>
    %23 = arith.andi %20, %22 : vector<1x256xi1>
    %c240_i32_5 = arith.constant 240 : i32
    %24 = vector.broadcast %c240_i32_5 : i32 to vector<1x256xi32>
    %25 = arith.cmpi slt, %0, %24 : vector<1x256xi32>
    %c240_i32_6 = arith.constant 240 : i32
    %26 = vector.broadcast %c240_i32_6 : i32 to vector<1x256xi32>
    %27 = arith.cmpi slt, %0, %26 : vector<1x256xi32>
    %c14_i32_7 = arith.constant 14 : i32
    %28 = vector.broadcast %c14_i32_7 : i32 to vector<1x256xi32>
    %29 = arith.cmpi sle, %2, %28 : vector<1x256xi32>
    %30 = arith.andi %27, %29 : vector<1x256xi1>
    %c0 = arith.constant 0 : index
    %c0_8 = arith.constant 0 : index
    %c0_9 = arith.constant 0 : index
    %31 = vector.load %arg2[%c0, %c0_8, %c0_9] : memref<9x8x4xf32, #tpu.memory_space<vmem>>, vector<1x8x4xf32>
    %32 = vector.shape_cast %31 : vector<1x8x4xf32> to vector<8x4xf32>
    %c1 = arith.constant 1 : index
    %c0_10 = arith.constant 0 : index
    %c0_11 = arith.constant 0 : index
    %33 = vector.load %arg2[%c1, %c0_10, %c0_11] : memref<9x8x4xf32, #tpu.memory_space<vmem>>, vector<1x8x4xf32>
    %34 = vector.shape_cast %33 : vector<1x8x4xf32> to vector<8x4xf32>
    %c2 = arith.constant 2 : index
    %c0_12 = arith.constant 0 : index
    %c0_13 = arith.constant 0 : index
    %35 = vector.load %arg2[%c2, %c0_12, %c0_13] : memref<9x8x4xf32, #tpu.memory_space<vmem>>, vector<1x8x4xf32>
    %36 = vector.shape_cast %35 : vector<1x8x4xf32> to vector<8x4xf32>
    %c3 = arith.constant 3 : index
    %c0_14 = arith.constant 0 : index
    %c0_15 = arith.constant 0 : index
    %37 = vector.load %arg2[%c3, %c0_14, %c0_15] : memref<9x8x4xf32, #tpu.memory_space<vmem>>, vector<1x8x4xf32>
    %38 = vector.shape_cast %37 : vector<1x8x4xf32> to vector<8x4xf32>
    %c4 = arith.constant 4 : index
    %c0_16 = arith.constant 0 : index
    %c0_17 = arith.constant 0 : index
    %39 = vector.load %arg2[%c4, %c0_16, %c0_17] : memref<9x8x4xf32, #tpu.memory_space<vmem>>, vector<1x8x4xf32>
    %40 = vector.shape_cast %39 : vector<1x8x4xf32> to vector<8x4xf32>
    %c5 = arith.constant 5 : index
    %c0_18 = arith.constant 0 : index
    %c0_19 = arith.constant 0 : index
    %41 = vector.load %arg2[%c5, %c0_18, %c0_19] : memref<9x8x4xf32, #tpu.memory_space<vmem>>, vector<1x8x4xf32>
    %42 = vector.shape_cast %41 : vector<1x8x4xf32> to vector<8x4xf32>
    %c6 = arith.constant 6 : index
    %c0_20 = arith.constant 0 : index
    %c0_21 = arith.constant 0 : index
    %43 = vector.load %arg2[%c6, %c0_20, %c0_21] : memref<9x8x4xf32, #tpu.memory_space<vmem>>, vector<1x8x4xf32>
    %44 = vector.shape_cast %43 : vector<1x8x4xf32> to vector<8x4xf32>
    %c7 = arith.constant 7 : index
    %c0_22 = arith.constant 0 : index
    %c0_23 = arith.constant 0 : index
    %45 = vector.load %arg2[%c7, %c0_22, %c0_23] : memref<9x8x4xf32, #tpu.memory_space<vmem>>, vector<1x8x4xf32>
    %46 = vector.shape_cast %45 : vector<1x8x4xf32> to vector<8x4xf32>
    %c8 = arith.constant 8 : index
    %c0_24 = arith.constant 0 : index
    %c0_25 = arith.constant 0 : index
    %47 = vector.load %arg2[%c8, %c0_24, %c0_25] : memref<9x8x4xf32, #tpu.memory_space<vmem>>, vector<1x8x4xf32>
    %48 = vector.shape_cast %47 : vector<1x8x4xf32> to vector<8x4xf32>
    %c0_26 = arith.constant 0 : index
    %c0_27 = arith.constant 0 : index
    %c0_28 = arith.constant 0 : index
    %49 = vector.load %arg4[%c0_26, %c0_27, %c0_28] : memref<9x8x8xf32, #tpu.memory_space<vmem>>, vector<1x8x8xf32>
    %50 = vector.shape_cast %49 : vector<1x8x8xf32> to vector<8x8xf32>
    %c1_29 = arith.constant 1 : index
    %c0_30 = arith.constant 0 : index
    %c0_31 = arith.constant 0 : index
    %51 = vector.load %arg4[%c1_29, %c0_30, %c0_31] : memref<9x8x8xf32, #tpu.memory_space<vmem>>, vector<1x8x8xf32>
    %52 = vector.shape_cast %51 : vector<1x8x8xf32> to vector<8x8xf32>
    %c2_32 = arith.constant 2 : index
    %c0_33 = arith.constant 0 : index
    %c0_34 = arith.constant 0 : index
    %53 = vector.load %arg4[%c2_32, %c0_33, %c0_34] : memref<9x8x8xf32, #tpu.memory_space<vmem>>, vector<1x8x8xf32>
    %54 = vector.shape_cast %53 : vector<1x8x8xf32> to vector<8x8xf32>
    %c3_35 = arith.constant 3 : index
    %c0_36 = arith.constant 0 : index
    %c0_37 = arith.constant 0 : index
    %55 = vector.load %arg4[%c3_35, %c0_36, %c0_37] : memref<9x8x8xf32, #tpu.memory_space<vmem>>, vector<1x8x8xf32>
    %56 = vector.shape_cast %55 : vector<1x8x8xf32> to vector<8x8xf32>
    %c4_38 = arith.constant 4 : index
    %c0_39 = arith.constant 0 : index
    %c0_40 = arith.constant 0 : index
    %57 = vector.load %arg4[%c4_38, %c0_39, %c0_40] : memref<9x8x8xf32, #tpu.memory_space<vmem>>, vector<1x8x8xf32>
    %58 = vector.shape_cast %57 : vector<1x8x8xf32> to vector<8x8xf32>
    %c5_41 = arith.constant 5 : index
    %c0_42 = arith.constant 0 : index
    %c0_43 = arith.constant 0 : index
    %59 = vector.load %arg4[%c5_41, %c0_42, %c0_43] : memref<9x8x8xf32, #tpu.memory_space<vmem>>, vector<1x8x8xf32>
    %60 = vector.shape_cast %59 : vector<1x8x8xf32> to vector<8x8xf32>
    %c6_44 = arith.constant 6 : index
    %c0_45 = arith.constant 0 : index
    %c0_46 = arith.constant 0 : index
    %61 = vector.load %arg4[%c6_44, %c0_45, %c0_46] : memref<9x8x8xf32, #tpu.memory_space<vmem>>, vector<1x8x8xf32>
    %62 = vector.shape_cast %61 : vector<1x8x8xf32> to vector<8x8xf32>
    %c7_47 = arith.constant 7 : index
    %c0_48 = arith.constant 0 : index
    %c0_49 = arith.constant 0 : index
    %63 = vector.load %arg4[%c7_47, %c0_48, %c0_49] : memref<9x8x8xf32, #tpu.memory_space<vmem>>, vector<1x8x8xf32>
    %64 = vector.shape_cast %63 : vector<1x8x8xf32> to vector<8x8xf32>
    %c8_50 = arith.constant 8 : index
    %c0_51 = arith.constant 0 : index
    %c0_52 = arith.constant 0 : index
    %65 = vector.load %arg4[%c8_50, %c0_51, %c0_52] : memref<9x8x8xf32, #tpu.memory_space<vmem>>, vector<1x8x8xf32>
    %66 = vector.shape_cast %65 : vector<1x8x8xf32> to vector<8x8xf32>
    %c0_53 = arith.constant 0 : index
    %c0_54 = arith.constant 0 : index
    %67 = vector.load %arg3[%c0_53, %c0_54] : memref<8x1xf32, #tpu.memory_space<vmem>>, vector<8x1xf32>
    %c0_55 = arith.constant 0 : index
    %c0_56 = arith.constant 0 : index
    %68 = vector.load %arg5[%c0_55, %c0_56] : memref<8x1xf32, #tpu.memory_space<vmem>>, vector<8x1xf32>
    %c0_57 = arith.constant 0 : index
    %c0_58 = arith.constant 0 : index
    %c0_59 = arith.constant 0 : index
    %69 = vector.load %arg1[%c0_57, %c0_58, %c0_59] : memref<2x4x256xf32, #tpu.memory_space<vmem>>, vector<1x4x256xf32>
    %70 = vector.shape_cast %69 : vector<1x4x256xf32> to vector<4x256xf32>
    %cst = arith.constant 0.000000e+00 : f32
    %71 = vector.broadcast %cst : f32 to vector<8x256xf32>
    %c17_i32 = arith.constant 17 : i32
    %72 = tpu.dynamic_rotate %70 by %c17_i32 dim 1 : vector<4x256xf32>, i32 -> vector<4x256xf32>
    %cst_60 = arith.constant 0.000000e+00 : f32
    %73 = vector.shape_cast %7 : vector<1x256xi1> to vector<1x256xi1>
    %74 = vector.broadcast %73 : vector<1x256xi1> to vector<4x256xi1>
    %75 = vector.broadcast %cst_60 : f32 to vector<4x256xf32>
    %76 = arith.select %74, %72, %75 : vector<4x256xi1>, vector<4x256xf32>
    %cst_61 = arith.constant dense<0.000000e+00> : vector<8x256xf32>
    %77 = tpu.matmul %32, %76, %cst_61 {dimension_numbers = #tpu.dot_dimension_numbers<[1], [0], [0], [1], [0, 0, 1, 1], [], []>} : vector<8x4xf32>, vector<4x256xf32>, vector<8x256xf32> -> vector<8x256xf32>
    %78 = arith.addf %71, %77 : vector<8x256xf32>
    %c16_i32_62 = arith.constant 16 : i32
    %79 = tpu.dynamic_rotate %70 by %c16_i32_62 dim 1 : vector<4x256xf32>, i32 -> vector<4x256xf32>
    %cst_63 = arith.constant 0.000000e+00 : f32
    %80 = vector.shape_cast %9 : vector<1x256xi1> to vector<1x256xi1>
    %81 = vector.broadcast %80 : vector<1x256xi1> to vector<4x256xi1>
    %82 = vector.broadcast %cst_63 : f32 to vector<4x256xf32>
    %83 = arith.select %81, %79, %82 : vector<4x256xi1>, vector<4x256xf32>
    %cst_64 = arith.constant dense<0.000000e+00> : vector<8x256xf32>
    %84 = tpu.matmul %34, %83, %cst_64 {dimension_numbers = #tpu.dot_dimension_numbers<[1], [0], [0], [1], [0, 0, 1, 1], [], []>} : vector<8x4xf32>, vector<4x256xf32>, vector<8x256xf32> -> vector<8x256xf32>
    %85 = arith.addf %78, %84 : vector<8x256xf32>
    %c15_i32_65 = arith.constant 15 : i32
    %86 = tpu.dynamic_rotate %70 by %c15_i32_65 dim 1 : vector<4x256xf32>, i32 -> vector<4x256xf32>
    %cst_66 = arith.constant 0.000000e+00 : f32
    %87 = vector.shape_cast %14 : vector<1x256xi1> to vector<1x256xi1>
    %88 = vector.broadcast %87 : vector<1x256xi1> to vector<4x256xi1>
    %89 = vector.broadcast %cst_66 : f32 to vector<4x256xf32>
    %90 = arith.select %88, %86, %89 : vector<4x256xi1>, vector<4x256xf32>
    %cst_67 = arith.constant dense<0.000000e+00> : vector<8x256xf32>
    %91 = tpu.matmul %36, %90, %cst_67 {dimension_numbers = #tpu.dot_dimension_numbers<[1], [0], [0], [1], [0, 0, 1, 1], [], []>} : vector<8x4xf32>, vector<4x256xf32>, vector<8x256xf32> -> vector<8x256xf32>
    %92 = arith.addf %85, %91 : vector<8x256xf32>
    %c1_i32_68 = arith.constant 1 : i32
    %93 = tpu.dynamic_rotate %70 by %c1_i32_68 dim 1 : vector<4x256xf32>, i32 -> vector<4x256xf32>
    %cst_69 = arith.constant 0.000000e+00 : f32
    %94 = vector.shape_cast %16 : vector<1x256xi1> to vector<1x256xi1>
    %95 = vector.broadcast %94 : vector<1x256xi1> to vector<4x256xi1>
    %96 = vector.broadcast %cst_69 : f32 to vector<4x256xf32>
    %97 = arith.select %95, %93, %96 : vector<4x256xi1>, vector<4x256xf32>
    %cst_70 = arith.constant dense<0.000000e+00> : vector<8x256xf32>
    %98 = tpu.matmul %38, %97, %cst_70 {dimension_numbers = #tpu.dot_dimension_numbers<[1], [0], [0], [1], [0, 0, 1, 1], [], []>} : vector<8x4xf32>, vector<4x256xf32>, vector<8x256xf32> -> vector<8x256xf32>
    %99 = arith.addf %92, %98 : vector<8x256xf32>
    %cst_71 = arith.constant dense<0.000000e+00> : vector<8x256xf32>
    %100 = tpu.matmul %40, %70, %cst_71 {dimension_numbers = #tpu.dot_dimension_numbers<[1], [0], [0], [1], [0, 0, 1, 1], [], []>} : vector<8x4xf32>, vector<4x256xf32>, vector<8x256xf32> -> vector<8x256xf32>
    %101 = arith.addf %99, %100 : vector<8x256xf32>
    %c255_i32 = arith.constant 255 : i32
    %102 = tpu.dynamic_rotate %70 by %c255_i32 dim 1 : vector<4x256xf32>, i32 -> vector<4x256xf32>
    %cst_72 = arith.constant 0.000000e+00 : f32
    %103 = vector.shape_cast %18 : vector<1x256xi1> to vector<1x256xi1>
    %104 = vector.broadcast %103 : vector<1x256xi1> to vector<4x256xi1>
    %105 = vector.broadcast %cst_72 : f32 to vector<4x256xf32>
    %106 = arith.select %104, %102, %105 : vector<4x256xi1>, vector<4x256xf32>
    %cst_73 = arith.constant dense<0.000000e+00> : vector<8x256xf32>
    %107 = tpu.matmul %42, %106, %cst_73 {dimension_numbers = #tpu.dot_dimension_numbers<[1], [0], [0], [1], [0, 0, 1, 1], [], []>} : vector<8x4xf32>, vector<4x256xf32>, vector<8x256xf32> -> vector<8x256xf32>
    %108 = arith.addf %101, %107 : vector<8x256xf32>
    %c241_i32 = arith.constant 241 : i32
    %109 = tpu.dynamic_rotate %70 by %c241_i32 dim 1 : vector<4x256xf32>, i32 -> vector<4x256xf32>
    %cst_74 = arith.constant 0.000000e+00 : f32
    %110 = vector.shape_cast %23 : vector<1x256xi1> to vector<1x256xi1>
    %111 = vector.broadcast %110 : vector<1x256xi1> to vector<4x256xi1>
    %112 = vector.broadcast %cst_74 : f32 to vector<4x256xf32>
    %113 = arith.select %111, %109, %112 : vector<4x256xi1>, vector<4x256xf32>
    %cst_75 = arith.constant dense<0.000000e+00> : vector<8x256xf32>
    %114 = tpu.matmul %44, %113, %cst_75 {dimension_numbers = #tpu.dot_dimension_numbers<[1], [0], [0], [1], [0, 0, 1, 1], [], []>} : vector<8x4xf32>, vector<4x256xf32>, vector<8x256xf32> -> vector<8x256xf32>
    %115 = arith.addf %108, %114 : vector<8x256xf32>
    %c240_i32_76 = arith.constant 240 : i32
    %116 = tpu.dynamic_rotate %70 by %c240_i32_76 dim 1 : vector<4x256xf32>, i32 -> vector<4x256xf32>
    %cst_77 = arith.constant 0.000000e+00 : f32
    %117 = vector.shape_cast %25 : vector<1x256xi1> to vector<1x256xi1>
    %118 = vector.broadcast %117 : vector<1x256xi1> to vector<4x256xi1>
    %119 = vector.broadcast %cst_77 : f32 to vector<4x256xf32>
    %120 = arith.select %118, %116, %119 : vector<4x256xi1>, vector<4x256xf32>
    %cst_78 = arith.constant dense<0.000000e+00> : vector<8x256xf32>
    %121 = tpu.matmul %46, %120, %cst_78 {dimension_numbers = #tpu.dot_dimension_numbers<[1], [0], [0], [1], [0, 0, 1, 1], [], []>} : vector<8x4xf32>, vector<4x256xf32>, vector<8x256xf32> -> vector<8x256xf32>
    %122 = arith.addf %115, %121 : vector<8x256xf32>
    %c239_i32 = arith.constant 239 : i32
    %123 = tpu.dynamic_rotate %70 by %c239_i32 dim 1 : vector<4x256xf32>, i32 -> vector<4x256xf32>
    %cst_79 = arith.constant 0.000000e+00 : f32
    %124 = vector.shape_cast %30 : vector<1x256xi1> to vector<1x256xi1>
    %125 = vector.broadcast %124 : vector<1x256xi1> to vector<4x256xi1>
    %126 = vector.broadcast %cst_79 : f32 to vector<4x256xf32>
    %127 = arith.select %125, %123, %126 : vector<4x256xi1>, vector<4x256xf32>
    %cst_80 = arith.constant dense<0.000000e+00> : vector<8x256xf32>
    %128 = tpu.matmul %48, %127, %cst_80 {dimension_numbers = #tpu.dot_dimension_numbers<[1], [0], [0], [1], [0, 0, 1, 1], [], []>} : vector<8x4xf32>, vector<4x256xf32>, vector<8x256xf32> -> vector<8x256xf32>
    %129 = arith.addf %122, %128 : vector<8x256xf32>
    %130 = vector.broadcast %67 : vector<8x1xf32> to vector<8x256xf32>
    %131 = arith.addf %129, %130 : vector<8x256xf32>
    %cst_81 = arith.constant 0.000000e+00 : f32
    %132 = vector.broadcast %cst_81 : f32 to vector<8x256xf32>
    %133 = arith.maximumf %131, %132 : vector<8x256xf32>
    %cst_82 = arith.constant 0.000000e+00 : f32
    %134 = vector.broadcast %cst_82 : f32 to vector<8x256xf32>
    %c17_i32_83 = arith.constant 17 : i32
    %135 = tpu.dynamic_rotate %133 by %c17_i32_83 dim 1 : vector<8x256xf32>, i32 -> vector<8x256xf32>
    %cst_84 = arith.constant 0.000000e+00 : f32
    %136 = vector.shape_cast %7 : vector<1x256xi1> to vector<1x256xi1>
    %137 = vector.broadcast %136 : vector<1x256xi1> to vector<8x256xi1>
    %138 = vector.broadcast %cst_84 : f32 to vector<8x256xf32>
    %139 = arith.select %137, %135, %138 : vector<8x256xi1>, vector<8x256xf32>
    %cst_85 = arith.constant dense<0.000000e+00> : vector<8x256xf32>
    %140 = tpu.matmul %50, %139, %cst_85 {dimension_numbers = #tpu.dot_dimension_numbers<[1], [0], [0], [1], [0, 0, 1, 1], [], []>} : vector<8x8xf32>, vector<8x256xf32>, vector<8x256xf32> -> vector<8x256xf32>
    %141 = arith.addf %134, %140 : vector<8x256xf32>
    %c16_i32_86 = arith.constant 16 : i32
    %142 = tpu.dynamic_rotate %133 by %c16_i32_86 dim 1 : vector<8x256xf32>, i32 -> vector<8x256xf32>
    %cst_87 = arith.constant 0.000000e+00 : f32
    %143 = vector.shape_cast %9 : vector<1x256xi1> to vector<1x256xi1>
    %144 = vector.broadcast %143 : vector<1x256xi1> to vector<8x256xi1>
    %145 = vector.broadcast %cst_87 : f32 to vector<8x256xf32>
    %146 = arith.select %144, %142, %145 : vector<8x256xi1>, vector<8x256xf32>
    %cst_88 = arith.constant dense<0.000000e+00> : vector<8x256xf32>
    %147 = tpu.matmul %52, %146, %cst_88 {dimension_numbers = #tpu.dot_dimension_numbers<[1], [0], [0], [1], [0, 0, 1, 1], [], []>} : vector<8x8xf32>, vector<8x256xf32>, vector<8x256xf32> -> vector<8x256xf32>
    %148 = arith.addf %141, %147 : vector<8x256xf32>
    %c15_i32_89 = arith.constant 15 : i32
    %149 = tpu.dynamic_rotate %133 by %c15_i32_89 dim 1 : vector<8x256xf32>, i32 -> vector<8x256xf32>
    %cst_90 = arith.constant 0.000000e+00 : f32
    %150 = vector.shape_cast %14 : vector<1x256xi1> to vector<1x256xi1>
    %151 = vector.broadcast %150 : vector<1x256xi1> to vector<8x256xi1>
    %152 = vector.broadcast %cst_90 : f32 to vector<8x256xf32>
    %153 = arith.select %151, %149, %152 : vector<8x256xi1>, vector<8x256xf32>
    %cst_91 = arith.constant dense<0.000000e+00> : vector<8x256xf32>
    %154 = tpu.matmul %54, %153, %cst_91 {dimension_numbers = #tpu.dot_dimension_numbers<[1], [0], [0], [1], [0, 0, 1, 1], [], []>} : vector<8x8xf32>, vector<8x256xf32>, vector<8x256xf32> -> vector<8x256xf32>
    %155 = arith.addf %148, %154 : vector<8x256xf32>
    %c1_i32_92 = arith.constant 1 : i32
    %156 = tpu.dynamic_rotate %133 by %c1_i32_92 dim 1 : vector<8x256xf32>, i32 -> vector<8x256xf32>
    %cst_93 = arith.constant 0.000000e+00 : f32
    %157 = vector.shape_cast %16 : vector<1x256xi1> to vector<1x256xi1>
    %158 = vector.broadcast %157 : vector<1x256xi1> to vector<8x256xi1>
    %159 = vector.broadcast %cst_93 : f32 to vector<8x256xf32>
    %160 = arith.select %158, %156, %159 : vector<8x256xi1>, vector<8x256xf32>
    %cst_94 = arith.constant dense<0.000000e+00> : vector<8x256xf32>
    %161 = tpu.matmul %56, %160, %cst_94 {dimension_numbers = #tpu.dot_dimension_numbers<[1], [0], [0], [1], [0, 0, 1, 1], [], []>} : vector<8x8xf32>, vector<8x256xf32>, vector<8x256xf32> -> vector<8x256xf32>
    %162 = arith.addf %155, %161 : vector<8x256xf32>
    %cst_95 = arith.constant dense<0.000000e+00> : vector<8x256xf32>
    %163 = tpu.matmul %58, %133, %cst_95 {dimension_numbers = #tpu.dot_dimension_numbers<[1], [0], [0], [1], [0, 0, 1, 1], [], []>} : vector<8x8xf32>, vector<8x256xf32>, vector<8x256xf32> -> vector<8x256xf32>
    %164 = arith.addf %162, %163 : vector<8x256xf32>
    %c255_i32_96 = arith.constant 255 : i32
    %165 = tpu.dynamic_rotate %133 by %c255_i32_96 dim 1 : vector<8x256xf32>, i32 -> vector<8x256xf32>
    %cst_97 = arith.constant 0.000000e+00 : f32
    %166 = vector.shape_cast %18 : vector<1x256xi1> to vector<1x256xi1>
    %167 = vector.broadcast %166 : vector<1x256xi1> to vector<8x256xi1>
    %168 = vector.broadcast %cst_97 : f32 to vector<8x256xf32>
    %169 = arith.select %167, %165, %168 : vector<8x256xi1>, vector<8x256xf32>
    %cst_98 = arith.constant dense<0.000000e+00> : vector<8x256xf32>
    %170 = tpu.matmul %60, %169, %cst_98 {dimension_numbers = #tpu.dot_dimension_numbers<[1], [0], [0], [1], [0, 0, 1, 1], [], []>} : vector<8x8xf32>, vector<8x256xf32>, vector<8x256xf32> -> vector<8x256xf32>
    %171 = arith.addf %164, %170 : vector<8x256xf32>
    %c241_i32_99 = arith.constant 241 : i32
    %172 = tpu.dynamic_rotate %133 by %c241_i32_99 dim 1 : vector<8x256xf32>, i32 -> vector<8x256xf32>
    %cst_100 = arith.constant 0.000000e+00 : f32
    %173 = vector.shape_cast %23 : vector<1x256xi1> to vector<1x256xi1>
    %174 = vector.broadcast %173 : vector<1x256xi1> to vector<8x256xi1>
    %175 = vector.broadcast %cst_100 : f32 to vector<8x256xf32>
    %176 = arith.select %174, %172, %175 : vector<8x256xi1>, vector<8x256xf32>
    %cst_101 = arith.constant dense<0.000000e+00> : vector<8x256xf32>
    %177 = tpu.matmul %62, %176, %cst_101 {dimension_numbers = #tpu.dot_dimension_numbers<[1], [0], [0], [1], [0, 0, 1, 1], [], []>} : vector<8x8xf32>, vector<8x256xf32>, vector<8x256xf32> -> vector<8x256xf32>
    %178 = arith.addf %171, %177 : vector<8x256xf32>
    %c240_i32_102 = arith.constant 240 : i32
    %179 = tpu.dynamic_rotate %133 by %c240_i32_102 dim 1 : vector<8x256xf32>, i32 -> vector<8x256xf32>
    %cst_103 = arith.constant 0.000000e+00 : f32
    %180 = vector.shape_cast %25 : vector<1x256xi1> to vector<1x256xi1>
    %181 = vector.broadcast %180 : vector<1x256xi1> to vector<8x256xi1>
    %182 = vector.broadcast %cst_103 : f32 to vector<8x256xf32>
    %183 = arith.select %181, %179, %182 : vector<8x256xi1>, vector<8x256xf32>
    %cst_104 = arith.constant dense<0.000000e+00> : vector<8x256xf32>
    %184 = tpu.matmul %64, %183, %cst_104 {dimension_numbers = #tpu.dot_dimension_numbers<[1], [0], [0], [1], [0, 0, 1, 1], [], []>} : vector<8x8xf32>, vector<8x256xf32>, vector<8x256xf32> -> vector<8x256xf32>
    %185 = arith.addf %178, %184 : vector<8x256xf32>
    %c239_i32_105 = arith.constant 239 : i32
    %186 = tpu.dynamic_rotate %133 by %c239_i32_105 dim 1 : vector<8x256xf32>, i32 -> vector<8x256xf32>
    %cst_106 = arith.constant 0.000000e+00 : f32
    %187 = vector.shape_cast %30 : vector<1x256xi1> to vector<1x256xi1>
    %188 = vector.broadcast %187 : vector<1x256xi1> to vector<8x256xi1>
    %189 = vector.broadcast %cst_106 : f32 to vector<8x256xf32>
    %190 = arith.select %188, %186, %189 : vector<8x256xi1>, vector<8x256xf32>
    %cst_107 = arith.constant dense<0.000000e+00> : vector<8x256xf32>
    %191 = tpu.matmul %66, %190, %cst_107 {dimension_numbers = #tpu.dot_dimension_numbers<[1], [0], [0], [1], [0, 0, 1, 1], [], []>} : vector<8x8xf32>, vector<8x256xf32>, vector<8x256xf32> -> vector<8x256xf32>
    %192 = arith.addf %185, %191 : vector<8x256xf32>
    %193 = vector.broadcast %68 : vector<8x1xf32> to vector<8x256xf32>
    %194 = arith.addf %192, %193 : vector<8x256xf32>
    %cst_108 = arith.constant 0.000000e+00 : f32
    %195 = vector.broadcast %cst_108 : f32 to vector<8x256xf32>
    %196 = arith.maximumf %194, %195 : vector<8x256xf32>
    %c0_109 = arith.constant 0 : index
    %c0_110 = arith.constant 0 : index
    %c0_111 = arith.constant 0 : index
    %197 = vector.load %arg6[%c0_109, %c0_110, %c0_111] : memref<2x8x256xf32, #tpu.memory_space<vmem>>, vector<1x8x256xf32>
    %198 = vector.shape_cast %197 : vector<1x8x256xf32> to vector<8x256xf32>
    %199 = vector.shape_cast %196 : vector<8x256xf32> to vector<1x8x256xf32>
    tpu.vector_store %arg6[%c0_109, %c0_110, %c0_111], %199 {strides = array<i32>} : memref<2x8x256xf32, #tpu.memory_space<vmem>>, vector<1x8x256xf32>,
    %c1_112 = arith.constant 1 : index
    %c0_113 = arith.constant 0 : index
    %c0_114 = arith.constant 0 : index
    %200 = vector.load %arg1[%c1_112, %c0_113, %c0_114] : memref<2x4x256xf32, #tpu.memory_space<vmem>>, vector<1x4x256xf32>
    %201 = vector.shape_cast %200 : vector<1x4x256xf32> to vector<4x256xf32>
    %cst_115 = arith.constant 0.000000e+00 : f32
    %202 = vector.broadcast %cst_115 : f32 to vector<8x256xf32>
    %c17_i32_116 = arith.constant 17 : i32
    %203 = tpu.dynamic_rotate %201 by %c17_i32_116 dim 1 : vector<4x256xf32>, i32 -> vector<4x256xf32>
    %cst_117 = arith.constant 0.000000e+00 : f32
    %204 = vector.shape_cast %7 : vector<1x256xi1> to vector<1x256xi1>
    %205 = vector.broadcast %204 : vector<1x256xi1> to vector<4x256xi1>
    %206 = vector.broadcast %cst_117 : f32 to vector<4x256xf32>
    %207 = arith.select %205, %203, %206 : vector<4x256xi1>, vector<4x256xf32>
    %cst_118 = arith.constant dense<0.000000e+00> : vector<8x256xf32>
    %208 = tpu.matmul %32, %207, %cst_118 {dimension_numbers = #tpu.dot_dimension_numbers<[1], [0], [0], [1], [0, 0, 1, 1], [], []>} : vector<8x4xf32>, vector<4x256xf32>, vector<8x256xf32> -> vector<8x256xf32>
    %209 = arith.addf %202, %208 : vector<8x256xf32>
    %c16_i32_119 = arith.constant 16 : i32
    %210 = tpu.dynamic_rotate %201 by %c16_i32_119 dim 1 : vector<4x256xf32>, i32 -> vector<4x256xf32>
    %cst_120 = arith.constant 0.000000e+00 : f32
    %211 = vector.shape_cast %9 : vector<1x256xi1> to vector<1x256xi1>
    %212 = vector.broadcast %211 : vector<1x256xi1> to vector<4x256xi1>
    %213 = vector.broadcast %cst_120 : f32 to vector<4x256xf32>
    %214 = arith.select %212, %210, %213 : vector<4x256xi1>, vector<4x256xf32>
    %cst_121 = arith.constant dense<0.000000e+00> : vector<8x256xf32>
    %215 = tpu.matmul %34, %214, %cst_121 {dimension_numbers = #tpu.dot_dimension_numbers<[1], [0], [0], [1], [0, 0, 1, 1], [], []>} : vector<8x4xf32>, vector<4x256xf32>, vector<8x256xf32> -> vector<8x256xf32>
    %216 = arith.addf %209, %215 : vector<8x256xf32>
    %c15_i32_122 = arith.constant 15 : i32
    %217 = tpu.dynamic_rotate %201 by %c15_i32_122 dim 1 : vector<4x256xf32>, i32 -> vector<4x256xf32>
    %cst_123 = arith.constant 0.000000e+00 : f32
    %218 = vector.shape_cast %14 : vector<1x256xi1> to vector<1x256xi1>
    %219 = vector.broadcast %218 : vector<1x256xi1> to vector<4x256xi1>
    %220 = vector.broadcast %cst_123 : f32 to vector<4x256xf32>
    %221 = arith.select %219, %217, %220 : vector<4x256xi1>, vector<4x256xf32>
    %cst_124 = arith.constant dense<0.000000e+00> : vector<8x256xf32>
    %222 = tpu.matmul %36, %221, %cst_124 {dimension_numbers = #tpu.dot_dimension_numbers<[1], [0], [0], [1], [0, 0, 1, 1], [], []>} : vector<8x4xf32>, vector<4x256xf32>, vector<8x256xf32> -> vector<8x256xf32>
    %223 = arith.addf %216, %222 : vector<8x256xf32>
    %c1_i32_125 = arith.constant 1 : i32
    %224 = tpu.dynamic_rotate %201 by %c1_i32_125 dim 1 : vector<4x256xf32>, i32 -> vector<4x256xf32>
    %cst_126 = arith.constant 0.000000e+00 : f32
    %225 = vector.shape_cast %16 : vector<1x256xi1> to vector<1x256xi1>
    %226 = vector.broadcast %225 : vector<1x256xi1> to vector<4x256xi1>
    %227 = vector.broadcast %cst_126 : f32 to vector<4x256xf32>
    %228 = arith.select %226, %224, %227 : vector<4x256xi1>, vector<4x256xf32>
    %cst_127 = arith.constant dense<0.000000e+00> : vector<8x256xf32>
    %229 = tpu.matmul %38, %228, %cst_127 {dimension_numbers = #tpu.dot_dimension_numbers<[1], [0], [0], [1], [0, 0, 1, 1], [], []>} : vector<8x4xf32>, vector<4x256xf32>, vector<8x256xf32> -> vector<8x256xf32>
    %230 = arith.addf %223, %229 : vector<8x256xf32>
    %cst_128 = arith.constant dense<0.000000e+00> : vector<8x256xf32>
    %231 = tpu.matmul %40, %201, %cst_128 {dimension_numbers = #tpu.dot_dimension_numbers<[1], [0], [0], [1], [0, 0, 1, 1], [], []>} : vector<8x4xf32>, vector<4x256xf32>, vector<8x256xf32> -> vector<8x256xf32>
    %232 = arith.addf %230, %231 : vector<8x256xf32>
    %c255_i32_129 = arith.constant 255 : i32
    %233 = tpu.dynamic_rotate %201 by %c255_i32_129 dim 1 : vector<4x256xf32>, i32 -> vector<4x256xf32>
    %cst_130 = arith.constant 0.000000e+00 : f32
    %234 = vector.shape_cast %18 : vector<1x256xi1> to vector<1x256xi1>
    %235 = vector.broadcast %234 : vector<1x256xi1> to vector<4x256xi1>
    %236 = vector.broadcast %cst_130 : f32 to vector<4x256xf32>
    %237 = arith.select %235, %233, %236 : vector<4x256xi1>, vector<4x256xf32>
    %cst_131 = arith.constant dense<0.000000e+00> : vector<8x256xf32>
    %238 = tpu.matmul %42, %237, %cst_131 {dimension_numbers = #tpu.dot_dimension_numbers<[1], [0], [0], [1], [0, 0, 1, 1], [], []>} : vector<8x4xf32>, vector<4x256xf32>, vector<8x256xf32> -> vector<8x256xf32>
    %239 = arith.addf %232, %238 : vector<8x256xf32>
    %c241_i32_132 = arith.constant 241 : i32
    %240 = tpu.dynamic_rotate %201 by %c241_i32_132 dim 1 : vector<4x256xf32>, i32 -> vector<4x256xf32>
    %cst_133 = arith.constant 0.000000e+00 : f32
    %241 = vector.shape_cast %23 : vector<1x256xi1> to vector<1x256xi1>
    %242 = vector.broadcast %241 : vector<1x256xi1> to vector<4x256xi1>
    %243 = vector.broadcast %cst_133 : f32 to vector<4x256xf32>
    %244 = arith.select %242, %240, %243 : vector<4x256xi1>, vector<4x256xf32>
    %cst_134 = arith.constant dense<0.000000e+00> : vector<8x256xf32>
    %245 = tpu.matmul %44, %244, %cst_134 {dimension_numbers = #tpu.dot_dimension_numbers<[1], [0], [0], [1], [0, 0, 1, 1], [], []>} : vector<8x4xf32>, vector<4x256xf32>, vector<8x256xf32> -> vector<8x256xf32>
    %246 = arith.addf %239, %245 : vector<8x256xf32>
    %c240_i32_135 = arith.constant 240 : i32
    %247 = tpu.dynamic_rotate %201 by %c240_i32_135 dim 1 : vector<4x256xf32>, i32 -> vector<4x256xf32>
    %cst_136 = arith.constant 0.000000e+00 : f32
    %248 = vector.shape_cast %25 : vector<1x256xi1> to vector<1x256xi1>
    %249 = vector.broadcast %248 : vector<1x256xi1> to vector<4x256xi1>
    %250 = vector.broadcast %cst_136 : f32 to vector<4x256xf32>
    %251 = arith.select %249, %247, %250 : vector<4x256xi1>, vector<4x256xf32>
    %cst_137 = arith.constant dense<0.000000e+00> : vector<8x256xf32>
    %252 = tpu.matmul %46, %251, %cst_137 {dimension_numbers = #tpu.dot_dimension_numbers<[1], [0], [0], [1], [0, 0, 1, 1], [], []>} : vector<8x4xf32>, vector<4x256xf32>, vector<8x256xf32> -> vector<8x256xf32>
    %253 = arith.addf %246, %252 : vector<8x256xf32>
    %c239_i32_138 = arith.constant 239 : i32
    %254 = tpu.dynamic_rotate %201 by %c239_i32_138 dim 1 : vector<4x256xf32>, i32 -> vector<4x256xf32>
    %cst_139 = arith.constant 0.000000e+00 : f32
    %255 = vector.shape_cast %30 : vector<1x256xi1> to vector<1x256xi1>
    %256 = vector.broadcast %255 : vector<1x256xi1> to vector<4x256xi1>
    %257 = vector.broadcast %cst_139 : f32 to vector<4x256xf32>
    %258 = arith.select %256, %254, %257 : vector<4x256xi1>, vector<4x256xf32>
    %cst_140 = arith.constant dense<0.000000e+00> : vector<8x256xf32>
    %259 = tpu.matmul %48, %258, %cst_140 {dimension_numbers = #tpu.dot_dimension_numbers<[1], [0], [0], [1], [0, 0, 1, 1], [], []>} : vector<8x4xf32>, vector<4x256xf32>, vector<8x256xf32> -> vector<8x256xf32>
    %260 = arith.addf %253, %259 : vector<8x256xf32>
    %261 = vector.broadcast %67 : vector<8x1xf32> to vector<8x256xf32>
    %262 = arith.addf %260, %261 : vector<8x256xf32>
    %cst_141 = arith.constant 0.000000e+00 : f32
    %263 = vector.broadcast %cst_141 : f32 to vector<8x256xf32>
    %264 = arith.maximumf %262, %263 : vector<8x256xf32>
    %cst_142 = arith.constant 0.000000e+00 : f32
    %265 = vector.broadcast %cst_142 : f32 to vector<8x256xf32>
    %c17_i32_143 = arith.constant 17 : i32
    %266 = tpu.dynamic_rotate %264 by %c17_i32_143 dim 1 : vector<8x256xf32>, i32 -> vector<8x256xf32>
    %cst_144 = arith.constant 0.000000e+00 : f32
    %267 = vector.shape_cast %7 : vector<1x256xi1> to vector<1x256xi1>
    %268 = vector.broadcast %267 : vector<1x256xi1> to vector<8x256xi1>
    %269 = vector.broadcast %cst_144 : f32 to vector<8x256xf32>
    %270 = arith.select %268, %266, %269 : vector<8x256xi1>, vector<8x256xf32>
    %cst_145 = arith.constant dense<0.000000e+00> : vector<8x256xf32>
    %271 = tpu.matmul %50, %270, %cst_145 {dimension_numbers = #tpu.dot_dimension_numbers<[1], [0], [0], [1], [0, 0, 1, 1], [], []>} : vector<8x8xf32>, vector<8x256xf32>, vector<8x256xf32> -> vector<8x256xf32>
    %272 = arith.addf %265, %271 : vector<8x256xf32>
    %c16_i32_146 = arith.constant 16 : i32
    %273 = tpu.dynamic_rotate %264 by %c16_i32_146 dim 1 : vector<8x256xf32>, i32 -> vector<8x256xf32>
    %cst_147 = arith.constant 0.000000e+00 : f32
    %274 = vector.shape_cast %9 : vector<1x256xi1> to vector<1x256xi1>
    %275 = vector.broadcast %274 : vector<1x256xi1> to vector<8x256xi1>
    %276 = vector.broadcast %cst_147 : f32 to vector<8x256xf32>
    %277 = arith.select %275, %273, %276 : vector<8x256xi1>, vector<8x256xf32>
    %cst_148 = arith.constant dense<0.000000e+00> : vector<8x256xf32>
    %278 = tpu.matmul %52, %277, %cst_148 {dimension_numbers = #tpu.dot_dimension_numbers<[1], [0], [0], [1], [0, 0, 1, 1], [], []>} : vector<8x8xf32>, vector<8x256xf32>, vector<8x256xf32> -> vector<8x256xf32>
    %279 = arith.addf %272, %278 : vector<8x256xf32>
    %c15_i32_149 = arith.constant 15 : i32
    %280 = tpu.dynamic_rotate %264 by %c15_i32_149 dim 1 : vector<8x256xf32>, i32 -> vector<8x256xf32>
    %cst_150 = arith.constant 0.000000e+00 : f32
    %281 = vector.shape_cast %14 : vector<1x256xi1> to vector<1x256xi1>
    %282 = vector.broadcast %281 : vector<1x256xi1> to vector<8x256xi1>
    %283 = vector.broadcast %cst_150 : f32 to vector<8x256xf32>
    %284 = arith.select %282, %280, %283 : vector<8x256xi1>, vector<8x256xf32>
    %cst_151 = arith.constant dense<0.000000e+00> : vector<8x256xf32>
    %285 = tpu.matmul %54, %284, %cst_151 {dimension_numbers = #tpu.dot_dimension_numbers<[1], [0], [0], [1], [0, 0, 1, 1], [], []>} : vector<8x8xf32>, vector<8x256xf32>, vector<8x256xf32> -> vector<8x256xf32>
    %286 = arith.addf %279, %285 : vector<8x256xf32>
    %c1_i32_152 = arith.constant 1 : i32
    %287 = tpu.dynamic_rotate %264 by %c1_i32_152 dim 1 : vector<8x256xf32>, i32 -> vector<8x256xf32>
    %cst_153 = arith.constant 0.000000e+00 : f32
    %288 = vector.shape_cast %16 : vector<1x256xi1> to vector<1x256xi1>
    %289 = vector.broadcast %288 : vector<1x256xi1> to vector<8x256xi1>
    %290 = vector.broadcast %cst_153 : f32 to vector<8x256xf32>
    %291 = arith.select %289, %287, %290 : vector<8x256xi1>, vector<8x256xf32>
    %cst_154 = arith.constant dense<0.000000e+00> : vector<8x256xf32>
    %292 = tpu.matmul %56, %291, %cst_154 {dimension_numbers = #tpu.dot_dimension_numbers<[1], [0], [0], [1], [0, 0, 1, 1], [], []>} : vector<8x8xf32>, vector<8x256xf32>, vector<8x256xf32> -> vector<8x256xf32>
    %293 = arith.addf %286, %292 : vector<8x256xf32>
    %cst_155 = arith.constant dense<0.000000e+00> : vector<8x256xf32>
    %294 = tpu.matmul %58, %264, %cst_155 {dimension_numbers = #tpu.dot_dimension_numbers<[1], [0], [0], [1], [0, 0, 1, 1], [], []>} : vector<8x8xf32>, vector<8x256xf32>, vector<8x256xf32> -> vector<8x256xf32>
    %295 = arith.addf %293, %294 : vector<8x256xf32>
    %c255_i32_156 = arith.constant 255 : i32
    %296 = tpu.dynamic_rotate %264 by %c255_i32_156 dim 1 : vector<8x256xf32>, i32 -> vector<8x256xf32>
    %cst_157 = arith.constant 0.000000e+00 : f32
    %297 = vector.shape_cast %18 : vector<1x256xi1> to vector<1x256xi1>
    %298 = vector.broadcast %297 : vector<1x256xi1> to vector<8x256xi1>
    %299 = vector.broadcast %cst_157 : f32 to vector<8x256xf32>
    %300 = arith.select %298, %296, %299 : vector<8x256xi1>, vector<8x256xf32>
    %cst_158 = arith.constant dense<0.000000e+00> : vector<8x256xf32>
    %301 = tpu.matmul %60, %300, %cst_158 {dimension_numbers = #tpu.dot_dimension_numbers<[1], [0], [0], [1], [0, 0, 1, 1], [], []>} : vector<8x8xf32>, vector<8x256xf32>, vector<8x256xf32> -> vector<8x256xf32>
    %302 = arith.addf %295, %301 : vector<8x256xf32>
    %c241_i32_159 = arith.constant 241 : i32
    %303 = tpu.dynamic_rotate %264 by %c241_i32_159 dim 1 : vector<8x256xf32>, i32 -> vector<8x256xf32>
    %cst_160 = arith.constant 0.000000e+00 : f32
    %304 = vector.shape_cast %23 : vector<1x256xi1> to vector<1x256xi1>
    %305 = vector.broadcast %304 : vector<1x256xi1> to vector<8x256xi1>
    %306 = vector.broadcast %cst_160 : f32 to vector<8x256xf32>
    %307 = arith.select %305, %303, %306 : vector<8x256xi1>, vector<8x256xf32>
    %cst_161 = arith.constant dense<0.000000e+00> : vector<8x256xf32>
    %308 = tpu.matmul %62, %307, %cst_161 {dimension_numbers = #tpu.dot_dimension_numbers<[1], [0], [0], [1], [0, 0, 1, 1], [], []>} : vector<8x8xf32>, vector<8x256xf32>, vector<8x256xf32> -> vector<8x256xf32>
    %309 = arith.addf %302, %308 : vector<8x256xf32>
    %c240_i32_162 = arith.constant 240 : i32
    %310 = tpu.dynamic_rotate %264 by %c240_i32_162 dim 1 : vector<8x256xf32>, i32 -> vector<8x256xf32>
    %cst_163 = arith.constant 0.000000e+00 : f32
    %311 = vector.shape_cast %25 : vector<1x256xi1> to vector<1x256xi1>
    %312 = vector.broadcast %311 : vector<1x256xi1> to vector<8x256xi1>
    %313 = vector.broadcast %cst_163 : f32 to vector<8x256xf32>
    %314 = arith.select %312, %310, %313 : vector<8x256xi1>, vector<8x256xf32>
    %cst_164 = arith.constant dense<0.000000e+00> : vector<8x256xf32>
    %315 = tpu.matmul %64, %314, %cst_164 {dimension_numbers = #tpu.dot_dimension_numbers<[1], [0], [0], [1], [0, 0, 1, 1], [], []>} : vector<8x8xf32>, vector<8x256xf32>, vector<8x256xf32> -> vector<8x256xf32>
    %316 = arith.addf %309, %315 : vector<8x256xf32>
    %c239_i32_165 = arith.constant 239 : i32
    %317 = tpu.dynamic_rotate %264 by %c239_i32_165 dim 1 : vector<8x256xf32>, i32 -> vector<8x256xf32>
    %cst_166 = arith.constant 0.000000e+00 : f32
    %318 = vector.shape_cast %30 : vector<1x256xi1> to vector<1x256xi1>
    %319 = vector.broadcast %318 : vector<1x256xi1> to vector<8x256xi1>
    %320 = vector.broadcast %cst_166 : f32 to vector<8x256xf32>
    %321 = arith.select %319, %317, %320 : vector<8x256xi1>, vector<8x256xf32>
    %cst_167 = arith.constant dense<0.000000e+00> : vector<8x256xf32>
    %322 = tpu.matmul %66, %321, %cst_167 {dimension_numbers = #tpu.dot_dimension_numbers<[1], [0], [0], [1], [0, 0, 1, 1], [], []>} : vector<8x8xf32>, vector<8x256xf32>, vector<8x256xf32> -> vector<8x256xf32>
    %323 = arith.addf %316, %322 : vector<8x256xf32>
    %324 = vector.broadcast %68 : vector<8x1xf32> to vector<8x256xf32>
    %325 = arith.addf %323, %324 : vector<8x256xf32>
    %cst_168 = arith.constant 0.000000e+00 : f32
    %326 = vector.broadcast %cst_168 : f32 to vector<8x256xf32>
    %327 = arith.maximumf %325, %326 : vector<8x256xf32>
    %c1_169 = arith.constant 1 : index
    %c0_170 = arith.constant 0 : index
    %c0_171 = arith.constant 0 : index
    %328 = vector.load %arg6[%c1_169, %c0_170, %c0_171] : memref<2x8x256xf32, #tpu.memory_space<vmem>>, vector<1x8x256xf32>
    %329 = vector.shape_cast %328 : vector<1x8x256xf32> to vector<8x256xf32>
    %330 = vector.shape_cast %327 : vector<8x256xf32> to vector<1x8x256xf32>
    tpu.vector_store %arg6[%c1_169, %c0_170, %c0_171], %330 {strides = array<i32>} : memref<2x8x256xf32, #tpu.memory_space<vmem>>, vector<1x8x256xf32>,
    return
  }
  func.func @transform_0(%arg0: i32) -> (i32, i32, i32) {
    %c0_i32 = arith.constant 0 : i32
    %c0_i32_0 = arith.constant 0 : i32
    %c0_i32_1 = arith.constant 0 : i32
    return %arg0, %c0_i32, %c0_i32_0 : i32, i32, i32
  }
  func.func @transform_1(%arg0: i32) -> (i32, i32, i32) {
    %c0_i32 = arith.constant 0 : i32
    %c0_i32_0 = arith.constant 0 : i32
    %c0_i32_1 = arith.constant 0 : i32
    %c0_i32_2 = arith.constant 0 : i32
    return %c0_i32, %c0_i32_0, %c0_i32_1 : i32, i32, i32
  }
  func.func @transform_2(%arg0: i32) -> (i32, i32) {
    %c0_i32 = arith.constant 0 : i32
    %c0_i32_0 = arith.constant 0 : i32
    %c0_i32_1 = arith.constant 0 : i32
    return %c0_i32, %c0_i32_0 : i32, i32
  }
  func.func @transform_3(%arg0: i32) -> (i32, i32, i32) {
    %c0_i32 = arith.constant 0 : i32
    %c0_i32_0 = arith.constant 0 : i32
    %c0_i32_1 = arith.constant 0 : i32
    %c0_i32_2 = arith.constant 0 : i32
    return %c0_i32, %c0_i32_0, %c0_i32_1 : i32, i32, i32
  }
  func.func @transform_4(%arg0: i32) -> (i32, i32) {
    %c0_i32 = arith.constant 0 : i32
    %c0_i32_0 = arith.constant 0 : i32
    %c0_i32_1 = arith.constant 0 : i32
    return %c0_i32, %c0_i32_0 : i32, i32
  }
  func.func @transform_5(%arg0: i32) -> (i32, i32, i32) {
    %c0_i32 = arith.constant 0 : i32
    %c0_i32_0 = arith.constant 0 : i32
    %c0_i32_1 = arith.constant 0 : i32
    return %arg0, %c0_i32, %c0_i32_0 : i32, i32, i32
  }
}

</mosaic_0001>

<llo_original>
// kernel: tpu_custom_call.1
$region0: #{tpu_custom_call.1}
  #allocation0 [shape = 'u32[]', space=smem, size = 0x4, offset = 0x4, fixed_abs, tag = 'smem constant byte address 0x4 - core index']
  #allocation1 [shape = 'u32[144,128]{1,0:T(1,128)}', space=vmem, size = 0x12000, scoped, tag = 'internal scratch']
  %s0 = inlined_call_operand.vmem [shape: f32[2,4,256], index: 0, kind: input, shape index: {}]
  %s1 = inlined_call_operand.vmem [shape: f32[9,8,4], index: 1, kind: input, shape index: {}]
  %s2 = inlined_call_operand.vmem [shape: f32[8,1], index: 2, kind: input, shape index: {}]
  %s3 = inlined_call_operand.vmem [shape: f32[9,8,8], index: 3, kind: input, shape index: {}]
  %s4 = inlined_call_operand.vmem [shape: f32[8,1], index: 4, kind: input, shape index: {}]
  %s5 = inlined_call_operand.hbm [shape: f32[2,8,256], index: 5, kind: output, shape index: {}]
  %s6 = sld [smem:[#allocation0]]
  $region30: #{tpu_custom_call.1} parent=0
    _
  %s8 = ssub.s32 1, %s6
  %s9 = scalar_select 0, %s8, %s6
  $region1: #{tpu_custom_call.1} parent=0
    #allocation2 [shape = 'u8[16384]{0}', space=vmem, size = 0x4000, scoped, tag = 'output window, operand 0, single buffered']
    #allocation3 [shape = 's32[1]{0}', space=sflag, size = 0x4, scoped, tag = 'scoped memory for tpu_custom_call.1']
    %10 = vsyncpa [#allocation3], 0
    // Predicated region
    $region2: #{tpu_custom_call.1} parent=1 // pred_check
      _
    $region3: #{tpu_custom_call.1} parent=1 // pred_check_branch
      %12 = sbr.rel (0) target = $region5
    $region4: #{tpu_custom_call.1} parent=1 // pred_region
      _
    $region5: #{tpu_custom_call.1} parent=1 // pred_fallthru
      _
    // Predicated region
    $region6: #{tpu_custom_call.1} parent=1 // pred_check
      _
    $region7: #{tpu_custom_call.1} parent=1 // pred_check_branch
      %14 = sbr.rel (0) target = $region9
    $region8: #{tpu_custom_call.1} parent=1 // pred_region
      _
    $region9: #{tpu_custom_call.1} parent=1 // pred_fallthru
      _
    // Predicated region
    $region10: #{tpu_custom_call.1} parent=1 // pred_check
      _
    $region11: #{tpu_custom_call.1} parent=1 // pred_check_branch
      %16 = sbr.rel (0) target = $region13
    $region12: #{tpu_custom_call.1} parent=1 // pred_region
      _
    $region13: #{tpu_custom_call.1} parent=1 // pred_fallthru
      _
    // Predicated region
    $region14: #{tpu_custom_call.1} parent=1 // pred_check
      _
    $region15: #{tpu_custom_call.1} parent=1 // pred_check_branch
      %18 = sbr.rel (0) target = $region17
    $region16: #{tpu_custom_call.1} parent=1 // pred_region
      _
    $region17: #{tpu_custom_call.1} parent=1 // pred_fallthru
      _
    // Predicated region
    $region18: #{tpu_custom_call.1} parent=1 // pred_check
      _
    $region19: #{tpu_custom_call.1} parent=1 // pred_check_branch
      %20 = sbr.rel (0) target = $region21
    $region20: #{tpu_custom_call.1} parent=1 // pred_region
      _
    $region21: #{tpu_custom_call.1} parent=1 // pred_fallthru
      _
    %v21 = vlaneseq
    %v22 = vand.u32 %v21, 127
    %v23 = vadd.s32 %v22, 128
    %v24 = vand.u32 %v22, 15
    %v25 = vand.u32 %v23, 15
    %vm26 = vcmp.ge.s32.totalorder %v22, 16
    %vm27 = vcmp.ge.s32.totalorder %v23, 16
    %vm28 = vcmp.ge.s32.totalorder %v24, 1
    %vm29 = vcmp.ge.s32.totalorder %v25, 1
    %vm30 = vmand %vm26, %vm28
    %vm31 = vmand %vm27, %vm29
    %vm32 = vcmp.le.s32.totalorder %v24, 14
    %vm33 = vcmp.le.s32.totalorder %v25, 14
    %vm34 = vmand %vm26, %vm32
    %vm35 = vmand %vm27, %vm33
    %vm36 = vcmp.lt.s32.totalorder %v22, 240
    %vm37 = vcmp.lt.s32.totalorder %v23, 240
    %vm38 = vmand %vm36, %vm28
    %vm39 = vmand %vm37, %vm29
    %vm40 = vmand %vm36, %vm32
    %vm41 = vmand %vm37, %vm33
    %v42 = vld [vmem:[%s1] sm:$0xff]
    %s43 = scalar_lea.vmem %s1, 8
    %v44 = vld [vmem:[%s43] sm:$0xff]
    %s45 = scalar_lea.vmem %s1, 16
    %v46 = vld [vmem:[%s45] sm:$0xff]
    %s47 = scalar_lea.vmem %s1, 24
    %v48 = vld [vmem:[%s47] sm:$0xff]
    %s49 = scalar_lea.vmem %s1, 32
    %v50 = vld [vmem:[%s49] sm:$0xff]
    %s51 = scalar_lea.vmem %s1, 40
    %v52 = vld [vmem:[%s51] sm:$0xff]
    %s53 = scalar_lea.vmem %s1, 48
    %v54 = vld [vmem:[%s53] sm:$0xff]
    %s55 = scalar_lea.vmem %s1, 56
    %v56 = vld [vmem:[%s55] sm:$0xff]
    %s57 = scalar_lea.vmem %s1, 64
    %v58 = vld [vmem:[%s57] sm:$0xff]
    %v59 = vld [vmem:[%s3] sm:$0xff]
    %s60 = scalar_lea.vmem %s3, 8
    %v61 = vld [vmem:[%s60] sm:$0xff]
    %s62 = scalar_lea.vmem %s3, 16
    %v63 = vld [vmem:[%s62] sm:$0xff]
    %s64 = scalar_lea.vmem %s3, 24
    %v65 = vld [vmem:[%s64] sm:$0xff]
    %s66 = scalar_lea.vmem %s3, 32
    %v67 = vld [vmem:[%s66] sm:$0xff]
    %s68 = scalar_lea.vmem %s3, 40
    %v69 = vld [vmem:[%s68] sm:$0xff]
    %s70 = scalar_lea.vmem %s3, 48
    %v71 = vld [vmem:[%s70] sm:$0xff]
    %s72 = scalar_lea.vmem %s3, 56
    %v73 = vld [vmem:[%s72] sm:$0xff]
    %s74 = scalar_lea.vmem %s3, 64
    %v75 = vld [vmem:[%s74] sm:$0xff]
    %v76 = vld [vmem:[%s2] sm:$0xff]
    %v77 = vld [vmem:[%s4] sm:$0xff]
    %v78 = vld [vmem:[%s0] sm:$0xff]
    %v80 = vcombine.high %v78, %v78
    %82 = vrot.lane.b32.xlu0 %v78, 17
    %v83 = vpop.permute.xlu0 %82
    %84 = vrot.lane.b32.xlu0 %v80, 17
    %v85 = vpop.permute.xlu0 %84
    %vm86 = vcmp.lt.s32.totalorder %v22, 17
    %v87 = vsel %vm86, %v83, %v85
    %v88 = vsel %vm86, %v85, %v83
    %v89 = vsel %vm30, 1, 0
    %v90 = vsel %vm31, 1, 0
    %vm91 = vcmp.eq.s32.totalorder %v89, 1
    %vm92 = vcmp.eq.s32.totalorder %v90, 1
    %v93 = vsel %vm91, %v88, 0.0
    %v94 = vsel %vm92, %v87, 0.0
    %95 = vrot.lane.b32.xlu0 %v78, 16
    %v96 = vpop.permute.xlu0 %95
    %97 = vrot.lane.b32.xlu0 %v80, 16
    %v98 = vpop.permute.xlu0 %97
    %vm99 = vcmp.lt.s32.totalorder %v22, 16
    %v100 = vsel %vm99, %v96, %v98
    %v101 = vsel %vm99, %v98, %v96
    %v102 = vsel %vm26, 1, 0
    %v103 = vsel %vm27, 1, 0
    %vm104 = vcmp.eq.s32.totalorder %v102, 1
    %vm105 = vcmp.eq.s32.totalorder %v103, 1
    %v106 = vsel %vm104, %v101, 0.0
    %v107 = vsel %vm105, %v100, 0.0
    %vm108 = vcmask 31744
    %v110 = vsel %vm108, %v44, 0
    %vm112 = vcmask 1043456
    %v114 = vsel %vm112, %v106, 0
    %v117 = vsel %vm112, %v107, 0
    %119 = vmatprep.subr.mxu0 %v117
    %120 = vmatpush1.msra.mxu0 %v114
    %121 = vmatprep.subr.mxu0 0.0
    %122 = vmatpush1.msra.mxu0 0.0
    %123 = vmatprep.subr.mxu0 0.0
    %124 = vmatpush1.msra.mxu0 0.0
    %125 = vmatprep.subr.mxu0 0.0
    %126 = vmatpush1.msra.mxu0 0.0
    %127 = vmatprep.subr.mxu0 0.0
    %128 = vmatpush1.msra.mxu0 0.0
    %129 = vmatprep.subr.mxu0 0.0
    %130 = vmatpush1.msra.mxu0 0.0
    %131 = vmatprep.subr.mxu0 0.0
    %132 = vmatpush1.msra.mxu0 0.0
    %133 = vmatprep.subr.mxu0 0.0
    %134 = vmatpush1.msra.mxu0 0.0
    %135 = vmatprep.subr.mxu0 0.0
    %136 = vmatpush1.msra.mxu0 0.0
    %137 = vmatprep.subr.mxu0 0.0
    %138 = vmatpush1.msra.mxu0 0.0
    %139 = vmatprep.subr.mxu0 0.0
    %140 = vmatpush1.msra.mxu0 0.0
    %141 = vmatprep.subr.mxu0 0.0
    %142 = vmatpush1.msra.mxu0 0.0
    %143 = vmatprep.subr.mxu0 0.0
    %144 = vmatpush1.msra.mxu0 0.0
    %145 = vmatprep.subr.mxu0 0.0
    %146 = vmatpush1.msra.mxu0 0.0
    %147 = vmatprep.subr.mxu0 0.0
    %148 = vmatpush1.msra.mxu0 0.0
    %149 = vmatprep.subr.mxu0 0.0
    %150 = vmatpush1.msra.mxu0 0.0
    %151 = vmatprep.subr.mxu0 0.0
    %152 = vmatpush1.msra.mxu0 0.0
    %153 = vmatprep.subr.mxu0 0.0
    %154 = vmatpush1.msra.mxu0 0.0
    %155 = vmatprep.subr.mxu0 0.0
    %156 = vmatpush1.msra.mxu0 0.0
    %157 = vmatprep.subr.mxu0 0.0
    %158 = vmatpush1.msra.mxu0 0.0
    %159 = vmatprep.subr.mxu0 0.0
    %160 = vmatpush1.msra.mxu0 0.0
    %161 = vmatprep.subr.mxu0 0.0
    %162 = vmatpush1.msra.mxu0 0.0
    %163 = vmatprep.subr.mxu0 0.0
    %164 = vmatpush1.msra.mxu0 0.0
    %165 = vmatprep.subr.mxu0 0.0
    %166 = vmatpush1.msra.mxu0 0.0
    %167 = vmatprep.subr.mxu0 0.0
    %168 = vmatpush1.msra.mxu0 0.0
    %169 = vmatprep.subr.mxu0 0.0
    %170 = vmatpush1.msra.mxu0 0.0
    %171 = vmatprep.subr.mxu0 0.0
    %172 = vmatpush1.msra.mxu0 0.0
    %173 = vmatprep.subr.mxu0 0.0
    %174 = vmatpush1.msra.mxu0 0.0
    %175 = vmatprep.subr.mxu0 0.0
    %176 = vmatpush1.msra.mxu0 0.0
    %177 = vmatprep.subr.mxu0 0.0
    %178 = vmatpush1.msra.mxu0 0.0
    %179 = vmatprep.subr.mxu0 0.0
    %180 = vmatpush1.msra.mxu0 0.0
    %181 = vmatprep.subr.mxu0 0.0
    %182 = vmatpush1.msra.mxu0 0.0
    %183 = vmatprep.mubr.f32.mxu0 0.0
    %184 = vmatmul.mubr.f32.gmra.mrb[0].mxu0 %v110
    %v185 = vpop.f32.mrb[0].mxu0
    %v186 = vadd.f32 0.0, %v185
    %v187 = vpop.f32.mrb[0].mxu0
    %v188 = vadd.f32 0.0, %v187
    %189 = vdwg.mxu0
    %v191 = vsel %vm108, %v42, 0
    %v194 = vsel %vm112, %v93, 0
    %v197 = vsel %vm112, %v94, 0
    %199 = vmatprep.subr.mxu0 %v197
    %200 = vmatpush1.msra.mxu0 %v194
    %201 = vmatprep.subr.mxu0 0.0
    %202 = vmatpush1.msra.mxu0 0.0
    %203 = vmatprep.subr.mxu0 0.0
    %204 = vmatpush1.msra.mxu0 0.0
    %205 = vmatprep.subr.mxu0 0.0
    %206 = vmatpush1.msra.mxu0 0.0
    %207 = vmatprep.subr.mxu0 0.0
    %208 = vmatpush1.msra.mxu0 0.0
    %209 = vmatprep.subr.mxu0 0.0
    %210 = vmatpush1.msra.mxu0 0.0
    %211 = vmatprep.subr.mxu0 0.0
    %212 = vmatpush1.msra.mxu0 0.0
    %213 = vmatprep.subr.mxu0 0.0
    %214 = vmatpush1.msra.mxu0 0.0
    %215 = vmatprep.subr.mxu0 0.0
    %216 = vmatpush1.msra.mxu0 0.0
    %217 = vmatprep.subr.mxu0 0.0
    %218 = vmatpush1.msra.mxu0 0.0
    %219 = vmatprep.subr.mxu0 0.0
    %220 = vmatpush1.msra.mxu0 0.0
    %221 = vmatprep.subr.mxu0 0.0
    %222 = vmatpush1.msra.mxu0 0.0
    %223 = vmatprep.subr.mxu0 0.0
    %224 = vmatpush1.msra.mxu0 0.0
    %225 = vmatprep.subr.mxu0 0.0
    %226 = vmatpush1.msra.mxu0 0.0
    %227 = vmatprep.subr.mxu0 0.0
    %228 = vmatpush1.msra.mxu0 0.0
    %229 = vmatprep.subr.mxu0 0.0
    %230 = vmatpush1.msra.mxu0 0.0
    %231 = vmatprep.subr.mxu0 0.0
    %232 = vmatpush1.msra.mxu0 0.0
    %233 = vmatprep.subr.mxu0 0.0
    %234 = vmatpush1.msra.mxu0 0.0
    %235 = vmatprep.subr.mxu0 0.0
    %236 = vmatpush1.msra.mxu0 0.0
    %237 = vmatprep.subr.mxu0 0.0
    %238 = vmatpush1.msra.mxu0 0.0
    %239 = vmatprep.subr.mxu0 0.0
    %240 = vmatpush1.msra.mxu0 0.0
    %241 = vmatprep.subr.mxu0 0.0
    %242 = vmatpush1.msra.mxu0 0.0
    %243 = vmatprep.subr.mxu0 0.0
    %244 = vmatpush1.msra.mxu0 0.0
    %245 = vmatprep.subr.mxu0 0.0
    %246 = vmatpush1.msra.mxu0 0.0
    %247 = vmatprep.subr.mxu0 0.0
    %248 = vmatpush1.msra.mxu0 0.0
    %249 = vmatprep.subr.mxu0 0.0
    %250 = vmatpush1.msra.mxu0 0.0
    %251 = vmatprep.subr.mxu0 0.0
    %252 = vmatpush1.msra.mxu0 0.0
    %253 = vmatprep.subr.mxu0 0.0
    %254 = vmatpush1.msra.mxu0 0.0
    %255 = vmatprep.subr.mxu0 0.0
    %256 = vmatpush1.msra.mxu0 0.0
    %257 = vmatprep.subr.mxu0 0.0
    %258 = vmatpush1.msra.mxu0 0.0
    %259 = vmatprep.subr.mxu0 0.0
    %260 = vmatpush1.msra.mxu0 0.0
    %261 = vmatprep.subr.mxu0 0.0
    %262 = vmatpush1.msra.mxu0 0.0
    %263 = vmatprep.mubr.f32.mxu0 0.0
    %264 = vmatmul.mubr.f32.gmra.mrb[0].mxu0 %v191
    %v265 = vpop.f32.mrb[0].mxu0
    %v266 = vadd.f32 %v186, %v265
    %v267 = vpop.f32.mrb[0].mxu0
    %v268 = vadd.f32 %v188, %v267
    %269 = vdwg.mxu0
    %270 = vrot.lane.b32.xlu0 %v78, 15
    %v271 = vpop.permute.xlu0 %270
    %272 = vrot.lane.b32.xlu0 %v80, 15
    %v273 = vpop.permute.xlu0 %272
    %vm274 = vcmp.lt.s32.totalorder %v22, 15
    %v275 = vsel %vm274, %v271, %v273
    %v276 = vsel %vm274, %v273, %v271
    %v277 = vsel %vm34, 1, 0
    %v278 = vsel %vm35, 1, 0
    %vm279 = vcmp.eq.s32.totalorder %v277, 1
    %vm280 = vcmp.eq.s32.totalorder %v278, 1
    %v281 = vsel %vm279, %v276, 0.0
    %v282 = vsel %vm280, %v275, 0.0
    %v284 = vsel %vm108, %v46, 0
    %v287 = vsel %vm112, %v281, 0
    %v290 = vsel %vm112, %v282, 0
    %292 = vmatprep.subr.mxu0 %v290
    %293 = vmatpush1.msra.mxu0 %v287
    %294 = vmatprep.subr.mxu0 0.0
    %295 = vmatpush1.msra.mxu0 0.0
    %296 = vmatprep.subr.mxu0 0.0
    %297 = vmatpush1.msra.mxu0 0.0
    %298 = vmatprep.subr.mxu0 0.0
    %299 = vmatpush1.msra.mxu0 0.0
    %300 = vmatprep.subr.mxu0 0.0
    %301 = vmatpush1.msra.mxu0 0.0
    %302 = vmatprep.subr.mxu0 0.0
    %303 = vmatpush1.msra.mxu0 0.0
    %304 = vmatprep.subr.mxu0 0.0
    %305 = vmatpush1.msra.mxu0 0.0
    %306 = vmatprep.subr.mxu0 0.0
    %307 = vmatpush1.msra.mxu0 0.0
    %308 = vmatprep.subr.mxu0 0.0
    %309 = vmatpush1.msra.mxu0 0.0
    %310 = vmatprep.subr.mxu0 0.0
    %311 = vmatpush1.msra.mxu0 0.0
    %312 = vmatprep.subr.mxu0 0.0
    %313 = vmatpush1.msra.mxu0 0.0
    %314 = vmatprep.subr.mxu0 0.0
    %315 = vmatpush1.msra.mxu0 0.0
    %316 = vmatprep.subr.mxu0 0.0
    %317 = vmatpush1.msra.mxu0 0.0
    %318 = vmatprep.subr.mxu0 0.0
    %319 = vmatpush1.msra.mxu0 0.0
    %320 = vmatprep.subr.mxu0 0.0
    %321 = vmatpush1.msra.mxu0 0.0
    %322 = vmatprep.subr.mxu0 0.0
    %323 = vmatpush1.msra.mxu0 0.0
    %324 = vmatprep.subr.mxu0 0.0
    %325 = vmatpush1.msra.mxu0 0.0
    %326 = vmatprep.subr.mxu0 0.0
    %327 = vmatpush1.msra.mxu0 0.0
    %328 = vmatprep.subr.mxu0 0.0
    %329 = vmatpush1.msra.mxu0 0.0
    %330 = vmatprep.subr.mxu0 0.0
    %331 = vmatpush1.msra.mxu0 0.0
    %332 = vmatprep.subr.mxu0 0.0
    %333 = vmatpush1.msra.mxu0 0.0
    %334 = vmatprep.subr.mxu0 0.0
    %335 = vmatpush1.msra.mxu0 0.0
    %336 = vmatprep.subr.mxu0 0.0
    %337 = vmatpush1.msra.mxu0 0.0
    %338 = vmatprep.subr.mxu0 0.0
    %339 = vmatpush1.msra.mxu0 0.0
    %340 = vmatprep.subr.mxu0 0.0
    %341 = vmatpush1.msra.mxu0 0.0
    %342 = vmatprep.subr.mxu0 0.0
    %343 = vmatpush1.msra.mxu0 0.0
    %344 = vmatprep.subr.mxu0 0.0
    %345 = vmatpush1.msra.mxu0 0.0
    %346 = vmatprep.subr.mxu0 0.0
    %347 = vmatpush1.msra.mxu0 0.0
    %348 = vmatprep.subr.mxu0 0.0
    %349 = vmatpush1.msra.mxu0 0.0
    %350 = vmatprep.subr.mxu0 0.0
    %351 = vmatpush1.msra.mxu0 0.0
    %352 = vmatprep.subr.mxu0 0.0
    %353 = vmatpush1.msra.mxu0 0.0
    %354 = vmatprep.subr.mxu0 0.0
    %355 = vmatpush1.msra.mxu0 0.0
    %356 = vmatprep.mubr.f32.mxu0 0.0
    %357 = vmatmul.mubr.f32.gmra.mrb[0].mxu0 %v284
    %v358 = vpop.f32.mrb[0].mxu0
    %v359 = vadd.f32 0.0, %v358
    %v360 = vpop.f32.mrb[0].mxu0
    %v361 = vadd.f32 0.0, %v360
    %362 = vdwg.mxu0
    %v363 = vadd.f32 %v266, %v359
    %v364 = vadd.f32 %v268, %v361
    %365 = vrot.lane.b32.xlu0 %v78, 1
    %v366 = vpop.permute.xlu0 %365
    %367 = vrot.lane.b32.xlu0 %v80, 1
    %v368 = vpop.permute.xlu0 %367
    %vm369 = vcmp.lt.s32.totalorder %v22, 1
    %v370 = vsel %vm369, %v366, %v368
    %v371 = vsel %vm369, %v368, %v366
    %v372 = vsel %vm28, 1, 0
    %v373 = vsel %vm29, 1, 0
    %vm374 = vcmp.eq.s32.totalorder %v372, 1
    %vm375 = vcmp.eq.s32.totalorder %v373, 1
    %v376 = vsel %vm374, %v371, 0.0
    %v377 = vsel %vm375, %v370, 0.0
    %v379 = vsel %vm108, %v48, 0
    %v382 = vsel %vm112, %v376, 0
    %v385 = vsel %vm112, %v377, 0
    %387 = vmatprep.subr.mxu0 %v385
    %388 = vmatpush1.msra.mxu0 %v382
    %389 = vmatprep.subr.mxu0 0.0
    %390 = vmatpush1.msra.mxu0 0.0
    %391 = vmatprep.subr.mxu0 0.0
    %392 = vmatpush1.msra.mxu0 0.0
    %393 = vmatprep.subr.mxu0 0.0
    %394 = vmatpush1.msra.mxu0 0.0
    %395 = vmatprep.subr.mxu0 0.0
    %396 = vmatpush1.msra.mxu0 0.0
    %397 = vmatprep.subr.mxu0 0.0
    %398 = vmatpush1.msra.mxu0 0.0
    %399 = vmatprep.subr.mxu0 0.0
    %400 = vmatpush1.msra.mxu0 0.0
    %401 = vmatprep.subr.mxu0 0.0
    %402 = vmatpush1.msra.mxu0 0.0
    %403 = vmatprep.subr.mxu0 0.0
    %404 = vmatpush1.msra.mxu0 0.0
    %405 = vmatprep.subr.mxu0 0.0
    %406 = vmatpush1.msra.mxu0 0.0
    %407 = vmatprep.subr.mxu0 0.0
    %408 = vmatpush1.msra.mxu0 0.0
    %409 = vmatprep.subr.mxu0 0.0
    %410 = vmatpush1.msra.mxu0 0.0
    %411 = vmatprep.subr.mxu0 0.0
    %412 = vmatpush1.msra.mxu0 0.0
    %413 = vmatprep.subr.mxu0 0.0
    %414 = vmatpush1.msra.mxu0 0.0
    %415 = vmatprep.subr.mxu0 0.0
    %416 = vmatpush1.msra.mxu0 0.0
    %417 = vmatprep.subr.mxu0 0.0
    %418 = vmatpush1.msra.mxu0 0.0
    %419 = vmatprep.subr.mxu0 0.0
    %420 = vmatpush1.msra.mxu0 0.0
    %421 = vmatprep.subr.mxu0 0.0
    %422 = vmatpush1.msra.mxu0 0.0
    %423 = vmatprep.subr.mxu0 0.0
    %424 = vmatpush1.msra.mxu0 0.0
    %425 = vmatprep.subr.mxu0 0.0
    %426 = vmatpush1.msra.mxu0 0.0
    %427 = vmatprep.subr.mxu0 0.0
    %428 = vmatpush1.msra.mxu0 0.0
    %429 = vmatprep.subr.mxu0 0.0
    %430 = vmatpush1.msra.mxu0 0.0
    %431 = vmatprep.subr.mxu0 0.0
    %432 = vmatpush1.msra.mxu0 0.0
    %433 = vmatprep.subr.mxu0 0.0
    %434 = vmatpush1.msra.mxu0 0.0
    %435 = vmatprep.subr.mxu0 0.0
    %436 = vmatpush1.msra.mxu0 0.0
    %437 = vmatprep.subr.mxu0 0.0
    %438 = vmatpush1.msra.mxu0 0.0
    %439 = vmatprep.subr.mxu0 0.0
    %440 = vmatpush1.msra.mxu0 0.0
    %441 = vmatprep.subr.mxu0 0.0
    %442 = vmatpush1.msra.mxu0 0.0
    %443 = vmatprep.subr.mxu0 0.0
    %444 = vmatpush1.msra.mxu0 0.0
    %445 = vmatprep.subr.mxu0 0.0
    %446 = vmatpush1.msra.mxu0 0.0
    %447 = vmatprep.subr.mxu0 0.0
    %448 = vmatpush1.msra.mxu0 0.0
    %449 = vmatprep.subr.mxu0 0.0
    %450 = vmatpush1.msra.mxu0 0.0
    %451 = vmatprep.mubr.f32.mxu0 0.0
    %452 = vmatmul.mubr.f32.gmra.mrb[0].mxu0 %v379
    %v453 = vpop.f32.mrb[0].mxu0
    %v454 = vadd.f32 0.0, %v453
    %v455 = vpop.f32.mrb[0].mxu0
    %v456 = vadd.f32 0.0, %v455
    %457 = vdwg.mxu0
    %v458 = vadd.f32 %v363, %v454
    %v459 = vadd.f32 %v364, %v456
    %v461 = vsel %vm108, %v50, 0
    %v463 = vsel %vm112, %v78, 0
    %v465 = vsel %vm112, %v80, 0
    %467 = vmatprep.subr.mxu0 %v465
    %468 = vmatpush1.msra.mxu0 %v463
    %469 = vmatprep.subr.mxu0 0.0
    %470 = vmatpush1.msra.mxu0 0.0
    %471 = vmatprep.subr.mxu0 0.0
    %472 = vmatpush1.msra.mxu0 0.0
    %473 = vmatprep.subr.mxu0 0.0
    %474 = vmatpush1.msra.mxu0 0.0
    %475 = vmatprep.subr.mxu0 0.0
    %476 = vmatpush1.msra.mxu0 0.0
    %477 = vmatprep.subr.mxu0 0.0
    %478 = vmatpush1.msra.mxu0 0.0
    %479 = vmatprep.subr.mxu0 0.0
    %480 = vmatpush1.msra.mxu0 0.0
    %481 = vmatprep.subr.mxu0 0.0
    %482 = vmatpush1.msra.mxu0 0.0
    %483 = vmatprep.subr.mxu0 0.0
    %484 = vmatpush1.msra.mxu0 0.0
    %485 = vmatprep.subr.mxu0 0.0
    %486 = vmatpush1.msra.mxu0 0.0
    %487 = vmatprep.subr.mxu0 0.0
    %488 = vmatpush1.msra.mxu0 0.0
    %489 = vmatprep.subr.mxu0 0.0
    %490 = vmatpush1.msra.mxu0 0.0
    %491 = vmatprep.subr.mxu0 0.0
    %492 = vmatpush1.msra.mxu0 0.0
    %493 = vmatprep.subr.mxu0 0.0
    %494 = vmatpush1.msra.mxu0 0.0
    %495 = vmatprep.subr.mxu0 0.0
    %496 = vmatpush1.msra.mxu0 0.0
    %497 = vmatprep.subr.mxu0 0.0
    %498 = vmatpush1.msra.mxu0 0.0
    %499 = vmatprep.subr.mxu0 0.0
    %500 = vmatpush1.msra.mxu0 0.0
    %501 = vmatprep.subr.mxu0 0.0
    %502 = vmatpush1.msra.mxu0 0.0
    %503 = vmatprep.subr.mxu0 0.0
    %504 = vmatpush1.msra.mxu0 0.0
    %505 = vmatprep.subr.mxu0 0.0
    %506 = vmatpush1.msra.mxu0 0.0
    %507 = vmatprep.subr.mxu0 0.0
    %508 = vmatpush1.msra.mxu0 0.0
    %509 = vmatprep.subr.mxu0 0.0
    %510 = vmatpush1.msra.mxu0 0.0
    %511 = vmatprep.subr.mxu0 0.0
    %512 = vmatpush1.msra.mxu0 0.0
    %513 = vmatprep.subr.mxu0 0.0
    %514 = vmatpush1.msra.mxu0 0.0
    %515 = vmatprep.subr.mxu0 0.0
    %516 = vmatpush1.msra.mxu0 0.0
    %517 = vmatprep.subr.mxu0 0.0
    %518 = vmatpush1.msra.mxu0 0.0
    %519 = vmatprep.subr.mxu0 0.0
    %520 = vmatpush1.msra.mxu0 0.0
    %521 = vmatprep.subr.mxu0 0.0
    %522 = vmatpush1.msra.mxu0 0.0
    %523 = vmatprep.subr.mxu0 0.0
    %524 = vmatpush1.msra.mxu0 0.0
    %525 = vmatprep.subr.mxu0 0.0
    %526 = vmatpush1.msra.mxu0 0.0
    %527 = vmatprep.subr.mxu0 0.0
    %528 = vmatpush1.msra.mxu0 0.0
    %529 = vmatprep.subr.mxu0 0.0
    %530 = vmatpush1.msra.mxu0 0.0
    %531 = vmatprep.mubr.f32.mxu0 0.0
    %532 = vmatmul.mubr.f32.gmra.mrb[0].mxu0 %v461
    %v533 = vpop.f32.mrb[0].mxu0
    %v534 = vadd.f32 0.0, %v533
    %v535 = vpop.f32.mrb[0].mxu0
    %v536 = vadd.f32 0.0, %v535
    %537 = vdwg.mxu0
    %v538 = vadd.f32 %v458, %v534
    %v539 = vadd.f32 %v459, %v536
    %540 = vrot.lane.b32.xlu0 %v78, 127
    %v541 = vpop.permute.xlu0 %540
    %542 = vrot.lane.b32.xlu0 %v80, 127
    %v543 = vpop.permute.xlu0 %542
    %vm544 = vcmp.lt.s32.totalorder %v22, 127
    %v545 = vsel %vm544, %v541, %v543
    %v546 = vsel %vm544, %v543, %v541
    %v547 = vsel %vm32, 1, 0
    %v548 = vsel %vm33, 1, 0
    %vm549 = vcmp.eq.s32.totalorder %v547, 1
    %vm550 = vcmp.eq.s32.totalorder %v548, 1
    %v551 = vsel %vm549, %v545, 0.0
    %v552 = vsel %vm550, %v546, 0.0
    %v554 = vsel %vm108, %v52, 0
    %v557 = vsel %vm112, %v551, 0
    %v560 = vsel %vm112, %v552, 0
    %562 = vmatprep.subr.mxu0 %v560
    %563 = vmatpush1.msra.mxu0 %v557
    %564 = vmatprep.subr.mxu0 0.0
    %565 = vmatpush1.msra.mxu0 0.0
    %566 = vmatprep.subr.mxu0 0.0
    %567 = vmatpush1.msra.mxu0 0.0
    %568 = vmatprep.subr.mxu0 0.0
    %569 = vmatpush1.msra.mxu0 0.0
    %570 = vmatprep.subr.mxu0 0.0
    %571 = vmatpush1.msra.mxu0 0.0
    %572 = vmatprep.subr.mxu0 0.0
    %573 = vmatpush1.msra.mxu0 0.0
    %574 = vmatprep.subr.mxu0 0.0
    %575 = vmatpush1.msra.mxu0 0.0
    %576 = vmatprep.subr.mxu0 0.0
    %577 = vmatpush1.msra.mxu0 0.0
    %578 = vmatprep.subr.mxu0 0.0
    %579 = vmatpush1.msra.mxu0 0.0
    %580 = vmatprep.subr.mxu0 0.0
    %581 = vmatpush1.msra.mxu0 0.0
    %582 = vmatprep.subr.mxu0 0.0
    %583 = vmatpush1.msra.mxu0 0.0
    %584 = vmatprep.subr.mxu0 0.0
    %585 = vmatpush1.msra.mxu0 0.0
    %586 = vmatprep.subr.mxu0 0.0
    %587 = vmatpush1.msra.mxu0 0.0
    %588 = vmatprep.subr.mxu0 0.0
    %589 = vmatpush1.msra.mxu0 0.0
    %590 = vmatprep.subr.mxu0 0.0
    %591 = vmatpush1.msra.mxu0 0.0
    %592 = vmatprep.subr.mxu0 0.0
    %593 = vmatpush1.msra.mxu0 0.0
    %594 = vmatprep.subr.mxu0 0.0
    %595 = vmatpush1.msra.mxu0 0.0
    %596 = vmatprep.subr.mxu0 0.0
    %597 = vmatpush1.msra.mxu0 0.0
    %598 = vmatprep.subr.mxu0 0.0
    %599 = vmatpush1.msra.mxu0 0.0
    %600 = vmatprep.subr.mxu0 0.0
    %601 = vmatpush1.msra.mxu0 0.0
    %602 = vmatprep.subr.mxu0 0.0
    %603 = vmatpush1.msra.mxu0 0.0
    %604 = vmatprep.subr.mxu0 0.0
    %605 = vmatpush1.msra.mxu0 0.0
    %606 = vmatprep.subr.mxu0 0.0
    %607 = vmatpush1.msra.mxu0 0.0
    %608 = vmatprep.subr.mxu0 0.0
    %609 = vmatpush1.msra.mxu0 0.0
    %610 = vmatprep.subr.mxu0 0.0
    %611 = vmatpush1.msra.mxu0 0.0
    %612 = vmatprep.subr.mxu0 0.0
    %613 = vmatpush1.msra.mxu0 0.0
    %614 = vmatprep.subr.mxu0 0.0
    %615 = vmatpush1.msra.mxu0 0.0
    %616 = vmatprep.subr.mxu0 0.0
    %617 = vmatpush1.msra.mxu0 0.0
    %618 = vmatprep.subr.mxu0 0.0
    %619 = vmatpush1.msra.mxu0 0.0
    %620 = vmatprep.subr.mxu0 0.0
    %621 = vmatpush1.msra.mxu0 0.0
    %622 = vmatprep.subr.mxu0 0.0
    %623 = vmatpush1.msra.mxu0 0.0
    %624 = vmatprep.subr.mxu0 0.0
    %625 = vmatpush1.msra.mxu0 0.0
    %626 = vmatprep.mubr.f32.mxu0 0.0
    %627 = vmatmul.mubr.f32.gmra.mrb[0].mxu0 %v554
    %v628 = vpop.f32.mrb[0].mxu0
    %v629 = vadd.f32 0.0, %v628
    %v630 = vpop.f32.mrb[0].mxu0
    %v631 = vadd.f32 0.0, %v630
    %632 = vdwg.mxu0
    %v633 = vadd.f32 %v538, %v629
    %v634 = vadd.f32 %v539, %v631
    %635 = vrot.lane.b32.xlu0 %v78, 113
    %v636 = vpop.permute.xlu0 %635
    %637 = vrot.lane.b32.xlu0 %v80, 113
    %v638 = vpop.permute.xlu0 %637
    %vm639 = vcmp.lt.s32.totalorder %v22, 113
    %v640 = vsel %vm639, %v636, %v638
    %v641 = vsel %vm639, %v638, %v636
    %v642 = vsel %vm38, 1, 0
    %v643 = vsel %vm39, 1, 0
    %vm644 = vcmp.eq.s32.totalorder %v642, 1
    %vm645 = vcmp.eq.s32.totalorder %v643, 1
    %v646 = vsel %vm644, %v640, 0.0
    %v647 = vsel %vm645, %v641, 0.0
    %v649 = vsel %vm108, %v54, 0
    %v652 = vsel %vm112, %v646, 0
    %v655 = vsel %vm112, %v647, 0
    %657 = vmatprep.subr.mxu0 %v655
    %658 = vmatpush1.msra.mxu0 %v652
    %659 = vmatprep.subr.mxu0 0.0
    %660 = vmatpush1.msra.mxu0 0.0
    %661 = vmatprep.subr.mxu0 0.0
    %662 = vmatpush1.msra.mxu0 0.0
    %663 = vmatprep.subr.mxu0 0.0
    %664 = vmatpush1.msra.mxu0 0.0
    %665 = vmatprep.subr.mxu0 0.0
    %666 = vmatpush1.msra.mxu0 0.0
    %667 = vmatprep.subr.mxu0 0.0
    %668 = vmatpush1.msra.mxu0 0.0
    %669 = vmatprep.subr.mxu0 0.0
    %670 = vmatpush1.msra.mxu0 0.0
    %671 = vmatprep.subr.mxu0 0.0
    %672 = vmatpush1.msra.mxu0 0.0
    %673 = vmatprep.subr.mxu0 0.0
    %674 = vmatpush1.msra.mxu0 0.0
    %675 = vmatprep.subr.mxu0 0.0
    %676 = vmatpush1.msra.mxu0 0.0
    %677 = vmatprep.subr.mxu0 0.0
    %678 = vmatpush1.msra.mxu0 0.0
    %679 = vmatprep.subr.mxu0 0.0
    %680 = vmatpush1.msra.mxu0 0.0
    %681 = vmatprep.subr.mxu0 0.0
    %682 = vmatpush1.msra.mxu0 0.0
    %683 = vmatprep.subr.mxu0 0.0
    %684 = vmatpush1.msra.mxu0 0.0
    %685 = vmatprep.subr.mxu0 0.0
    %686 = vmatpush1.msra.mxu0 0.0
    %687 = vmatprep.subr.mxu0 0.0
    %688 = vmatpush1.msra.mxu0 0.0
    %689 = vmatprep.subr.mxu0 0.0
    %690 = vmatpush1.msra.mxu0 0.0
    %691 = vmatprep.subr.mxu0 0.0
    %692 = vmatpush1.msra.mxu0 0.0
    %693 = vmatprep.subr.mxu0 0.0
    %694 = vmatpush1.msra.mxu0 0.0
    %695 = vmatprep.subr.mxu0 0.0
    %696 = vmatpush1.msra.mxu0 0.0
    %697 = vmatprep.subr.mxu0 0.0
    %698 = vmatpush1.msra.mxu0 0.0
    %699 = vmatprep.subr.mxu0 0.0
    %700 = vmatpush1.msra.mxu0 0.0
    %701 = vmatprep.subr.mxu0 0.0
    %702 = vmatpush1.msra.mxu0 0.0
    %703 = vmatprep.subr.mxu0 0.0
    %704 = vmatpush1.msra.mxu0 0.0
    %705 = vmatprep.subr.mxu0 0.0
    %706 = vmatpush1.msra.mxu0 0.0
    %707 = vmatprep.subr.mxu0 0.0
    %708 = vmatpush1.msra.mxu0 0.0
    %709 = vmatprep.subr.mxu0 0.0
    %710 = vmatpush1.msra.mxu0 0.0
    %711 = vmatprep.subr.mxu0 0.0
    %712 = vmatpush1.msra.mxu0 0.0
    %713 = vmatprep.subr.mxu0 0.0
    %714 = vmatpush1.msra.mxu0 0.0
    %715 = vmatprep.subr.mxu0 0.0
    %716 = vmatpush1.msra.mxu0 0.0
    %717 = vmatprep.subr.mxu0 0.0
    %718 = vmatpush1.msra.mxu0 0.0
    %719 = vmatprep.subr.mxu0 0.0
    %720 = vmatpush1.msra.mxu0 0.0
    %721 = vmatprep.mubr.f32.mxu0 0.0
    %722 = vmatmul.mubr.f32.gmra.mrb[0].mxu0 %v649
    %v723 = vpop.f32.mrb[0].mxu0
    %v724 = vadd.f32 0.0, %v723
    %v725 = vpop.f32.mrb[0].mxu0
    %v726 = vadd.f32 0.0, %v725
    %727 = vdwg.mxu0
    %v728 = vadd.f32 %v633, %v724
    %v729 = vadd.f32 %v634, %v726
    %730 = vrot.lane.b32.xlu0 %v78, 112
    %v731 = vpop.permute.xlu0 %730
    %732 = vrot.lane.b32.xlu0 %v80, 112
    %v733 = vpop.permute.xlu0 %732
    %vm734 = vcmp.lt.s32.totalorder %v22, 112
    %v735 = vsel %vm734, %v731, %v733
    %v736 = vsel %vm734, %v733, %v731
    %v737 = vsel %vm36, 1, 0
    %v738 = vsel %vm37, 1, 0
    %vm739 = vcmp.eq.s32.totalorder %v737, 1
    %vm740 = vcmp.eq.s32.totalorder %v738, 1
    %v741 = vsel %vm739, %v735, 0.0
    %v742 = vsel %vm740, %v736, 0.0
    %v744 = vsel %vm108, %v56, 0
    %v747 = vsel %vm112, %v741, 0
    %v750 = vsel %vm112, %v742, 0
    %752 = vmatprep.subr.mxu0 %v750
    %753 = vmatpush1.msra.mxu0 %v747
    %754 = vmatprep.subr.mxu0 0.0
    %755 = vmatpush1.msra.mxu0 0.0
    %756 = vmatprep.subr.mxu0 0.0
    %757 = vmatpush1.msra.mxu0 0.0
    %758 = vmatprep.subr.mxu0 0.0
    %759 = vmatpush1.msra.mxu0 0.0
    %760 = vmatprep.subr.mxu0 0.0
    %761 = vmatpush1.msra.mxu0 0.0
    %762 = vmatprep.subr.mxu0 0.0
    %763 = vmatpush1.msra.mxu0 0.0
    %764 = vmatprep.subr.mxu0 0.0
    %765 = vmatpush1.msra.mxu0 0.0
    %766 = vmatprep.subr.mxu0 0.0
    %767 = vmatpush1.msra.mxu0 0.0
    %768 = vmatprep.subr.mxu0 0.0
    %769 = vmatpush1.msra.mxu0 0.0
    %770 = vmatprep.subr.mxu0 0.0
    %771 = vmatpush1.msra.mxu0 0.0
    %772 = vmatprep.subr.mxu0 0.0
    %773 = vmatpush1.msra.mxu0 0.0
    %774 = vmatprep.subr.mxu0 0.0
    %775 = vmatpush1.msra.mxu0 0.0
    %776 = vmatprep.subr.mxu0 0.0
    %777 = vmatpush1.msra.mxu0 0.0
    %778 = vmatprep.subr.mxu0 0.0
    %779 = vmatpush1.msra.mxu0 0.0
    %780 = vmatprep.subr.mxu0 0.0
    %781 = vmatpush1.msra.mxu0 0.0
    %782 = vmatprep.subr.mxu0 0.0
    %783 = vmatpush1.msra.mxu0 0.0
    %784 = vmatprep.subr.mxu0 0.0
    %785 = vmatpush1.msra.mxu0 0.0
    %786 = vmatprep.subr.mxu0 0.0
    %787 = vmatpush1.msra.mxu0 0.0
    %788 = vmatprep.subr.mxu0 0.0
    %789 = vmatpush1.msra.mxu0 0.0
    %790 = vmatprep.subr.mxu0 0.0
    %791 = vmatpush1.msra.mxu0 0.0
    %792 = vmatprep.subr.mxu0 0.0
    %793 = vmatpush1.msra.mxu0 0.0
    %794 = vmatprep.subr.mxu0 0.0
    %795 = vmatpush1.msra.mxu0 0.0
    %796 = vmatprep.subr.mxu0 0.0
    %797 = vmatpush1.msra.mxu0 0.0
    %798 = vmatprep.subr.mxu0 0.0
    %799 = vmatpush1.msra.mxu0 0.0
    %800 = vmatprep.subr.mxu0 0.0
    %801 = vmatpush1.msra.mxu0 0.0
    %802 = vmatprep.subr.mxu0 0.0
    %803 = vmatpush1.msra.mxu0 0.0
    %804 = vmatprep.subr.mxu0 0.0
    %805 = vmatpush1.msra.mxu0 0.0
    %806 = vmatprep.subr.mxu0 0.0
    %807 = vmatpush1.msra.mxu0 0.0
    %808 = vmatprep.subr.mxu0 0.0
    %809 = vmatpush1.msra.mxu0 0.0
    %810 = vmatprep.subr.mxu0 0.0
    %811 = vmatpush1.msra.mxu0 0.0
    %812 = vmatprep.subr.mxu0 0.0
    %813 = vmatpush1.msra.mxu0 0.0
    %814 = vmatprep.subr.mxu0 0.0
    %815 = vmatpush1.msra.mxu0 0.0
    %816 = vmatprep.mubr.f32.mxu0 0.0
    %817 = vmatmul.mubr.f32.gmra.mrb[0].mxu0 %v744
    %v818 = vpop.f32.mrb[0].mxu0
    %v819 = vadd.f32 0.0, %v818
    %v820 = vpop.f32.mrb[0].mxu0
    %v821 = vadd.f32 0.0, %v820
    %822 = vdwg.mxu0
    %v823 = vadd.f32 %v728, %v819
    %v824 = vadd.f32 %v729, %v821
    %825 = vrot.lane.b32.xlu0 %v78, 111
    %v826 = vpop.permute.xlu0 %825
    %827 = vrot.lane.b32.xlu0 %v80, 111
    %v828 = vpop.permute.xlu0 %827
    %vm829 = vcmp.lt.s32.totalorder %v22, 111
    %v830 = vsel %vm829, %v826, %v828
    %v831 = vsel %vm829, %v828, %v826
    %v832 = vsel %vm40, 1, 0
    %v833 = vsel %vm41, 1, 0
    %vm834 = vcmp.eq.s32.totalorder %v832, 1
    %vm835 = vcmp.eq.s32.totalorder %v833, 1
    %v836 = vsel %vm834, %v830, 0.0
    %v837 = vsel %vm835, %v831, 0.0
    %v839 = vsel %vm108, %v58, 0
    %v842 = vsel %vm112, %v836, 0
    %v845 = vsel %vm112, %v837, 0
    %847 = vmatprep.subr.mxu0 %v845
    %848 = vmatpush1.msra.mxu0 %v842
    %849 = vmatprep.subr.mxu0 0.0
    %850 = vmatpush1.msra.mxu0 0.0
    %851 = vmatprep.subr.mxu0 0.0
    %852 = vmatpush1.msra.mxu0 0.0
    %853 = vmatprep.subr.mxu0 0.0
    %854 = vmatpush1.msra.mxu0 0.0
    %855 = vmatprep.subr.mxu0 0.0
    %856 = vmatpush1.msra.mxu0 0.0
    %857 = vmatprep.subr.mxu0 0.0
    %858 = vmatpush1.msra.mxu0 0.0
    %859 = vmatprep.subr.mxu0 0.0
    %860 = vmatpush1.msra.mxu0 0.0
    %861 = vmatprep.subr.mxu0 0.0
    %862 = vmatpush1.msra.mxu0 0.0
    %863 = vmatprep.subr.mxu0 0.0
    %864 = vmatpush1.msra.mxu0 0.0
    %865 = vmatprep.subr.mxu0 0.0
    %866 = vmatpush1.msra.mxu0 0.0
    %867 = vmatprep.subr.mxu0 0.0
    %868 = vmatpush1.msra.mxu0 0.0
    %869 = vmatprep.subr.mxu0 0.0
    %870 = vmatpush1.msra.mxu0 0.0
    %871 = vmatprep.subr.mxu0 0.0
    %872 = vmatpush1.msra.mxu0 0.0
    %873 = vmatprep.subr.mxu0 0.0
    %874 = vmatpush1.msra.mxu0 0.0
    %875 = vmatprep.subr.mxu0 0.0
    %876 = vmatpush1.msra.mxu0 0.0
    %877 = vmatprep.subr.mxu0 0.0
    %878 = vmatpush1.msra.mxu0 0.0
    %879 = vmatprep.subr.mxu0 0.0
    %880 = vmatpush1.msra.mxu0 0.0
    %881 = vmatprep.subr.mxu0 0.0
    %882 = vmatpush1.msra.mxu0 0.0
    %883 = vmatprep.subr.mxu0 0.0
    %884 = vmatpush1.msra.mxu0 0.0
    %885 = vmatprep.subr.mxu0 0.0
    %886 = vmatpush1.msra.mxu0 0.0
    %887 = vmatprep.subr.mxu0 0.0
    %888 = vmatpush1.msra.mxu0 0.0
    %889 = vmatprep.subr.mxu0 0.0
    %890 = vmatpush1.msra.mxu0 0.0
    %891 = vmatprep.subr.mxu0 0.0
    %892 = vmatpush1.msra.mxu0 0.0
    %893 = vmatprep.subr.mxu0 0.0
    %894 = vmatpush1.msra.mxu0 0.0
    %895 = vmatprep.subr.mxu0 0.0
    %896 = vmatpush1.msra.mxu0 0.0
    %897 = vmatprep.subr.mxu0 0.0
    %898 = vmatpush1.msra.mxu0 0.0
    %899 = vmatprep.subr.mxu0 0.0
    %900 = vmatpush1.msra.mxu0 0.0
    %901 = vmatprep.subr.mxu0 0.0
    %902 = vmatpush1.msra.mxu0 0.0
    %903 = vmatprep.subr.mxu0 0.0
    %904 = vmatpush1.msra.mxu0 0.0
    %905 = vmatprep.subr.mxu0 0.0
    %906 = vmatpush1.msra.mxu0 0.0
    %907 = vmatprep.subr.mxu0 0.0
    %908 = vmatpush1.msra.mxu0 0.0
    %909 = vmatprep.subr.mxu0 0.0
    %910 = vmatpush1.msra.mxu0 0.0
    %911 = vmatprep.mubr.f32.mxu0 0.0
    %912 = vmatmul.mubr.f32.gmra.mrb[0].mxu0 %v839
    %v913 = vpop.f32.mrb[0].mxu0
    %v914 = vadd.f32 0.0, %v913
    %v915 = vpop.f32.mrb[0].mxu0
    %v916 = vadd.f32 0.0, %v915
    %917 = vdwg.mxu0
    %v918 = vadd.f32 %v823, %v914
    %v919 = vadd.f32 %v824, %v916
    %921 = vset.pattern.permute.xlu0 0
    %922 = vperm.xlu0 %921, %v76
    %v923 = vpop.permute.xlu0 %922
    %v925 = vadd.f32 %v918, %v923
    %v926 = vadd.f32 %v919, %v923
    %v927 = vmax.f32 %v925, 0.0
    %v928 = vmax.f32 %v926, 0.0
    %929 = vrot.lane.b32.xlu0 %v927, 17
    %v930 = vpop.permute.xlu0 %929
    %931 = vrot.lane.b32.xlu0 %v928, 17
    %v932 = vpop.permute.xlu0 %931
    %v933 = vsel %vm86, %v930, %v932
    %v934 = vsel %vm86, %v932, %v930
    %v935 = vsel %vm91, %v934, 0.0
    %v936 = vsel %vm92, %v933, 0.0
    %937 = vrot.lane.b32.xlu0 %v927, 16
    %v938 = vpop.permute.xlu0 %937
    %939 = vrot.lane.b32.xlu0 %v928, 16
    %v940 = vpop.permute.xlu0 %939
    %v941 = vsel %vm99, %v938, %v940
    %v942 = vsel %vm99, %v940, %v938
    %v943 = vsel %vm104, %v942, 0.0
    %v944 = vsel %vm105, %v941, 0.0
    %vm945 = vcmask 64512
    %v947 = vsel %vm945, %v61, 0
    %949 = vmatprep.subr.mxu0 %v944
    %950 = vmatpush1.msra.mxu0 %v943
    %951 = vmatprep.subr.mxu0 0.0
    %952 = vmatpush1.msra.mxu0 0.0
    %953 = vmatprep.subr.mxu0 0.0
    %954 = vmatpush1.msra.mxu0 0.0
    %955 = vmatprep.subr.mxu0 0.0
    %956 = vmatpush1.msra.mxu0 0.0
    %957 = vmatprep.subr.mxu0 0.0
    %958 = vmatpush1.msra.mxu0 0.0
    %959 = vmatprep.subr.mxu0 0.0
    %960 = vmatpush1.msra.mxu0 0.0
    %961 = vmatprep.subr.mxu0 0.0
    %962 = vmatpush1.msra.mxu0 0.0
    %963 = vmatprep.subr.mxu0 0.0
    %964 = vmatpush1.msra.mxu0 0.0
    %965 = vmatprep.subr.mxu0 0.0
    %966 = vmatpush1.msra.mxu0 0.0
    %967 = vmatprep.subr.mxu0 0.0
    %968 = vmatpush1.msra.mxu0 0.0
    %969 = vmatprep.subr.mxu0 0.0
    %970 = vmatpush1.msra.mxu0 0.0
    %971 = vmatprep.subr.mxu0 0.0
    %972 = vmatpush1.msra.mxu0 0.0
    %973 = vmatprep.subr.mxu0 0.0
    %974 = vmatpush1.msra.mxu0 0.0
    %975 = vmatprep.subr.mxu0 0.0
    %976 = vmatpush1.msra.mxu0 0.0
    %977 = vmatprep.subr.mxu0 0.0
    %978 = vmatpush1.msra.mxu0 0.0
    %979 = vmatprep.subr.mxu0 0.0
    %980 = vmatpush1.msra.mxu0 0.0
    %981 = vmatprep.subr.mxu0 0.0
    %982 = vmatpush1.msra.mxu0 0.0
    %983 = vmatprep.subr.mxu0 0.0
    %984 = vmatpush1.msra.mxu0 0.0
    %985 = vmatprep.subr.mxu0 0.0
    %986 = vmatpush1.msra.mxu0 0.0
    %987 = vmatprep.subr.mxu0 0.0
    %988 = vmatpush1.msra.mxu0 0.0
    %989 = vmatprep.subr.mxu0 0.0
    %990 = vmatpush1.msra.mxu0 0.0
    %991 = vmatprep.subr.mxu0 0.0
    %992 = vmatpush1.msra.mxu0 0.0
    %993 = vmatprep.subr.mxu0 0.0
    %994 = vmatpush1.msra.mxu0 0.0
    %995 = vmatprep.subr.mxu0 0.0
    %996 = vmatpush1.msra.mxu0 0.0
    %997 = vmatprep.subr.mxu0 0.0
    %998 = vmatpush1.msra.mxu0 0.0
    %999 = vmatprep.subr.mxu0 0.0
    %1000 = vmatpush1.msra.mxu0 0.0
    %1001 = vmatprep.subr.mxu0 0.0
    %1002 = vmatpush1.msra.mxu0 0.0
    %1003 = vmatprep.subr.mxu0 0.0
    %1004 = vmatpush1.msra.mxu0 0.0
    %1005 = vmatprep.subr.mxu0 0.0
    %1006 = vmatpush1.msra.mxu0 0.0
    %1007 = vmatprep.subr.mxu0 0.0
    %1008 = vmatpush1.msra.mxu0 0.0
    %1009 = vmatprep.subr.mxu0 0.0
    %1010 = vmatpush1.msra.mxu0 0.0
    %1011 = vmatprep.subr.mxu0 0.0
    %1012 = vmatpush1.msra.mxu0 0.0
    %1013 = vmatprep.mubr.f32.mxu0 0.0
    %1014 = vmatmul.mubr.f32.gmra.mrb[0].mxu0 %v947
    %v1015 = vpop.f32.mrb[0].mxu0
    %v1016 = vadd.f32 0.0, %v1015
    %v1017 = vpop.f32.mrb[0].mxu0
    %v1018 = vadd.f32 0.0, %v1017
    %1019 = vdwg.mxu0
    %v1021 = vsel %vm945, %v59, 0
    %1023 = vmatprep.subr.mxu0 %v936
    %1024 = vmatpush1.msra.mxu0 %v935
    %1025 = vmatprep.subr.mxu0 0.0
    %1026 = vmatpush1.msra.mxu0 0.0
    %1027 = vmatprep.subr.mxu0 0.0
    %1028 = vmatpush1.msra.mxu0 0.0
    %1029 = vmatprep.subr.mxu0 0.0
    %1030 = vmatpush1.msra.mxu0 0.0
    %1031 = vmatprep.subr.mxu0 0.0
    %1032 = vmatpush1.msra.mxu0 0.0
    %1033 = vmatprep.subr.mxu0 0.0
    %1034 = vmatpush1.msra.mxu0 0.0
    %1035 = vmatprep.subr.mxu0 0.0
    %1036 = vmatpush1.msra.mxu0 0.0
    %1037 = vmatprep.subr.mxu0 0.0
    %1038 = vmatpush1.msra.mxu0 0.0
    %1039 = vmatprep.subr.mxu0 0.0
    %1040 = vmatpush1.msra.mxu0 0.0
    %1041 = vmatprep.subr.mxu0 0.0
    %1042 = vmatpush1.msra.mxu0 0.0
    %1043 = vmatprep.subr.mxu0 0.0
    %1044 = vmatpush1.msra.mxu0 0.0
    %1045 = vmatprep.subr.mxu0 0.0
    %1046 = vmatpush1.msra.mxu0 0.0
    %1047 = vmatprep.subr.mxu0 0.0
    %1048 = vmatpush1.msra.mxu0 0.0
    %1049 = vmatprep.subr.mxu0 0.0
    %1050 = vmatpush1.msra.mxu0 0.0
    %1051 = vmatprep.subr.mxu0 0.0
    %1052 = vmatpush1.msra.mxu0 0.0
    %1053 = vmatprep.subr.mxu0 0.0
    %1054 = vmatpush1.msra.mxu0 0.0
    %1055 = vmatprep.subr.mxu0 0.0
    %1056 = vmatpush1.msra.mxu0 0.0
    %1057 = vmatprep.subr.mxu0 0.0
    %1058 = vmatpush1.msra.mxu0 0.0
    %1059 = vmatprep.subr.mxu0 0.0
    %1060 = vmatpush1.msra.mxu0 0.0
    %1061 = vmatprep.subr.mxu0 0.0
    %1062 = vmatpush1.msra.mxu0 0.0
    %1063 = vmatprep.subr.mxu0 0.0
    %1064 = vmatpush1.msra.mxu0 0.0
    %1065 = vmatprep.subr.mxu0 0.0
    %1066 = vmatpush1.msra.mxu0 0.0
    %1067 = vmatprep.subr.mxu0 0.0
    %1068 = vmatpush1.msra.mxu0 0.0
    %1069 = vmatprep.subr.mxu0 0.0
    %1070 = vmatpush1.msra.mxu0 0.0
    %1071 = vmatprep.subr.mxu0 0.0
    %1072 = vmatpush1.msra.mxu0 0.0
    %1073 = vmatprep.subr.mxu0 0.0
    %1074 = vmatpush1.msra.mxu0 0.0
    %1075 = vmatprep.subr.mxu0 0.0
    %1076 = vmatpush1.msra.mxu0 0.0
    %1077 = vmatprep.subr.mxu0 0.0
    %1078 = vmatpush1.msra.mxu0 0.0
    %1079 = vmatprep.subr.mxu0 0.0
    %1080 = vmatpush1.msra.mxu0 0.0
    %1081 = vmatprep.subr.mxu0 0.0
    %1082 = vmatpush1.msra.mxu0 0.0
    %1083 = vmatprep.subr.mxu0 0.0
    %1084 = vmatpush1.msra.mxu0 0.0
    %1085 = vmatprep.subr.mxu0 0.0
    %1086 = vmatpush1.msra.mxu0 0.0
    %1087 = vmatprep.mubr.f32.mxu0 0.0
    %1088 = vmatmul.mubr.f32.gmra.mrb[0].mxu0 %v1021
    %v1089 = vpop.f32.mrb[0].mxu0
    %v1090 = vadd.f32 %v1016, %v1089
    %v1091 = vpop.f32.mrb[0].mxu0
    %v1092 = vadd.f32 %v1018, %v1091
    %1093 = vdwg.mxu0
    %1094 = vrot.lane.b32.xlu0 %v927, 15
    %v1095 = vpop.permute.xlu0 %1094
    %1096 = vrot.lane.b32.xlu0 %v928, 15
    %v1097 = vpop.permute.xlu0 %1096
    %v1098 = vsel %vm274, %v1095, %v1097
    %v1099 = vsel %vm274, %v1097, %v1095
    %v1100 = vsel %vm279, %v1099, 0.0
    %v1101 = vsel %vm280, %v1098, 0.0
    %v1103 = vsel %vm945, %v63, 0
    %1105 = vmatprep.subr.mxu0 %v1101
    %1106 = vmatpush1.msra.mxu0 %v1100
    %1107 = vmatprep.subr.mxu0 0.0
    %1108 = vmatpush1.msra.mxu0 0.0
    %1109 = vmatprep.subr.mxu0 0.0
    %1110 = vmatpush1.msra.mxu0 0.0
    %1111 = vmatprep.subr.mxu0 0.0
    %1112 = vmatpush1.msra.mxu0 0.0
    %1113 = vmatprep.subr.mxu0 0.0
    %1114 = vmatpush1.msra.mxu0 0.0
    %1115 = vmatprep.subr.mxu0 0.0
    %1116 = vmatpush1.msra.mxu0 0.0
    %1117 = vmatprep.subr.mxu0 0.0
    %1118 = vmatpush1.msra.mxu0 0.0
    %1119 = vmatprep.subr.mxu0 0.0
    %1120 = vmatpush1.msra.mxu0 0.0
    %1121 = vmatprep.subr.mxu0 0.0
    %1122 = vmatpush1.msra.mxu0 0.0
    %1123 = vmatprep.subr.mxu0 0.0
    %1124 = vmatpush1.msra.mxu0 0.0
    %1125 = vmatprep.subr.mxu0 0.0
    %1126 = vmatpush1.msra.mxu0 0.0
    %1127 = vmatprep.subr.mxu0 0.0
    %1128 = vmatpush1.msra.mxu0 0.0
    %1129 = vmatprep.subr.mxu0 0.0
    %1130 = vmatpush1.msra.mxu0 0.0
    %1131 = vmatprep.subr.mxu0 0.0
    %1132 = vmatpush1.msra.mxu0 0.0
    %1133 = vmatprep.subr.mxu0 0.0
    %1134 = vmatpush1.msra.mxu0 0.0
    %1135 = vmatprep.subr.mxu0 0.0
    %1136 = vmatpush1.msra.mxu0 0.0
    %1137 = vmatprep.subr.mxu0 0.0
    %1138 = vmatpush1.msra.mxu0 0.0
    %1139 = vmatprep.subr.mxu0 0.0
    %1140 = vmatpush1.msra.mxu0 0.0
    %1141 = vmatprep.subr.mxu0 0.0
    %1142 = vmatpush1.msra.mxu0 0.0
    %1143 = vmatprep.subr.mxu0 0.0
    %1144 = vmatpush1.msra.mxu0 0.0
    %1145 = vmatprep.subr.mxu0 0.0
    %1146 = vmatpush1.msra.mxu0 0.0
    %1147 = vmatprep.subr.mxu0 0.0
    %1148 = vmatpush1.msra.mxu0 0.0
    %1149 = vmatprep.subr.mxu0 0.0
    %1150 = vmatpush1.msra.mxu0 0.0
    %1151 = vmatprep.subr.mxu0 0.0
    %1152 = vmatpush1.msra.mxu0 0.0
    %1153 = vmatprep.subr.mxu0 0.0
    %1154 = vmatpush1.msra.mxu0 0.0
    %1155 = vmatprep.subr.mxu0 0.0
    %1156 = vmatpush1.msra.mxu0 0.0
    %1157 = vmatprep.subr.mxu0 0.0
    %1158 = vmatpush1.msra.mxu0 0.0
    %1159 = vmatprep.subr.mxu0 0.0
    %1160 = vmatpush1.msra.mxu0 0.0
    %1161 = vmatprep.subr.mxu0 0.0
    %1162 = vmatpush1.msra.mxu0 0.0
    %1163 = vmatprep.subr.mxu0 0.0
    %1164 = vmatpush1.msra.mxu0 0.0
    %1165 = vmatprep.subr.mxu0 0.0
    %1166 = vmatpush1.msra.mxu0 0.0
    %1167 = vmatprep.subr.mxu0 0.0
    %1168 = vmatpush1.msra.mxu0 0.0
    %1169 = vmatprep.mubr.f32.mxu0 0.0
    %1170 = vmatmul.mubr.f32.gmra.mrb[0].mxu0 %v1103
    %v1171 = vpop.f32.mrb[0].mxu0
    %v1172 = vadd.f32 0.0, %v1171
    %v1173 = vpop.f32.mrb[0].mxu0
    %v1174 = vadd.f32 0.0, %v1173
    %1175 = vdwg.mxu0
    %v1176 = vadd.f32 %v1090, %v1172
    %v1177 = vadd.f32 %v1092, %v1174
    %1178 = vrot.lane.b32.xlu0 %v927, 1
    %v1179 = vpop.permute.xlu0 %1178
    %1180 = vrot.lane.b32.xlu0 %v928, 1
    %v1181 = vpop.permute.xlu0 %1180
    %v1182 = vsel %vm369, %v1179, %v1181
    %v1183 = vsel %vm369, %v1181, %v1179
    %v1184 = vsel %vm374, %v1183, 0.0
    %v1185 = vsel %vm375, %v1182, 0.0
    %v1187 = vsel %vm945, %v65, 0
    %1189 = vmatprep.subr.mxu0 %v1185
    %1190 = vmatpush1.msra.mxu0 %v1184
    %1191 = vmatprep.subr.mxu0 0.0
    %1192 = vmatpush1.msra.mxu0 0.0
    %1193 = vmatprep.subr.mxu0 0.0
    %1194 = vmatpush1.msra.mxu0 0.0
    %1195 = vmatprep.subr.mxu0 0.0
    %1196 = vmatpush1.msra.mxu0 0.0
    %1197 = vmatprep.subr.mxu0 0.0
    %1198 = vmatpush1.msra.mxu0 0.0
    %1199 = vmatprep.subr.mxu0 0.0
    %1200 = vmatpush1.msra.mxu0 0.0
    %1201 = vmatprep.subr.mxu0 0.0
    %1202 = vmatpush1.msra.mxu0 0.0
    %1203 = vmatprep.subr.mxu0 0.0
    %1204 = vmatpush1.msra.mxu0 0.0
    %1205 = vmatprep.subr.mxu0 0.0
    %1206 = vmatpush1.msra.mxu0 0.0
    %1207 = vmatprep.subr.mxu0 0.0
    %1208 = vmatpush1.msra.mxu0 0.0
    %1209 = vmatprep.subr.mxu0 0.0
    %1210 = vmatpush1.msra.mxu0 0.0
    %1211 = vmatprep.subr.mxu0 0.0
    %1212 = vmatpush1.msra.mxu0 0.0
    %1213 = vmatprep.subr.mxu0 0.0
    %1214 = vmatpush1.msra.mxu0 0.0
    %1215 = vmatprep.subr.mxu0 0.0
    %1216 = vmatpush1.msra.mxu0 0.0
    %1217 = vmatprep.subr.mxu0 0.0
    %1218 = vmatpush1.msra.mxu0 0.0
    %1219 = vmatprep.subr.mxu0 0.0
    %1220 = vmatpush1.msra.mxu0 0.0
    %1221 = vmatprep.subr.mxu0 0.0
    %1222 = vmatpush1.msra.mxu0 0.0
    %1223 = vmatprep.subr.mxu0 0.0
    %1224 = vmatpush1.msra.mxu0 0.0
    %1225 = vmatprep.subr.mxu0 0.0
    %1226 = vmatpush1.msra.mxu0 0.0
    %1227 = vmatprep.subr.mxu0 0.0
    %1228 = vmatpush1.msra.mxu0 0.0
    %1229 = vmatprep.subr.mxu0 0.0
    %1230 = vmatpush1.msra.mxu0 0.0
    %1231 = vmatprep.subr.mxu0 0.0
    %1232 = vmatpush1.msra.mxu0 0.0
    %1233 = vmatprep.subr.mxu0 0.0
    %1234 = vmatpush1.msra.mxu0 0.0
    %1235 = vmatprep.subr.mxu0 0.0
    %1236 = vmatpush1.msra.mxu0 0.0
    %1237 = vmatprep.subr.mxu0 0.0
    %1238 = vmatpush1.msra.mxu0 0.0
    %1239 = vmatprep.subr.mxu0 0.0
    %1240 = vmatpush1.msra.mxu0 0.0
    %1241 = vmatprep.subr.mxu0 0.0
    %1242 = vmatpush1.msra.mxu0 0.0
    %1243 = vmatprep.subr.mxu0 0.0
    %1244 = vmatpush1.msra.mxu0 0.0
    %1245 = vmatprep.subr.mxu0 0.0
    %1246 = vmatpush1.msra.mxu0 0.0
    %1247 = vmatprep.subr.mxu0 0.0
    %1248 = vmatpush1.msra.mxu0 0.0
    %1249 = vmatprep.subr.mxu0 0.0
    %1250 = vmatpush1.msra.mxu0 0.0
    %1251 = vmatprep.subr.mxu0 0.0
    %1252 = vmatpush1.msra.mxu0 0.0
    %1253 = vmatprep.mubr.f32.mxu0 0.0
    %1254 = vmatmul.mubr.f32.gmra.mrb[0].mxu0 %v1187
    %v1255 = vpop.f32.mrb[0].mxu0
    %v1256 = vadd.f32 0.0, %v1255
    %v1257 = vpop.f32.mrb[0].mxu0
    %v1258 = vadd.f32 0.0, %v1257
    %1259 = vdwg.mxu0
    %v1260 = vadd.f32 %v1176, %v1256
    %v1261 = vadd.f32 %v1177, %v1258
    %v1263 = vsel %vm945, %v67, 0
    %1265 = vmatprep.subr.mxu0 %v928
    %1266 = vmatpush1.msra.mxu0 %v927
    %1267 = vmatprep.subr.mxu0 0.0
    %1268 = vmatpush1.msra.mxu0 0.0
    %1269 = vmatprep.subr.mxu0 0.0
    %1270 = vmatpush1.msra.mxu0 0.0
    %1271 = vmatprep.subr.mxu0 0.0
    %1272 = vmatpush1.msra.mxu0 0.0
    %1273 = vmatprep.subr.mxu0 0.0
    %1274 = vmatpush1.msra.mxu0 0.0
    %1275 = vmatprep.subr.mxu0 0.0
    %1276 = vmatpush1.msra.mxu0 0.0
    %1277 = vmatprep.subr.mxu0 0.0
    %1278 = vmatpush1.msra.mxu0 0.0
    %1279 = vmatprep.subr.mxu0 0.0
    %1280 = vmatpush1.msra.mxu0 0.0
    %1281 = vmatprep.subr.mxu0 0.0
    %1282 = vmatpush1.msra.mxu0 0.0
    %1283 = vmatprep.subr.mxu0 0.0
    %1284 = vmatpush1.msra.mxu0 0.0
    %1285 = vmatprep.subr.mxu0 0.0
    %1286 = vmatpush1.msra.mxu0 0.0
    %1287 = vmatprep.subr.mxu0 0.0
    %1288 = vmatpush1.msra.mxu0 0.0
    %1289 = vmatprep.subr.mxu0 0.0
    %1290 = vmatpush1.msra.mxu0 0.0
    %1291 = vmatprep.subr.mxu0 0.0
    %1292 = vmatpush1.msra.mxu0 0.0
    %1293 = vmatprep.subr.mxu0 0.0
    %1294 = vmatpush1.msra.mxu0 0.0
    %1295 = vmatprep.subr.mxu0 0.0
    %1296 = vmatpush1.msra.mxu0 0.0
    %1297 = vmatprep.subr.mxu0 0.0
    %1298 = vmatpush1.msra.mxu0 0.0
    %1299 = vmatprep.subr.mxu0 0.0
    %1300 = vmatpush1.msra.mxu0 0.0
    %1301 = vmatprep.subr.mxu0 0.0
    %1302 = vmatpush1.msra.mxu0 0.0
    %1303 = vmatprep.subr.mxu0 0.0
    %1304 = vmatpush1.msra.mxu0 0.0
    %1305 = vmatprep.subr.mxu0 0.0
    %1306 = vmatpush1.msra.mxu0 0.0
    %1307 = vmatprep.subr.mxu0 0.0
    %1308 = vmatpush1.msra.mxu0 0.0
    %1309 = vmatprep.subr.mxu0 0.0
    %1310 = vmatpush1.msra.mxu0 0.0
    %1311 = vmatprep.subr.mxu0 0.0
    %1312 = vmatpush1.msra.mxu0 0.0
    %1313 = vmatprep.subr.mxu0 0.0
    %1314 = vmatpush1.msra.mxu0 0.0
    %1315 = vmatprep.subr.mxu0 0.0
    %1316 = vmatpush1.msra.mxu0 0.0
    %1317 = vmatprep.subr.mxu0 0.0
    %1318 = vmatpush1.msra.mxu0 0.0
    %1319 = vmatprep.subr.mxu0 0.0
    %1320 = vmatpush1.msra.mxu0 0.0
    %1321 = vmatprep.subr.mxu0 0.0
    %1322 = vmatpush1.msra.mxu0 0.0
    %1323 = vmatprep.subr.mxu0 0.0
    %1324 = vmatpush1.msra.mxu0 0.0
    %1325 = vmatprep.subr.mxu0 0.0
    %1326 = vmatpush1.msra.mxu0 0.0
    %1327 = vmatprep.subr.mxu0 0.0
    %1328 = vmatpush1.msra.mxu0 0.0
    %1329 = vmatprep.mubr.f32.mxu0 0.0
    %1330 = vmatmul.mubr.f32.gmra.mrb[0].mxu0 %v1263
    %v1331 = vpop.f32.mrb[0].mxu0
    %v1332 = vadd.f32 0.0, %v1331
    %v1333 = vpop.f32.mrb[0].mxu0
    %v1334 = vadd.f32 0.0, %v1333
    %1335 = vdwg.mxu0
    %v1336 = vadd.f32 %v1260, %v1332
    %v1337 = vadd.f32 %v1261, %v1334
    %1338 = vrot.lane.b32.xlu0 %v927, 127
    %v1339 = vpop.permute.xlu0 %1338
    %1340 = vrot.lane.b32.xlu0 %v928, 127
    %v1341 = vpop.permute.xlu0 %1340
    %v1342 = vsel %vm544, %v1339, %v1341
    %v1343 = vsel %vm544, %v1341, %v1339
    %v1344 = vsel %vm549, %v1342, 0.0
    %v1345 = vsel %vm550, %v1343, 0.0
    %v1347 = vsel %vm945, %v69, 0
    %1349 = vmatprep.subr.mxu0 %v1345
    %1350 = vmatpush1.msra.mxu0 %v1344
    %1351 = vmatprep.subr.mxu0 0.0
    %1352 = vmatpush1.msra.mxu0 0.0
    %1353 = vmatprep.subr.mxu0 0.0
    %1354 = vmatpush1.msra.mxu0 0.0
    %1355 = vmatprep.subr.mxu0 0.0
    %1356 = vmatpush1.msra.mxu0 0.0
    %1357 = vmatprep.subr.mxu0 0.0
    %1358 = vmatpush1.msra.mxu0 0.0
    %1359 = vmatprep.subr.mxu0 0.0
    %1360 = vmatpush1.msra.mxu0 0.0
    %1361 = vmatprep.subr.mxu0 0.0
    %1362 = vmatpush1.msra.mxu0 0.0
    %1363 = vmatprep.subr.mxu0 0.0
    %1364 = vmatpush1.msra.mxu0 0.0
    %1365 = vmatprep.subr.mxu0 0.0
    %1366 = vmatpush1.msra.mxu0 0.0
    %1367 = vmatprep.subr.mxu0 0.0
    %1368 = vmatpush1.msra.mxu0 0.0
    %1369 = vmatprep.subr.mxu0 0.0
    %1370 = vmatpush1.msra.mxu0 0.0
    %1371 = vmatprep.subr.mxu0 0.0
    %1372 = vmatpush1.msra.mxu0 0.0
    %1373 = vmatprep.subr.mxu0 0.0
    %1374 = vmatpush1.msra.mxu0 0.0
    %1375 = vmatprep.subr.mxu0 0.0
    %1376 = vmatpush1.msra.mxu0 0.0
    %1377 = vmatprep.subr.mxu0 0.0
    %1378 = vmatpush1.msra.mxu0 0.0
    %1379 = vmatprep.subr.mxu0 0.0
    %1380 = vmatpush1.msra.mxu0 0.0
    %1381 = vmatprep.subr.mxu0 0.0
    %1382 = vmatpush1.msra.mxu0 0.0
    %1383 = vmatprep.subr.mxu0 0.0
    %1384 = vmatpush1.msra.mxu0 0.0
    %1385 = vmatprep.subr.mxu0 0.0
    %1386 = vmatpush1.msra.mxu0 0.0
    %1387 = vmatprep.subr.mxu0 0.0
    %1388 = vmatpush1.msra.mxu0 0.0
    %1389 = vmatprep.subr.mxu0 0.0
    %1390 = vmatpush1.msra.mxu0 0.0
    %1391 = vmatprep.subr.mxu0 0.0
    %1392 = vmatpush1.msra.mxu0 0.0
    %1393 = vmatprep.subr.mxu0 0.0
    %1394 = vmatpush1.msra.mxu0 0.0
    %1395 = vmatprep.subr.mxu0 0.0
    %1396 = vmatpush1.msra.mxu0 0.0
    %1397 = vmatprep.subr.mxu0 0.0
    %1398 = vmatpush1.msra.mxu0 0.0
    %1399 = vmatprep.subr.mxu0 0.0
    %1400 = vmatpush1.msra.mxu0 0.0
    %1401 = vmatprep.subr.mxu0 0.0
    %1402 = vmatpush1.msra.mxu0 0.0
    %1403 = vmatprep.subr.mxu0 0.0
    %1404 = vmatpush1.msra.mxu0 0.0
    %1405 = vmatprep.subr.mxu0 0.0
    %1406 = vmatpush1.msra.mxu0 0.0
    %1407 = vmatprep.subr.mxu0 0.0
    %1408 = vmatpush1.msra.mxu0 0.0
    %1409 = vmatprep.subr.mxu0 0.0
    %1410 = vmatpush1.msra.mxu0 0.0
    %1411 = vmatprep.subr.mxu0 0.0
    %1412 = vmatpush1.msra.mxu0 0.0
    %1413 = vmatprep.mubr.f32.mxu0 0.0
    %1414 = vmatmul.mubr.f32.gmra.mrb[0].mxu0 %v1347
    %v1415 = vpop.f32.mrb[0].mxu0
    %v1416 = vadd.f32 0.0, %v1415
    %v1417 = vpop.f32.mrb[0].mxu0
    %v1418 = vadd.f32 0.0, %v1417
    %1419 = vdwg.mxu0
    %v1420 = vadd.f32 %v1336, %v1416
    %v1421 = vadd.f32 %v1337, %v1418
    %1422 = vrot.lane.b32.xlu0 %v927, 113
    %v1423 = vpop.permute.xlu0 %1422
    %1424 = vrot.lane.b32.xlu0 %v928, 113
    %v1425 = vpop.permute.xlu0 %1424
    %v1426 = vsel %vm639, %v1423, %v1425
    %v1427 = vsel %vm639, %v1425, %v1423
    %v1428 = vsel %vm644, %v1426, 0.0
    %v1429 = vsel %vm645, %v1427, 0.0
    %v1431 = vsel %vm945, %v71, 0
    %1433 = vmatprep.subr.mxu0 %v1429
    %1434 = vmatpush1.msra.mxu0 %v1428
    %1435 = vmatprep.subr.mxu0 0.0
    %1436 = vmatpush1.msra.mxu0 0.0
    %1437 = vmatprep.subr.mxu0 0.0
    %1438 = vmatpush1.msra.mxu0 0.0
    %1439 = vmatprep.subr.mxu0 0.0
    %1440 = vmatpush1.msra.mxu0 0.0
    %1441 = vmatprep.subr.mxu0 0.0
    %1442 = vmatpush1.msra.mxu0 0.0
    %1443 = vmatprep.subr.mxu0 0.0
    %1444 = vmatpush1.msra.mxu0 0.0
    %1445 = vmatprep.subr.mxu0 0.0
    %1446 = vmatpush1.msra.mxu0 0.0
    %1447 = vmatprep.subr.mxu0 0.0
    %1448 = vmatpush1.msra.mxu0 0.0
    %1449 = vmatprep.subr.mxu0 0.0
    %1450 = vmatpush1.msra.mxu0 0.0
    %1451 = vmatprep.subr.mxu0 0.0
    %1452 = vmatpush1.msra.mxu0 0.0
    %1453 = vmatprep.subr.mxu0 0.0
    %1454 = vmatpush1.msra.mxu0 0.0
    %1455 = vmatprep.subr.mxu0 0.0
    %1456 = vmatpush1.msra.mxu0 0.0
    %1457 = vmatprep.subr.mxu0 0.0
    %1458 = vmatpush1.msra.mxu0 0.0
    %1459 = vmatprep.subr.mxu0 0.0
    %1460 = vmatpush1.msra.mxu0 0.0
    %1461 = vmatprep.subr.mxu0 0.0
    %1462 = vmatpush1.msra.mxu0 0.0
    %1463 = vmatprep.subr.mxu0 0.0
    %1464 = vmatpush1.msra.mxu0 0.0
    %1465 = vmatprep.subr.mxu0 0.0
    %1466 = vmatpush1.msra.mxu0 0.0
    %1467 = vmatprep.subr.mxu0 0.0
    %1468 = vmatpush1.msra.mxu0 0.0
    %1469 = vmatprep.subr.mxu0 0.0
    %1470 = vmatpush1.msra.mxu0 0.0
    %1471 = vmatprep.subr.mxu0 0.0
    %1472 = vmatpush1.msra.mxu0 0.0
    %1473 = vmatprep.subr.mxu0 0.0
    %1474 = vmatpush1.msra.mxu0 0.0
    %1475 = vmatprep.subr.mxu0 0.0
    %1476 = vmatpush1.msra.mxu0 0.0
    %1477 = vmatprep.subr.mxu0 0.0
    %1478 = vmatpush1.msra.mxu0 0.0
    %1479 = vmatprep.subr.mxu0 0.0
    %1480 = vmatpush1.msra.mxu0 0.0
    %1481 = vmatprep.subr.mxu0 0.0
    %1482 = vmatpush1.msra.mxu0 0.0
    %1483 = vmatprep.subr.mxu0 0.0
    %1484 = vmatpush1.msra.mxu0 0.0
    %1485 = vmatprep.subr.mxu0 0.0
    %1486 = vmatpush1.msra.mxu0 0.0
    %1487 = vmatprep.subr.mxu0 0.0
    %1488 = vmatpush1.msra.mxu0 0.0
    %1489 = vmatprep.subr.mxu0 0.0
    %1490 = vmatpush1.msra.mxu0 0.0
    %1491 = vmatprep.subr.mxu0 0.0
    %1492 = vmatpush1.msra.mxu0 0.0
    %1493 = vmatprep.subr.mxu0 0.0
    %1494 = vmatpush1.msra.mxu0 0.0
    %1495 = vmatprep.subr.mxu0 0.0
    %1496 = vmatpush1.msra.mxu0 0.0
    %1497 = vmatprep.mubr.f32.mxu0 0.0
    %1498 = vmatmul.mubr.f32.gmra.mrb[0].mxu0 %v1431
    %v1499 = vpop.f32.mrb[0].mxu0
    %v1500 = vadd.f32 0.0, %v1499
    %v1501 = vpop.f32.mrb[0].mxu0
    %v1502 = vadd.f32 0.0, %v1501
    %1503 = vdwg.mxu0
    %v1504 = vadd.f32 %v1420, %v1500
    %v1505 = vadd.f32 %v1421, %v1502
    %1506 = vrot.lane.b32.xlu0 %v927, 112
    %v1507 = vpop.permute.xlu0 %1506
    %1508 = vrot.lane.b32.xlu0 %v928, 112
    %v1509 = vpop.permute.xlu0 %1508
    %v1510 = vsel %vm734, %v1507, %v1509
    %v1511 = vsel %vm734, %v1509, %v1507
    %v1512 = vsel %vm739, %v1510, 0.0
    %v1513 = vsel %vm740, %v1511, 0.0
    %v1515 = vsel %vm945, %v73, 0
    %1517 = vmatprep.subr.mxu0 %v1513
    %1518 = vmatpush1.msra.mxu0 %v1512
    %1519 = vmatprep.subr.mxu0 0.0
    %1520 = vmatpush1.msra.mxu0 0.0
    %1521 = vmatprep.subr.mxu0 0.0
    %1522 = vmatpush1.msra.mxu0 0.0
    %1523 = vmatprep.subr.mxu0 0.0
    %1524 = vmatpush1.msra.mxu0 0.0
    %1525 = vmatprep.subr.mxu0 0.0
    %1526 = vmatpush1.msra.mxu0 0.0
    %1527 = vmatprep.subr.mxu0 0.0
    %1528 = vmatpush1.msra.mxu0 0.0
    %1529 = vmatprep.subr.mxu0 0.0
    %1530 = vmatpush1.msra.mxu0 0.0
    %1531 = vmatprep.subr.mxu0 0.0
    %1532 = vmatpush1.msra.mxu0 0.0
    %1533 = vmatprep.subr.mxu0 0.0
    %1534 = vmatpush1.msra.mxu0 0.0
    %1535 = vmatprep.subr.mxu0 0.0
    %1536 = vmatpush1.msra.mxu0 0.0
    %1537 = vmatprep.subr.mxu0 0.0
    %1538 = vmatpush1.msra.mxu0 0.0
    %1539 = vmatprep.subr.mxu0 0.0
    %1540 = vmatpush1.msra.mxu0 0.0
    %1541 = vmatprep.subr.mxu0 0.0
    %1542 = vmatpush1.msra.mxu0 0.0
    %1543 = vmatprep.subr.mxu0 0.0
    %1544 = vmatpush1.msra.mxu0 0.0
    %1545 = vmatprep.subr.mxu0 0.0
    %1546 = vmatpush1.msra.mxu0 0.0
    %1547 = vmatprep.subr.mxu0 0.0
    %1548 = vmatpush1.msra.mxu0 0.0
    %1549 = vmatprep.subr.mxu0 0.0
    %1550 = vmatpush1.msra.mxu0 0.0
    %1551 = vmatprep.subr.mxu0 0.0
    %1552 = vmatpush1.msra.mxu0 0.0
    %1553 = vmatprep.subr.mxu0 0.0
    %1554 = vmatpush1.msra.mxu0 0.0
    %1555 = vmatprep.subr.mxu0 0.0
    %1556 = vmatpush1.msra.mxu0 0.0
    %1557 = vmatprep.subr.mxu0 0.0
    %1558 = vmatpush1.msra.mxu0 0.0
    %1559 = vmatprep.subr.mxu0 0.0
    %1560 = vmatpush1.msra.mxu0 0.0
    %1561 = vmatprep.subr.mxu0 0.0
    %1562 = vmatpush1.msra.mxu0 0.0
    %1563 = vmatprep.subr.mxu0 0.0
    %1564 = vmatpush1.msra.mxu0 0.0
    %1565 = vmatprep.subr.mxu0 0.0
    %1566 = vmatpush1.msra.mxu0 0.0
    %1567 = vmatprep.subr.mxu0 0.0
    %1568 = vmatpush1.msra.mxu0 0.0
    %1569 = vmatprep.subr.mxu0 0.0
    %1570 = vmatpush1.msra.mxu0 0.0
    %1571 = vmatprep.subr.mxu0 0.0
    %1572 = vmatpush1.msra.mxu0 0.0
    %1573 = vmatprep.subr.mxu0 0.0
    %1574 = vmatpush1.msra.mxu0 0.0
    %1575 = vmatprep.subr.mxu0 0.0
    %1576 = vmatpush1.msra.mxu0 0.0
    %1577 = vmatprep.subr.mxu0 0.0
    %1578 = vmatpush1.msra.mxu0 0.0
    %1579 = vmatprep.subr.mxu0 0.0
    %1580 = vmatpush1.msra.mxu0 0.0
    %1581 = vmatprep.mubr.f32.mxu0 0.0
    %1582 = vmatmul.mubr.f32.gmra.mrb[0].mxu0 %v1515
    %v1583 = vpop.f32.mrb[0].mxu0
    %v1584 = vadd.f32 0.0, %v1583
    %v1585 = vpop.f32.mrb[0].mxu0
    %v1586 = vadd.f32 0.0, %v1585
    %1587 = vdwg.mxu0
    %v1588 = vadd.f32 %v1504, %v1584
    %v1589 = vadd.f32 %v1505, %v1586
    %1590 = vrot.lane.b32.xlu0 %v927, 111
    %v1591 = vpop.permute.xlu0 %1590
    %1592 = vrot.lane.b32.xlu0 %v928, 111
    %v1593 = vpop.permute.xlu0 %1592
    %v1594 = vsel %vm829, %v1591, %v1593
    %v1595 = vsel %vm829, %v1593, %v1591
    %v1596 = vsel %vm834, %v1594, 0.0
    %v1597 = vsel %vm835, %v1595, 0.0
    %v1599 = vsel %vm945, %v75, 0
    %1601 = vmatprep.subr.mxu0 %v1597
    %1602 = vmatpush1.msra.mxu0 %v1596
    %1603 = vmatprep.subr.mxu0 0.0
    %1604 = vmatpush1.msra.mxu0 0.0
    %1605 = vmatprep.subr.mxu0 0.0
    %1606 = vmatpush1.msra.mxu0 0.0
    %1607 = vmatprep.subr.mxu0 0.0
    %1608 = vmatpush1.msra.mxu0 0.0
    %1609 = vmatprep.subr.mxu0 0.0
    %1610 = vmatpush1.msra.mxu0 0.0
    %1611 = vmatprep.subr.mxu0 0.0
    %1612 = vmatpush1.msra.mxu0 0.0
    %1613 = vmatprep.subr.mxu0 0.0
    %1614 = vmatpush1.msra.mxu0 0.0
    %1615 = vmatprep.subr.mxu0 0.0
    %1616 = vmatpush1.msra.mxu0 0.0
    %1617 = vmatprep.subr.mxu0 0.0
    %1618 = vmatpush1.msra.mxu0 0.0
    %1619 = vmatprep.subr.mxu0 0.0
    %1620 = vmatpush1.msra.mxu0 0.0
    %1621 = vmatprep.subr.mxu0 0.0
    %1622 = vmatpush1.msra.mxu0 0.0
    %1623 = vmatprep.subr.mxu0 0.0
    %1624 = vmatpush1.msra.mxu0 0.0
    %1625 = vmatprep.subr.mxu0 0.0
    %1626 = vmatpush1.msra.mxu0 0.0
    %1627 = vmatprep.subr.mxu0 0.0
    %1628 = vmatpush1.msra.mxu0 0.0
    %1629 = vmatprep.subr.mxu0 0.0
    %1630 = vmatpush1.msra.mxu0 0.0
    %1631 = vmatprep.subr.mxu0 0.0
    %1632 = vmatpush1.msra.mxu0 0.0
    %1633 = vmatprep.subr.mxu0 0.0
    %1634 = vmatpush1.msra.mxu0 0.0
    %1635 = vmatprep.subr.mxu0 0.0
    %1636 = vmatpush1.msra.mxu0 0.0
    %1637 = vmatprep.subr.mxu0 0.0
    %1638 = vmatpush1.msra.mxu0 0.0
    %1639 = vmatprep.subr.mxu0 0.0
    %1640 = vmatpush1.msra.mxu0 0.0
    %1641 = vmatprep.subr.mxu0 0.0
    %1642 = vmatpush1.msra.mxu0 0.0
    %1643 = vmatprep.subr.mxu0 0.0
    %1644 = vmatpush1.msra.mxu0 0.0
    %1645 = vmatprep.subr.mxu0 0.0
    %1646 = vmatpush1.msra.mxu0 0.0
    %1647 = vmatprep.subr.mxu0 0.0
    %1648 = vmatpush1.msra.mxu0 0.0
    %1649 = vmatprep.subr.mxu0 0.0
    %1650 = vmatpush1.msra.mxu0 0.0
    %1651 = vmatprep.subr.mxu0 0.0
    %1652 = vmatpush1.msra.mxu0 0.0
    %1653 = vmatprep.subr.mxu0 0.0
    %1654 = vmatpush1.msra.mxu0 0.0
    %1655 = vmatprep.subr.mxu0 0.0
    %1656 = vmatpush1.msra.mxu0 0.0
    %1657 = vmatprep.subr.mxu0 0.0
    %1658 = vmatpush1.msra.mxu0 0.0
    %1659 = vmatprep.subr.mxu0 0.0
    %1660 = vmatpush1.msra.mxu0 0.0
    %1661 = vmatprep.subr.mxu0 0.0
    %1662 = vmatpush1.msra.mxu0 0.0
    %1663 = vmatprep.subr.mxu0 0.0
    %1664 = vmatpush1.msra.mxu0 0.0
    %1665 = vmatprep.mubr.f32.mxu0 0.0
    %1666 = vmatmul.mubr.f32.gmra.mrb[0].mxu0 %v1599
    %v1667 = vpop.f32.mrb[0].mxu0
    %v1668 = vadd.f32 0.0, %v1667
    %v1669 = vpop.f32.mrb[0].mxu0
    %v1670 = vadd.f32 0.0, %v1669
    %1671 = vdwg.mxu0
    %v1672 = vadd.f32 %v1588, %v1668
    %v1673 = vadd.f32 %v1589, %v1670
    %1675 = vset.pattern.permute.xlu0 0
    %1676 = vperm.xlu0 %1675, %v77
    %v1677 = vpop.permute.xlu0 %1676
    %v1679 = vadd.f32 %v1672, %v1677
    %v1680 = vadd.f32 %v1673, %v1677
    %v1681 = vmax.f32 %v1679, 0.0
    %v1682 = vmax.f32 %v1680, 0.0
    %1683 = vst [vmem:[#allocation2] sm:$0xff] %v1681
    %1684 = vst [vmem:[#allocation2 + $0x8] sm:$0xff] %v1682
    %s1685 = scalar_lea.vmem %s0, 8
    %v1686 = vld [vmem:[%s1685] sm:$0xff]
    %v1688 = vcombine.high %v1686, %v1686
    %1690 = vrot.lane.b32.xlu0 %v1686, 17
    %v1691 = vpop.permute.xlu0 %1690
    %1692 = vrot.lane.b32.xlu0 %v1688, 17
    %v1693 = vpop.permute.xlu0 %1692
    %v1694 = vsel %vm86, %v1691, %v1693
    %v1695 = vsel %vm86, %v1693, %v1691
    %v1696 = vsel %vm91, %v1695, 0.0
    %v1697 = vsel %vm92, %v1694, 0.0
    %1698 = vrot.lane.b32.xlu0 %v1686, 16
    %v1699 = vpop.permute.xlu0 %1698
    %1700 = vrot.lane.b32.xlu0 %v1688, 16
    %v1701 = vpop.permute.xlu0 %1700
    %v1702 = vsel %vm99, %v1699, %v1701
    %v1703 = vsel %vm99, %v1701, %v1699
    %v1704 = vsel %vm104, %v1703, 0.0
    %v1705 = vsel %vm105, %v1702, 0.0
    %v1707 = vsel %vm112, %v1704, 0
    %v1710 = vsel %vm112, %v1705, 0
    %1712 = vmatprep.subr.mxu0 %v1710
    %1713 = vmatpush1.msra.mxu0 %v1707
    %1714 = vmatprep.subr.mxu0 0.0
    %1715 = vmatpush1.msra.mxu0 0.0
    %1716 = vmatprep.subr.mxu0 0.0
    %1717 = vmatpush1.msra.mxu0 0.0
    %1718 = vmatprep.subr.mxu0 0.0
    %1719 = vmatpush1.msra.mxu0 0.0
    %1720 = vmatprep.subr.mxu0 0.0
    %1721 = vmatpush1.msra.mxu0 0.0
    %1722 = vmatprep.subr.mxu0 0.0
    %1723 = vmatpush1.msra.mxu0 0.0
    %1724 = vmatprep.subr.mxu0 0.0
    %1725 = vmatpush1.msra.mxu0 0.0
    %1726 = vmatprep.subr.mxu0 0.0
    %1727 = vmatpush1.msra.mxu0 0.0
    %1728 = vmatprep.subr.mxu0 0.0
    %1729 = vmatpush1.msra.mxu0 0.0
    %1730 = vmatprep.subr.mxu0 0.0
    %1731 = vmatpush1.msra.mxu0 0.0
    %1732 = vmatprep.subr.mxu0 0.0
    %1733 = vmatpush1.msra.mxu0 0.0
    %1734 = vmatprep.subr.mxu0 0.0
    %1735 = vmatpush1.msra.mxu0 0.0
    %1736 = vmatprep.subr.mxu0 0.0
    %1737 = vmatpush1.msra.mxu0 0.0
    %1738 = vmatprep.subr.mxu0 0.0
    %1739 = vmatpush1.msra.mxu0 0.0
    %1740 = vmatprep.subr.mxu0 0.0
    %1741 = vmatpush1.msra.mxu0 0.0
    %1742 = vmatprep.subr.mxu0 0.0
    %1743 = vmatpush1.msra.mxu0 0.0
    %1744 = vmatprep.subr.mxu0 0.0
    %1745 = vmatpush1.msra.mxu0 0.0
    %1746 = vmatprep.subr.mxu0 0.0
    %1747 = vmatpush1.msra.mxu0 0.0
    %1748 = vmatprep.subr.mxu0 0.0
    %1749 = vmatpush1.msra.mxu0 0.0
    %1750 = vmatprep.subr.mxu0 0.0
    %1751 = vmatpush1.msra.mxu0 0.0
    %1752 = vmatprep.subr.mxu0 0.0
    %1753 = vmatpush1.msra.mxu0 0.0
    %1754 = vmatprep.subr.mxu0 0.0
    %1755 = vmatpush1.msra.mxu0 0.0
    %1756 = vmatprep.subr.mxu0 0.0
    %1757 = vmatpush1.msra.mxu0 0.0
    %1758 = vmatprep.subr.mxu0 0.0
    %1759 = vmatpush1.msra.mxu0 0.0
    %1760 = vmatprep.subr.mxu0 0.0
    %1761 = vmatpush1.msra.mxu0 0.0
    %1762 = vmatprep.subr.mxu0 0.0
    %1763 = vmatpush1.msra.mxu0 0.0
    %1764 = vmatprep.subr.mxu0 0.0
    %1765 = vmatpush1.msra.mxu0 0.0
    %1766 = vmatprep.subr.mxu0 0.0
    %1767 = vmatpush1.msra.mxu0 0.0
    %1768 = vmatprep.subr.mxu0 0.0
    %1769 = vmatpush1.msra.mxu0 0.0
    %1770 = vmatprep.subr.mxu0 0.0
    %1771 = vmatpush1.msra.mxu0 0.0
    %1772 = vmatprep.subr.mxu0 0.0
    %1773 = vmatpush1.msra.mxu0 0.0
    %1774 = vmatprep.subr.mxu0 0.0
    %1775 = vmatpush1.msra.mxu0 0.0
    %1776 = vmatprep.mubr.f32.mxu0 0.0
    %1777 = vmatmul.mubr.f32.gmra.mrb[0].mxu0 %v110
    %v1778 = vpop.f32.mrb[0].mxu0
    %v1779 = vadd.f32 0.0, %v1778
    %v1780 = vpop.f32.mrb[0].mxu0
    %v1781 = vadd.f32 0.0, %v1780
    %1782 = vdwg.mxu0
    %v1784 = vsel %vm112, %v1696, 0
    %v1787 = vsel %vm112, %v1697, 0
    %1789 = vmatprep.subr.mxu0 %v1787
    %1790 = vmatpush1.msra.mxu0 %v1784
    %1791 = vmatprep.subr.mxu0 0.0
    %1792 = vmatpush1.msra.mxu0 0.0
    %1793 = vmatprep.subr.mxu0 0.0
    %1794 = vmatpush1.msra.mxu0 0.0
    %1795 = vmatprep.subr.mxu0 0.0
    %1796 = vmatpush1.msra.mxu0 0.0
    %1797 = vmatprep.subr.mxu0 0.0
    %1798 = vmatpush1.msra.mxu0 0.0
    %1799 = vmatprep.subr.mxu0 0.0
    %1800 = vmatpush1.msra.mxu0 0.0
    %1801 = vmatprep.subr.mxu0 0.0
    %1802 = vmatpush1.msra.mxu0 0.0
    %1803 = vmatprep.subr.mxu0 0.0
    %1804 = vmatpush1.msra.mxu0 0.0
    %1805 = vmatprep.subr.mxu0 0.0
    %1806 = vmatpush1.msra.mxu0 0.0
    %1807 = vmatprep.subr.mxu0 0.0
    %1808 = vmatpush1.msra.mxu0 0.0
    %1809 = vmatprep.subr.mxu0 0.0
    %1810 = vmatpush1.msra.mxu0 0.0
    %1811 = vmatprep.subr.mxu0 0.0
    %1812 = vmatpush1.msra.mxu0 0.0
    %1813 = vmatprep.subr.mxu0 0.0
    %1814 = vmatpush1.msra.mxu0 0.0
    %1815 = vmatprep.subr.mxu0 0.0
    %1816 = vmatpush1.msra.mxu0 0.0
    %1817 = vmatprep.subr.mxu0 0.0
    %1818 = vmatpush1.msra.mxu0 0.0
    %1819 = vmatprep.subr.mxu0 0.0
    %1820 = vmatpush1.msra.mxu0 0.0
    %1821 = vmatprep.subr.mxu0 0.0
    %1822 = vmatpush1.msra.mxu0 0.0
    %1823 = vmatprep.subr.mxu0 0.0
    %1824 = vmatpush1.msra.mxu0 0.0
    %1825 = vmatprep.subr.mxu0 0.0
    %1826 = vmatpush1.msra.mxu0 0.0
    %1827 = vmatprep.subr.mxu0 0.0
    %1828 = vmatpush1.msra.mxu0 0.0
    %1829 = vmatprep.subr.mxu0 0.0
    %1830 = vmatpush1.msra.mxu0 0.0
    %1831 = vmatprep.subr.mxu0 0.0
    %1832 = vmatpush1.msra.mxu0 0.0
    %1833 = vmatprep.subr.mxu0 0.0
    %1834 = vmatpush1.msra.mxu0 0.0
    %1835 = vmatprep.subr.mxu0 0.0
    %1836 = vmatpush1.msra.mxu0 0.0
    %1837 = vmatprep.subr.mxu0 0.0
    %1838 = vmatpush1.msra.mxu0 0.0
    %1839 = vmatprep.subr.mxu0 0.0
    %1840 = vmatpush1.msra.mxu0 0.0
    %1841 = vmatprep.subr.mxu0 0.0
    %1842 = vmatpush1.msra.mxu0 0.0
    %1843 = vmatprep.subr.mxu0 0.0
    %1844 = vmatpush1.msra.mxu0 0.0
    %1845 = vmatprep.subr.mxu0 0.0
    %1846 = vmatpush1.msra.mxu0 0.0
    %1847 = vmatprep.subr.mxu0 0.0
    %1848 = vmatpush1.msra.mxu0 0.0
    %1849 = vmatprep.subr.mxu0 0.0
    %1850 = vmatpush1.msra.mxu0 0.0
    %1851 = vmatprep.subr.mxu0 0.0
    %1852 = vmatpush1.msra.mxu0 0.0
    %1853 = vmatprep.mubr.f32.mxu0 0.0
    %1854 = vmatmul.mubr.f32.gmra.mrb[0].mxu0 %v191
    %v1855 = vpop.f32.mrb[0].mxu0
    %v1856 = vadd.f32 %v1779, %v1855
    %v1857 = vpop.f32.mrb[0].mxu0
    %v1858 = vadd.f32 %v1781, %v1857
    %1859 = vdwg.mxu0
    %1860 = vrot.lane.b32.xlu0 %v1686, 15
    %v1861 = vpop.permute.xlu0 %1860
    %1862 = vrot.lane.b32.xlu0 %v1688, 15
    %v1863 = vpop.permute.xlu0 %1862
    %v1864 = vsel %vm274, %v1861, %v1863
    %v1865 = vsel %vm274, %v1863, %v1861
    %v1866 = vsel %vm279, %v1865, 0.0
    %v1867 = vsel %vm280, %v1864, 0.0
    %v1869 = vsel %vm112, %v1866, 0
    %v1872 = vsel %vm112, %v1867, 0
    %1874 = vmatprep.subr.mxu0 %v1872
    %1875 = vmatpush1.msra.mxu0 %v1869
    %1876 = vmatprep.subr.mxu0 0.0
    %1877 = vmatpush1.msra.mxu0 0.0
    %1878 = vmatprep.subr.mxu0 0.0
    %1879 = vmatpush1.msra.mxu0 0.0
    %1880 = vmatprep.subr.mxu0 0.0
    %1881 = vmatpush1.msra.mxu0 0.0
    %1882 = vmatprep.subr.mxu0 0.0
    %1883 = vmatpush1.msra.mxu0 0.0
    %1884 = vmatprep.subr.mxu0 0.0
    %1885 = vmatpush1.msra.mxu0 0.0
    %1886 = vmatprep.subr.mxu0 0.0
    %1887 = vmatpush1.msra.mxu0 0.0
    %1888 = vmatprep.subr.mxu0 0.0
    %1889 = vmatpush1.msra.mxu0 0.0
    %1890 = vmatprep.subr.mxu0 0.0
    %1891 = vmatpush1.msra.mxu0 0.0
    %1892 = vmatprep.subr.mxu0 0.0
    %1893 = vmatpush1.msra.mxu0 0.0
    %1894 = vmatprep.subr.mxu0 0.0
    %1895 = vmatpush1.msra.mxu0 0.0
    %1896 = vmatprep.subr.mxu0 0.0
    %1897 = vmatpush1.msra.mxu0 0.0
    %1898 = vmatprep.subr.mxu0 0.0
    %1899 = vmatpush1.msra.mxu0 0.0
    %1900 = vmatprep.subr.mxu0 0.0
    %1901 = vmatpush1.msra.mxu0 0.0
    %1902 = vmatprep.subr.mxu0 0.0
    %1903 = vmatpush1.msra.mxu0 0.0
    %1904 = vmatprep.subr.mxu0 0.0
    %1905 = vmatpush1.msra.mxu0 0.0
    %1906 = vmatprep.subr.mxu0 0.0
    %1907 = vmatpush1.msra.mxu0 0.0
    %1908 = vmatprep.subr.mxu0 0.0
    %1909 = vmatpush1.msra.mxu0 0.0
    %1910 = vmatprep.subr.mxu0 0.0
    %1911 = vmatpush1.msra.mxu0 0.0
    %1912 = vmatprep.subr.mxu0 0.0
    %1913 = vmatpush1.msra.mxu0 0.0
    %1914 = vmatprep.subr.mxu0 0.0
    %1915 = vmatpush1.msra.mxu0 0.0
    %1916 = vmatprep.subr.mxu0 0.0
    %1917 = vmatpush1.msra.mxu0 0.0
    %1918 = vmatprep.subr.mxu0 0.0
    %1919 = vmatpush1.msra.mxu0 0.0
    %1920 = vmatprep.subr.mxu0 0.0
    %1921 = vmatpush1.msra.mxu0 0.0
    %1922 = vmatprep.subr.mxu0 0.0
    %1923 = vmatpush1.msra.mxu0 0.0
    %1924 = vmatprep.subr.mxu0 0.0
    %1925 = vmatpush1.msra.mxu0 0.0
    %1926 = vmatprep.subr.mxu0 0.0
    %1927 = vmatpush1.msra.mxu0 0.0
    %1928 = vmatprep.subr.mxu0 0.0
    %1929 = vmatpush1.msra.mxu0 0.0
    %1930 = vmatprep.subr.mxu0 0.0
    %1931 = vmatpush1.msra.mxu0 0.0
    %1932 = vmatprep.subr.mxu0 0.0
    %1933 = vmatpush1.msra.mxu0 0.0
    %1934 = vmatprep.subr.mxu0 0.0
    %1935 = vmatpush1.msra.mxu0 0.0
    %1936 = vmatprep.subr.mxu0 0.0
    %1937 = vmatpush1.msra.mxu0 0.0
    %1938 = vmatprep.mubr.f32.mxu0 0.0
    %1939 = vmatmul.mubr.f32.gmra.mrb[0].mxu0 %v284
    %v1940 = vpop.f32.mrb[0].mxu0
    %v1941 = vadd.f32 0.0, %v1940
    %v1942 = vpop.f32.mrb[0].mxu0
    %v1943 = vadd.f32 0.0, %v1942
    %1944 = vdwg.mxu0
    %v1945 = vadd.f32 %v1856, %v1941
    %v1946 = vadd.f32 %v1858, %v1943
    %1947 = vrot.lane.b32.xlu0 %v1686, 1
    %v1948 = vpop.permute.xlu0 %1947
    %1949 = vrot.lane.b32.xlu0 %v1688, 1
    %v1950 = vpop.permute.xlu0 %1949
    %v1951 = vsel %vm369, %v1948, %v1950
    %v1952 = vsel %vm369, %v1950, %v1948
    %v1953 = vsel %vm374, %v1952, 0.0
    %v1954 = vsel %vm375, %v1951, 0.0
    %v1956 = vsel %vm112, %v1953, 0
    %v1959 = vsel %vm112, %v1954, 0
    %1961 = vmatprep.subr.mxu0 %v1959
    %1962 = vmatpush1.msra.mxu0 %v1956
    %1963 = vmatprep.subr.mxu0 0.0
    %1964 = vmatpush1.msra.mxu0 0.0
    %1965 = vmatprep.subr.mxu0 0.0
    %1966 = vmatpush1.msra.mxu0 0.0
    %1967 = vmatprep.subr.mxu0 0.0
    %1968 = vmatpush1.msra.mxu0 0.0
    %1969 = vmatprep.subr.mxu0 0.0
    %1970 = vmatpush1.msra.mxu0 0.0
    %1971 = vmatprep.subr.mxu0 0.0
    %1972 = vmatpush1.msra.mxu0 0.0
    %1973 = vmatprep.subr.mxu0 0.0
    %1974 = vmatpush1.msra.mxu0 0.0
    %1975 = vmatprep.subr.mxu0 0.0
    %1976 = vmatpush1.msra.mxu0 0.0
    %1977 = vmatprep.subr.mxu0 0.0
    %1978 = vmatpush1.msra.mxu0 0.0
    %1979 = vmatprep.subr.mxu0 0.0
    %1980 = vmatpush1.msra.mxu0 0.0
    %1981 = vmatprep.subr.mxu0 0.0
    %1982 = vmatpush1.msra.mxu0 0.0
    %1983 = vmatprep.subr.mxu0 0.0
    %1984 = vmatpush1.msra.mxu0 0.0
    %1985 = vmatprep.subr.mxu0 0.0
    %1986 = vmatpush1.msra.mxu0 0.0
    %1987 = vmatprep.subr.mxu0 0.0
    %1988 = vmatpush1.msra.mxu0 0.0
    %1989 = vmatprep.subr.mxu0 0.0
    %1990 = vmatpush1.msra.mxu0 0.0
    %1991 = vmatprep.subr.mxu0 0.0
    %1992 = vmatpush1.msra.mxu0 0.0
    %1993 = vmatprep.subr.mxu0 0.0
    %1994 = vmatpush1.msra.mxu0 0.0
    %1995 = vmatprep.subr.mxu0 0.0
    %1996 = vmatpush1.msra.mxu0 0.0
    %1997 = vmatprep.subr.mxu0 0.0
    %1998 = vmatpush1.msra.mxu0 0.0
    %1999 = vmatprep.subr.mxu0 0.0
    %2000 = vmatpush1.msra.mxu0 0.0
    %2001 = vmatprep.subr.mxu0 0.0
    %2002 = vmatpush1.msra.mxu0 0.0
    %2003 = vmatprep.subr.mxu0 0.0
    %2004 = vmatpush1.msra.mxu0 0.0
    %2005 = vmatprep.subr.mxu0 0.0
    %2006 = vmatpush1.msra.mxu0 0.0
    %2007 = vmatprep.subr.mxu0 0.0
    %2008 = vmatpush1.msra.mxu0 0.0
    %2009 = vmatprep.subr.mxu0 0.0
    %2010 = vmatpush1.msra.mxu0 0.0
    %2011 = vmatprep.subr.mxu0 0.0
    %2012 = vmatpush1.msra.mxu0 0.0
    %2013 = vmatprep.subr.mxu0 0.0
    %2014 = vmatpush1.msra.mxu0 0.0
    %2015 = vmatprep.subr.mxu0 0.0
    %2016 = vmatpush1.msra.mxu0 0.0
    %2017 = vmatprep.subr.mxu0 0.0
    %2018 = vmatpush1.msra.mxu0 0.0
    %2019 = vmatprep.subr.mxu0 0.0
    %2020 = vmatpush1.msra.mxu0 0.0
    %2021 = vmatprep.subr.mxu0 0.0
    %2022 = vmatpush1.msra.mxu0 0.0
    %2023 = vmatprep.subr.mxu0 0.0
    %2024 = vmatpush1.msra.mxu0 0.0
    %2025 = vmatprep.mubr.f32.mxu0 0.0
    %2026 = vmatmul.mubr.f32.gmra.mrb[0].mxu0 %v379
    %v2027 = vpop.f32.mrb[0].mxu0
    %v2028 = vadd.f32 0.0, %v2027
    %v2029 = vpop.f32.mrb[0].mxu0
    %v2030 = vadd.f32 0.0, %v2029
    %2031 = vdwg.mxu0
    %v2032 = vadd.f32 %v1945, %v2028
    %v2033 = vadd.f32 %v1946, %v2030
    %v2034 = vsel %vm112, %v1686, 0
    %v2036 = vsel %vm112, %v1688, 0
    %2038 = vmatprep.subr.mxu0 %v2036
    %2039 = vmatpush1.msra.mxu0 %v2034
    %2040 = vmatprep.subr.mxu0 0.0
    %2041 = vmatpush1.msra.mxu0 0.0
    %2042 = vmatprep.subr.mxu0 0.0
    %2043 = vmatpush1.msra.mxu0 0.0
    %2044 = vmatprep.subr.mxu0 0.0
    %2045 = vmatpush1.msra.mxu0 0.0
    %2046 = vmatprep.subr.mxu0 0.0
    %2047 = vmatpush1.msra.mxu0 0.0
    %2048 = vmatprep.subr.mxu0 0.0
    %2049 = vmatpush1.msra.mxu0 0.0
    %2050 = vmatprep.subr.mxu0 0.0
    %2051 = vmatpush1.msra.mxu0 0.0
    %2052 = vmatprep.subr.mxu0 0.0
    %2053 = vmatpush1.msra.mxu0 0.0
    %2054 = vmatprep.subr.mxu0 0.0
    %2055 = vmatpush1.msra.mxu0 0.0
    %2056 = vmatprep.subr.mxu0 0.0
    %2057 = vmatpush1.msra.mxu0 0.0
    %2058 = vmatprep.subr.mxu0 0.0
    %2059 = vmatpush1.msra.mxu0 0.0
    %2060 = vmatprep.subr.mxu0 0.0
    %2061 = vmatpush1.msra.mxu0 0.0
    %2062 = vmatprep.subr.mxu0 0.0
    %2063 = vmatpush1.msra.mxu0 0.0
    %2064 = vmatprep.subr.mxu0 0.0
    %2065 = vmatpush1.msra.mxu0 0.0
    %2066 = vmatprep.subr.mxu0 0.0
    %2067 = vmatpush1.msra.mxu0 0.0
    %2068 = vmatprep.subr.mxu0 0.0
    %2069 = vmatpush1.msra.mxu0 0.0
    %2070 = vmatprep.subr.mxu0 0.0
    %2071 = vmatpush1.msra.mxu0 0.0
    %2072 = vmatprep.subr.mxu0 0.0
    %2073 = vmatpush1.msra.mxu0 0.0
    %2074 = vmatprep.subr.mxu0 0.0
    %2075 = vmatpush1.msra.mxu0 0.0
    %2076 = vmatprep.subr.mxu0 0.0
    %2077 = vmatpush1.msra.mxu0 0.0
    %2078 = vmatprep.subr.mxu0 0.0
    %2079 = vmatpush1.msra.mxu0 0.0
    %2080 = vmatprep.subr.mxu0 0.0
    %2081 = vmatpush1.msra.mxu0 0.0
    %2082 = vmatprep.subr.mxu0 0.0
    %2083 = vmatpush1.msra.mxu0 0.0
    %2084 = vmatprep.subr.mxu0 0.0
    %2085 = vmatpush1.msra.mxu0 0.0
    %2086 = vmatprep.subr.mxu0 0.0
    %2087 = vmatpush1.msra.mxu0 0.0
    %2088 = vmatprep.subr.mxu0 0.0
    %2089 = vmatpush1.msra.mxu0 0.0
    %2090 = vmatprep.subr.mxu0 0.0
    %2091 = vmatpush1.msra.mxu0 0.0
    %2092 = vmatprep.subr.mxu0 0.0
    %2093 = vmatpush1.msra.mxu0 0.0
    %2094 = vmatprep.subr.mxu0 0.0
    %2095 = vmatpush1.msra.mxu0 0.0
    %2096 = vmatprep.subr.mxu0 0.0
    %2097 = vmatpush1.msra.mxu0 0.0
    %2098 = vmatprep.subr.mxu0 0.0
    %2099 = vmatpush1.msra.mxu0 0.0
    %2100 = vmatprep.subr.mxu0 0.0
    %2101 = vmatpush1.msra.mxu0 0.0
    %2102 = vmatprep.mubr.f32.mxu0 0.0
    %2103 = vmatmul.mubr.f32.gmra.mrb[0].mxu0 %v461
    %v2104 = vpop.f32.mrb[0].mxu0
    %v2105 = vadd.f32 0.0, %v2104
    %v2106 = vpop.f32.mrb[0].mxu0
    %v2107 = vadd.f32 0.0, %v2106
    %2108 = vdwg.mxu0
    %v2109 = vadd.f32 %v2032, %v2105
    %v2110 = vadd.f32 %v2033, %v2107
    %2111 = vrot.lane.b32.xlu0 %v1686, 127
    %v2112 = vpop.permute.xlu0 %2111
    %2113 = vrot.lane.b32.xlu0 %v1688, 127
    %v2114 = vpop.permute.xlu0 %2113
    %v2115 = vsel %vm544, %v2112, %v2114
    %v2116 = vsel %vm544, %v2114, %v2112
    %v2117 = vsel %vm549, %v2115, 0.0
    %v2118 = vsel %vm550, %v2116, 0.0
    %v2120 = vsel %vm112, %v2117, 0
    %v2123 = vsel %vm112, %v2118, 0
    %2125 = vmatprep.subr.mxu0 %v2123
    %2126 = vmatpush1.msra.mxu0 %v2120
    %2127 = vmatprep.subr.mxu0 0.0
    %2128 = vmatpush1.msra.mxu0 0.0
    %2129 = vmatprep.subr.mxu0 0.0
    %2130 = vmatpush1.msra.mxu0 0.0
    %2131 = vmatprep.subr.mxu0 0.0
    %2132 = vmatpush1.msra.mxu0 0.0
    %2133 = vmatprep.subr.mxu0 0.0
    %2134 = vmatpush1.msra.mxu0 0.0
    %2135 = vmatprep.subr.mxu0 0.0
    %2136 = vmatpush1.msra.mxu0 0.0
    %2137 = vmatprep.subr.mxu0 0.0
    %2138 = vmatpush1.msra.mxu0 0.0
    %2139 = vmatprep.subr.mxu0 0.0
    %2140 = vmatpush1.msra.mxu0 0.0
    %2141 = vmatprep.subr.mxu0 0.0
    %2142 = vmatpush1.msra.mxu0 0.0
    %2143 = vmatprep.subr.mxu0 0.0
    %2144 = vmatpush1.msra.mxu0 0.0
    %2145 = vmatprep.subr.mxu0 0.0
    %2146 = vmatpush1.msra.mxu0 0.0
    %2147 = vmatprep.subr.mxu0 0.0
    %2148 = vmatpush1.msra.mxu0 0.0
    %2149 = vmatprep.subr.mxu0 0.0
    %2150 = vmatpush1.msra.mxu0 0.0
    %2151 = vmatprep.subr.mxu0 0.0
    %2152 = vmatpush1.msra.mxu0 0.0
    %2153 = vmatprep.subr.mxu0 0.0
    %2154 = vmatpush1.msra.mxu0 0.0
    %2155 = vmatprep.subr.mxu0 0.0
    %2156 = vmatpush1.msra.mxu0 0.0
    %2157 = vmatprep.subr.mxu0 0.0
    %2158 = vmatpush1.msra.mxu0 0.0
    %2159 = vmatprep.subr.mxu0 0.0
    %2160 = vmatpush1.msra.mxu0 0.0
    %2161 = vmatprep.subr.mxu0 0.0
    %2162 = vmatpush1.msra.mxu0 0.0
    %2163 = vmatprep.subr.mxu0 0.0
    %2164 = vmatpush1.msra.mxu0 0.0
    %2165 = vmatprep.subr.mxu0 0.0
    %2166 = vmatpush1.msra.mxu0 0.0
    %2167 = vmatprep.subr.mxu0 0.0
    %2168 = vmatpush1.msra.mxu0 0.0
    %2169 = vmatprep.subr.mxu0 0.0
    %2170 = vmatpush1.msra.mxu0 0.0
    %2171 = vmatprep.subr.mxu0 0.0
    %2172 = vmatpush1.msra.mxu0 0.0
    %2173 = vmatprep.subr.mxu0 0.0
    %2174 = vmatpush1.msra.mxu0 0.0
    %2175 = vmatprep.subr.mxu0 0.0
    %2176 = vmatpush1.msra.mxu0 0.0
    %2177 = vmatprep.subr.mxu0 0.0
    %2178 = vmatpush1.msra.mxu0 0.0
    %2179 = vmatprep.subr.mxu0 0.0
    %2180 = vmatpush1.msra.mxu0 0.0
    %2181 = vmatprep.subr.mxu0 0.0
    %2182 = vmatpush1.msra.mxu0 0.0
    %2183 = vmatprep.subr.mxu0 0.0
    %2184 = vmatpush1.msra.mxu0 0.0
    %2185 = vmatprep.subr.mxu0 0.0
    %2186 = vmatpush1.msra.mxu0 0.0
    %2187 = vmatprep.subr.mxu0 0.0
    %2188 = vmatpush1.msra.mxu0 0.0
    %2189 = vmatprep.mubr.f32.mxu0 0.0
    %2190 = vmatmul.mubr.f32.gmra.mrb[0].mxu0 %v554
    %v2191 = vpop.f32.mrb[0].mxu0
    %v2192 = vadd.f32 0.0, %v2191
    %v2193 = vpop.f32.mrb[0].mxu0
    %v2194 = vadd.f32 0.0, %v2193
    %2195 = vdwg.mxu0
    %v2196 = vadd.f32 %v2109, %v2192
    %v2197 = vadd.f32 %v2110, %v2194
    %2198 = vrot.lane.b32.xlu0 %v1686, 113
    %v2199 = vpop.permute.xlu0 %2198
    %2200 = vrot.lane.b32.xlu0 %v1688, 113
    %v2201 = vpop.permute.xlu0 %2200
    %v2202 = vsel %vm639, %v2199, %v2201
    %v2203 = vsel %vm639, %v2201, %v2199
    %v2204 = vsel %vm644, %v2202, 0.0
    %v2205 = vsel %vm645, %v2203, 0.0
    %v2207 = vsel %vm112, %v2204, 0
    %v2210 = vsel %vm112, %v2205, 0
    %2212 = vmatprep.subr.mxu0 %v2210
    %2213 = vmatpush1.msra.mxu0 %v2207
    %2214 = vmatprep.subr.mxu0 0.0
    %2215 = vmatpush1.msra.mxu0 0.0
    %2216 = vmatprep.subr.mxu0 0.0
    %2217 = vmatpush1.msra.mxu0 0.0
    %2218 = vmatprep.subr.mxu0 0.0
    %2219 = vmatpush1.msra.mxu0 0.0
    %2220 = vmatprep.subr.mxu0 0.0
    %2221 = vmatpush1.msra.mxu0 0.0
    %2222 = vmatprep.subr.mxu0 0.0
    %2223 = vmatpush1.msra.mxu0 0.0
    %2224 = vmatprep.subr.mxu0 0.0
    %2225 = vmatpush1.msra.mxu0 0.0
    %2226 = vmatprep.subr.mxu0 0.0
    %2227 = vmatpush1.msra.mxu0 0.0
    %2228 = vmatprep.subr.mxu0 0.0
    %2229 = vmatpush1.msra.mxu0 0.0
    %2230 = vmatprep.subr.mxu0 0.0
    %2231 = vmatpush1.msra.mxu0 0.0
    %2232 = vmatprep.subr.mxu0 0.0
    %2233 = vmatpush1.msra.mxu0 0.0
    %2234 = vmatprep.subr.mxu0 0.0
    %2235 = vmatpush1.msra.mxu0 0.0
    %2236 = vmatprep.subr.mxu0 0.0
    %2237 = vmatpush1.msra.mxu0 0.0
    %2238 = vmatprep.subr.mxu0 0.0
    %2239 = vmatpush1.msra.mxu0 0.0
    %2240 = vmatprep.subr.mxu0 0.0
    %2241 = vmatpush1.msra.mxu0 0.0
    %2242 = vmatprep.subr.mxu0 0.0
    %2243 = vmatpush1.msra.mxu0 0.0
    %2244 = vmatprep.subr.mxu0 0.0
    %2245 = vmatpush1.msra.mxu0 0.0
    %2246 = vmatprep.subr.mxu0 0.0
    %2247 = vmatpush1.msra.mxu0 0.0
    %2248 = vmatprep.subr.mxu0 0.0
    %2249 = vmatpush1.msra.mxu0 0.0
    %2250 = vmatprep.subr.mxu0 0.0
    %2251 = vmatpush1.msra.mxu0 0.0
    %2252 = vmatprep.subr.mxu0 0.0
    %2253 = vmatpush1.msra.mxu0 0.0
    %2254 = vmatprep.subr.mxu0 0.0
    %2255 = vmatpush1.msra.mxu0 0.0
    %2256 = vmatprep.subr.mxu0 0.0
    %2257 = vmatpush1.msra.mxu0 0.0
    %2258 = vmatprep.subr.mxu0 0.0
    %2259 = vmatpush1.msra.mxu0 0.0
    %2260 = vmatprep.subr.mxu0 0.0
    %2261 = vmatpush1.msra.mxu0 0.0
    %2262 = vmatprep.subr.mxu0 0.0
    %2263 = vmatpush1.msra.mxu0 0.0
    %2264 = vmatprep.subr.mxu0 0.0
    %2265 = vmatpush1.msra.mxu0 0.0
    %2266 = vmatprep.subr.mxu0 0.0
    %2267 = vmatpush1.msra.mxu0 0.0
    %2268 = vmatprep.subr.mxu0 0.0
    %2269 = vmatpush1.msra.mxu0 0.0
    %2270 = vmatprep.subr.mxu0 0.0
    %2271 = vmatpush1.msra.mxu0 0.0
    %2272 = vmatprep.subr.mxu0 0.0
    %2273 = vmatpush1.msra.mxu0 0.0
    %2274 = vmatprep.subr.mxu0 0.0
    %2275 = vmatpush1.msra.mxu0 0.0
    %2276 = vmatprep.mubr.f32.mxu0 0.0
    %2277 = vmatmul.mubr.f32.gmra.mrb[0].mxu0 %v649
    %v2278 = vpop.f32.mrb[0].mxu0
    %v2279 = vadd.f32 0.0, %v2278
    %v2280 = vpop.f32.mrb[0].mxu0
    %v2281 = vadd.f32 0.0, %v2280
    %2282 = vdwg.mxu0
    %v2283 = vadd.f32 %v2196, %v2279
    %v2284 = vadd.f32 %v2197, %v2281
    %2285 = vrot.lane.b32.xlu0 %v1686, 112
    %v2286 = vpop.permute.xlu0 %2285
    %2287 = vrot.lane.b32.xlu0 %v1688, 112
    %v2288 = vpop.permute.xlu0 %2287
    %v2289 = vsel %vm734, %v2286, %v2288
    %v2290 = vsel %vm734, %v2288, %v2286
    %v2291 = vsel %vm739, %v2289, 0.0
    %v2292 = vsel %vm740, %v2290, 0.0
    %v2294 = vsel %vm112, %v2291, 0
    %v2297 = vsel %vm112, %v2292, 0
    %2299 = vmatprep.subr.mxu0 %v2297
    %2300 = vmatpush1.msra.mxu0 %v2294
    %2301 = vmatprep.subr.mxu0 0.0
    %2302 = vmatpush1.msra.mxu0 0.0
    %2303 = vmatprep.subr.mxu0 0.0
    %2304 = vmatpush1.msra.mxu0 0.0
    %2305 = vmatprep.subr.mxu0 0.0
    %2306 = vmatpush1.msra.mxu0 0.0
    %2307 = vmatprep.subr.mxu0 0.0
    %2308 = vmatpush1.msra.mxu0 0.0
    %2309 = vmatprep.subr.mxu0 0.0
    %2310 = vmatpush1.msra.mxu0 0.0
    %2311 = vmatprep.subr.mxu0 0.0
    %2312 = vmatpush1.msra.mxu0 0.0
    %2313 = vmatprep.subr.mxu0 0.0
    %2314 = vmatpush1.msra.mxu0 0.0
    %2315 = vmatprep.subr.mxu0 0.0
    %2316 = vmatpush1.msra.mxu0 0.0
    %2317 = vmatprep.subr.mxu0 0.0
    %2318 = vmatpush1.msra.mxu0 0.0
    %2319 = vmatprep.subr.mxu0 0.0
    %2320 = vmatpush1.msra.mxu0 0.0
    %2321 = vmatprep.subr.mxu0 0.0
    %2322 = vmatpush1.msra.mxu0 0.0
    %2323 = vmatprep.subr.mxu0 0.0
    %2324 = vmatpush1.msra.mxu0 0.0
    %2325 = vmatprep.subr.mxu0 0.0
    %2326 = vmatpush1.msra.mxu0 0.0
    %2327 = vmatprep.subr.mxu0 0.0
    %2328 = vmatpush1.msra.mxu0 0.0
    %2329 = vmatprep.subr.mxu0 0.0
    %2330 = vmatpush1.msra.mxu0 0.0
    %2331 = vmatprep.subr.mxu0 0.0
    %2332 = vmatpush1.msra.mxu0 0.0
    %2333 = vmatprep.subr.mxu0 0.0
    %2334 = vmatpush1.msra.mxu0 0.0
    %2335 = vmatprep.subr.mxu0 0.0
    %2336 = vmatpush1.msra.mxu0 0.0
    %2337 = vmatprep.subr.mxu0 0.0
    %2338 = vmatpush1.msra.mxu0 0.0
    %2339 = vmatprep.subr.mxu0 0.0
    %2340 = vmatpush1.msra.mxu0 0.0
    %2341 = vmatprep.subr.mxu0 0.0
    %2342 = vmatpush1.msra.mxu0 0.0
    %2343 = vmatprep.subr.mxu0 0.0
    %2344 = vmatpush1.msra.mxu0 0.0
    %2345 = vmatprep.subr.mxu0 0.0
    %2346 = vmatpush1.msra.mxu0 0.0
    %2347 = vmatprep.subr.mxu0 0.0
    %2348 = vmatpush1.msra.mxu0 0.0
    %2349 = vmatprep.subr.mxu0 0.0
    %2350 = vmatpush1.msra.mxu0 0.0
    %2351 = vmatprep.subr.mxu0 0.0
    %2352 = vmatpush1.msra.mxu0 0.0
    %2353 = vmatprep.subr.mxu0 0.0
    %2354 = vmatpush1.msra.mxu0 0.0
    %2355 = vmatprep.subr.mxu0 0.0
    %2356 = vmatpush1.msra.mxu0 0.0
    %2357 = vmatprep.subr.mxu0 0.0
    %2358 = vmatpush1.msra.mxu0 0.0
    %2359 = vmatprep.subr.mxu0 0.0
    %2360 = vmatpush1.msra.mxu0 0.0
    %2361 = vmatprep.subr.mxu0 0.0
    %2362 = vmatpush1.msra.mxu0 0.0
    %2363 = vmatprep.mubr.f32.mxu0 0.0
    %2364 = vmatmul.mubr.f32.gmra.mrb[0].mxu0 %v744
    %v2365 = vpop.f32.mrb[0].mxu0
    %v2366 = vadd.f32 0.0, %v2365
    %v2367 = vpop.f32.mrb[0].mxu0
    %v2368 = vadd.f32 0.0, %v2367
    %2369 = vdwg.mxu0
    %v2370 = vadd.f32 %v2283, %v2366
    %v2371 = vadd.f32 %v2284, %v2368
    %2372 = vrot.lane.b32.xlu0 %v1686, 111
    %v2373 = vpop.permute.xlu0 %2372
    %2374 = vrot.lane.b32.xlu0 %v1688, 111
    %v2375 = vpop.permute.xlu0 %2374
    %v2376 = vsel %vm829, %v2373, %v2375
    %v2377 = vsel %vm829, %v2375, %v2373
    %v2378 = vsel %vm834, %v2376, 0.0
    %v2379 = vsel %vm835, %v2377, 0.0
    %v2381 = vsel %vm112, %v2378, 0
    %v2384 = vsel %vm112, %v2379, 0
    %2386 = vmatprep.subr.mxu0 %v2384
    %2387 = vmatpush1.msra.mxu0 %v2381
    %2388 = vmatprep.subr.mxu0 0.0
    %2389 = vmatpush1.msra.mxu0 0.0
    %2390 = vmatprep.subr.mxu0 0.0
    %2391 = vmatpush1.msra.mxu0 0.0
    %2392 = vmatprep.subr.mxu0 0.0
    %2393 = vmatpush1.msra.mxu0 0.0
    %2394 = vmatprep.subr.mxu0 0.0
    %2395 = vmatpush1.msra.mxu0 0.0
    %2396 = vmatprep.subr.mxu0 0.0
    %2397 = vmatpush1.msra.mxu0 0.0
    %2398 = vmatprep.subr.mxu0 0.0
    %2399 = vmatpush1.msra.mxu0 0.0
    %2400 = vmatprep.subr.mxu0 0.0
    %2401 = vmatpush1.msra.mxu0 0.0
    %2402 = vmatprep.subr.mxu0 0.0
    %2403 = vmatpush1.msra.mxu0 0.0
    %2404 = vmatprep.subr.mxu0 0.0
    %2405 = vmatpush1.msra.mxu0 0.0
    %2406 = vmatprep.subr.mxu0 0.0
    %2407 = vmatpush1.msra.mxu0 0.0
    %2408 = vmatprep.subr.mxu0 0.0
    %2409 = vmatpush1.msra.mxu0 0.0
    %2410 = vmatprep.subr.mxu0 0.0
    %2411 = vmatpush1.msra.mxu0 0.0
    %2412 = vmatprep.subr.mxu0 0.0
    %2413 = vmatpush1.msra.mxu0 0.0
    %2414 = vmatprep.subr.mxu0 0.0
    %2415 = vmatpush1.msra.mxu0 0.0
    %2416 = vmatprep.subr.mxu0 0.0
    %2417 = vmatpush1.msra.mxu0 0.0
    %2418 = vmatprep.subr.mxu0 0.0
    %2419 = vmatpush1.msra.mxu0 0.0
    %2420 = vmatprep.subr.mxu0 0.0
    %2421 = vmatpush1.msra.mxu0 0.0
    %2422 = vmatprep.subr.mxu0 0.0
    %2423 = vmatpush1.msra.mxu0 0.0
    %2424 = vmatprep.subr.mxu0 0.0
    %2425 = vmatpush1.msra.mxu0 0.0
    %2426 = vmatprep.subr.mxu0 0.0
    %2427 = vmatpush1.msra.mxu0 0.0
    %2428 = vmatprep.subr.mxu0 0.0
    %2429 = vmatpush1.msra.mxu0 0.0
    %2430 = vmatprep.subr.mxu0 0.0
    %2431 = vmatpush1.msra.mxu0 0.0
    %2432 = vmatprep.subr.mxu0 0.0
    %2433 = vmatpush1.msra.mxu0 0.0
    %2434 = vmatprep.subr.mxu0 0.0
    %2435 = vmatpush1.msra.mxu0 0.0
    %2436 = vmatprep.subr.mxu0 0.0
    %2437 = vmatpush1.msra.mxu0 0.0
    %2438 = vmatprep.subr.mxu0 0.0
    %2439 = vmatpush1.msra.mxu0 0.0
    %2440 = vmatprep.subr.mxu0 0.0
    %2441 = vmatpush1.msra.mxu0 0.0
    %2442 = vmatprep.subr.mxu0 0.0
    %2443 = vmatpush1.msra.mxu0 0.0
    %2444 = vmatprep.subr.mxu0 0.0
    %2445 = vmatpush1.msra.mxu0 0.0
    %2446 = vmatprep.subr.mxu0 0.0
    %2447 = vmatpush1.msra.mxu0 0.0
    %2448 = vmatprep.subr.mxu0 0.0
    %2449 = vmatpush1.msra.mxu0 0.0
    %2450 = vmatprep.mubr.f32.mxu0 0.0
    %2451 = vmatmul.mubr.f32.gmra.mrb[0].mxu0 %v839
    %v2452 = vpop.f32.mrb[0].mxu0
    %v2453 = vadd.f32 0.0, %v2452
    %v2454 = vpop.f32.mrb[0].mxu0
    %v2455 = vadd.f32 0.0, %v2454
    %2456 = vdwg.mxu0
    %v2457 = vadd.f32 %v2370, %v2453
    %v2458 = vadd.f32 %v2371, %v2455
    %v2459 = vadd.f32 %v2457, %v923
    %v2460 = vadd.f32 %v2458, %v923
    %v2461 = vmax.f32 %v2459, 0.0
    %v2462 = vmax.f32 %v2460, 0.0
    %2463 = vrot.lane.b32.xlu0 %v2461, 17
    %v2464 = vpop.permute.xlu0 %2463
    %2465 = vrot.lane.b32.xlu0 %v2462, 17
    %v2466 = vpop.permute.xlu0 %2465
    %v2467 = vsel %vm86, %v2464, %v2466
    %v2468 = vsel %vm86, %v2466, %v2464
    %v2469 = vsel %vm91, %v2468, 0.0
    %v2470 = vsel %vm92, %v2467, 0.0
    %2471 = vrot.lane.b32.xlu0 %v2461, 16
    %v2472 = vpop.permute.xlu0 %2471
    %2473 = vrot.lane.b32.xlu0 %v2462, 16
    %v2474 = vpop.permute.xlu0 %2473
    %v2475 = vsel %vm99, %v2472, %v2474
    %v2476 = vsel %vm99, %v2474, %v2472
    %v2477 = vsel %vm104, %v2476, 0.0
    %v2478 = vsel %vm105, %v2475, 0.0
    %2479 = vmatprep.subr.mxu0 %v2478
    %2480 = vmatpush1.msra.mxu0 %v2477
    %2481 = vmatprep.subr.mxu0 0.0
    %2482 = vmatpush1.msra.mxu0 0.0
    %2483 = vmatprep.subr.mxu0 0.0
    %2484 = vmatpush1.msra.mxu0 0.0
    %2485 = vmatprep.subr.mxu0 0.0
    %2486 = vmatpush1.msra.mxu0 0.0
    %2487 = vmatprep.subr.mxu0 0.0
    %2488 = vmatpush1.msra.mxu0 0.0
    %2489 = vmatprep.subr.mxu0 0.0
    %2490 = vmatpush1.msra.mxu0 0.0
    %2491 = vmatprep.subr.mxu0 0.0
    %2492 = vmatpush1.msra.mxu0 0.0
    %2493 = vmatprep.subr.mxu0 0.0
    %2494 = vmatpush1.msra.mxu0 0.0
    %2495 = vmatprep.subr.mxu0 0.0
    %2496 = vmatpush1.msra.mxu0 0.0
    %2497 = vmatprep.subr.mxu0 0.0
    %2498 = vmatpush1.msra.mxu0 0.0
    %2499 = vmatprep.subr.mxu0 0.0
    %2500 = vmatpush1.msra.mxu0 0.0
    %2501 = vmatprep.subr.mxu0 0.0
    %2502 = vmatpush1.msra.mxu0 0.0
    %2503 = vmatprep.subr.mxu0 0.0
    %2504 = vmatpush1.msra.mxu0 0.0
    %2505 = vmatprep.subr.mxu0 0.0
    %2506 = vmatpush1.msra.mxu0 0.0
    %2507 = vmatprep.subr.mxu0 0.0
    %2508 = vmatpush1.msra.mxu0 0.0
    %2509 = vmatprep.subr.mxu0 0.0
    %2510 = vmatpush1.msra.mxu0 0.0
    %2511 = vmatprep.subr.mxu0 0.0
    %2512 = vmatpush1.msra.mxu0 0.0
    %2513 = vmatprep.subr.mxu0 0.0
    %2514 = vmatpush1.msra.mxu0 0.0
    %2515 = vmatprep.subr.mxu0 0.0
    %2516 = vmatpush1.msra.mxu0 0.0
    %2517 = vmatprep.subr.mxu0 0.0
    %2518 = vmatpush1.msra.mxu0 0.0
    %2519 = vmatprep.subr.mxu0 0.0
    %2520 = vmatpush1.msra.mxu0 0.0
    %2521 = vmatprep.subr.mxu0 0.0
    %2522 = vmatpush1.msra.mxu0 0.0
    %2523 = vmatprep.subr.mxu0 0.0
    %2524 = vmatpush1.msra.mxu0 0.0
    %2525 = vmatprep.subr.mxu0 0.0
    %2526 = vmatpush1.msra.mxu0 0.0
    %2527 = vmatprep.subr.mxu0 0.0
    %2528 = vmatpush1.msra.mxu0 0.0
    %2529 = vmatprep.subr.mxu0 0.0
    %2530 = vmatpush1.msra.mxu0 0.0
    %2531 = vmatprep.subr.mxu0 0.0
    %2532 = vmatpush1.msra.mxu0 0.0
    %2533 = vmatprep.subr.mxu0 0.0
    %2534 = vmatpush1.msra.mxu0 0.0
    %2535 = vmatprep.subr.mxu0 0.0
    %2536 = vmatpush1.msra.mxu0 0.0
    %2537 = vmatprep.subr.mxu0 0.0
    %2538 = vmatpush1.msra.mxu0 0.0
    %2539 = vmatprep.subr.mxu0 0.0
    %2540 = vmatpush1.msra.mxu0 0.0
    %2541 = vmatprep.subr.mxu0 0.0
    %2542 = vmatpush1.msra.mxu0 0.0
    %2543 = vmatprep.mubr.f32.mxu0 0.0
    %2544 = vmatmul.mubr.f32.gmra.mrb[0].mxu0 %v947
    %v2545 = vpop.f32.mrb[0].mxu0
    %v2546 = vadd.f32 0.0, %v2545
    %v2547 = vpop.f32.mrb[0].mxu0
    %v2548 = vadd.f32 0.0, %v2547
    %2549 = vdwg.mxu0
    %2550 = vmatprep.subr.mxu0 %v2470
    %2551 = vmatpush1.msra.mxu0 %v2469
    %2552 = vmatprep.subr.mxu0 0.0
    %2553 = vmatpush1.msra.mxu0 0.0
    %2554 = vmatprep.subr.mxu0 0.0
    %2555 = vmatpush1.msra.mxu0 0.0
    %2556 = vmatprep.subr.mxu0 0.0
    %2557 = vmatpush1.msra.mxu0 0.0
    %2558 = vmatprep.subr.mxu0 0.0
    %2559 = vmatpush1.msra.mxu0 0.0
    %2560 = vmatprep.subr.mxu0 0.0
    %2561 = vmatpush1.msra.mxu0 0.0
    %2562 = vmatprep.subr.mxu0 0.0
    %2563 = vmatpush1.msra.mxu0 0.0
    %2564 = vmatprep.subr.mxu0 0.0
    %2565 = vmatpush1.msra.mxu0 0.0
    %2566 = vmatprep.subr.mxu0 0.0
    %2567 = vmatpush1.msra.mxu0 0.0
    %2568 = vmatprep.subr.mxu0 0.0
    %2569 = vmatpush1.msra.mxu0 0.0
    %2570 = vmatprep.subr.mxu0 0.0
    %2571 = vmatpush1.msra.mxu0 0.0
    %2572 = vmatprep.subr.mxu0 0.0
    %2573 = vmatpush1.msra.mxu0 0.0
    %2574 = vmatprep.subr.mxu0 0.0
    %2575 = vmatpush1.msra.mxu0 0.0
    %2576 = vmatprep.subr.mxu0 0.0
    %2577 = vmatpush1.msra.mxu0 0.0
    %2578 = vmatprep.subr.mxu0 0.0
    %2579 = vmatpush1.msra.mxu0 0.0
    %2580 = vmatprep.subr.mxu0 0.0
    %2581 = vmatpush1.msra.mxu0 0.0
    %2582 = vmatprep.subr.mxu0 0.0
    %2583 = vmatpush1.msra.mxu0 0.0
    %2584 = vmatprep.subr.mxu0 0.0
    %2585 = vmatpush1.msra.mxu0 0.0
    %2586 = vmatprep.subr.mxu0 0.0
    %2587 = vmatpush1.msra.mxu0 0.0
    %2588 = vmatprep.subr.mxu0 0.0
    %2589 = vmatpush1.msra.mxu0 0.0
    %2590 = vmatprep.subr.mxu0 0.0
    %2591 = vmatpush1.msra.mxu0 0.0
    %2592 = vmatprep.subr.mxu0 0.0
    %2593 = vmatpush1.msra.mxu0 0.0
    %2594 = vmatprep.subr.mxu0 0.0
    %2595 = vmatpush1.msra.mxu0 0.0
    %2596 = vmatprep.subr.mxu0 0.0
    %2597 = vmatpush1.msra.mxu0 0.0
    %2598 = vmatprep.subr.mxu0 0.0
    %2599 = vmatpush1.msra.mxu0 0.0
    %2600 = vmatprep.subr.mxu0 0.0
    %2601 = vmatpush1.msra.mxu0 0.0
    %2602 = vmatprep.subr.mxu0 0.0
    %2603 = vmatpush1.msra.mxu0 0.0
    %2604 = vmatprep.subr.mxu0 0.0
    %2605 = vmatpush1.msra.mxu0 0.0
    %2606 = vmatprep.subr.mxu0 0.0
    %2607 = vmatpush1.msra.mxu0 0.0
    %2608 = vmatprep.subr.mxu0 0.0
    %2609 = vmatpush1.msra.mxu0 0.0
    %2610 = vmatprep.subr.mxu0 0.0
    %2611 = vmatpush1.msra.mxu0 0.0
    %2612 = vmatprep.subr.mxu0 0.0
    %2613 = vmatpush1.msra.mxu0 0.0
    %2614 = vmatprep.mubr.f32.mxu0 0.0
    %2615 = vmatmul.mubr.f32.gmra.mrb[0].mxu0 %v1021
    %v2616 = vpop.f32.mrb[0].mxu0
    %v2617 = vadd.f32 %v2546, %v2616
    %v2618 = vpop.f32.mrb[0].mxu0
    %v2619 = vadd.f32 %v2548, %v2618
    %2620 = vdwg.mxu0
    %2621 = vrot.lane.b32.xlu0 %v2461, 15
    %v2622 = vpop.permute.xlu0 %2621
    %2623 = vrot.lane.b32.xlu0 %v2462, 15
    %v2624 = vpop.permute.xlu0 %2623
    %v2625 = vsel %vm274, %v2622, %v2624
    %v2626 = vsel %vm274, %v2624, %v2622
    %v2627 = vsel %vm279, %v2626, 0.0
    %v2628 = vsel %vm280, %v2625, 0.0
    %2629 = vmatprep.subr.mxu0 %v2628
    %2630 = vmatpush1.msra.mxu0 %v2627
    %2631 = vmatprep.subr.mxu0 0.0
    %2632 = vmatpush1.msra.mxu0 0.0
    %2633 = vmatprep.subr.mxu0 0.0
    %2634 = vmatpush1.msra.mxu0 0.0
    %2635 = vmatprep.subr.mxu0 0.0
    %2636 = vmatpush1.msra.mxu0 0.0
    %2637 = vmatprep.subr.mxu0 0.0
    %2638 = vmatpush1.msra.mxu0 0.0
    %2639 = vmatprep.subr.mxu0 0.0
    %2640 = vmatpush1.msra.mxu0 0.0
    %2641 = vmatprep.subr.mxu0 0.0
    %2642 = vmatpush1.msra.mxu0 0.0
    %2643 = vmatprep.subr.mxu0 0.0
    %2644 = vmatpush1.msra.mxu0 0.0
    %2645 = vmatprep.subr.mxu0 0.0
    %2646 = vmatpush1.msra.mxu0 0.0
    %2647 = vmatprep.subr.mxu0 0.0
    %2648 = vmatpush1.msra.mxu0 0.0
    %2649 = vmatprep.subr.mxu0 0.0
    %2650 = vmatpush1.msra.mxu0 0.0
    %2651 = vmatprep.subr.mxu0 0.0
    %2652 = vmatpush1.msra.mxu0 0.0
    %2653 = vmatprep.subr.mxu0 0.0
    %2654 = vmatpush1.msra.mxu0 0.0
    %2655 = vmatprep.subr.mxu0 0.0
    %2656 = vmatpush1.msra.mxu0 0.0
    %2657 = vmatprep.subr.mxu0 0.0
    %2658 = vmatpush1.msra.mxu0 0.0
    %2659 = vmatprep.subr.mxu0 0.0
    %2660 = vmatpush1.msra.mxu0 0.0
    %2661 = vmatprep.subr.mxu0 0.0
    %2662 = vmatpush1.msra.mxu0 0.0
    %2663 = vmatprep.subr.mxu0 0.0
    %2664 = vmatpush1.msra.mxu0 0.0
    %2665 = vmatprep.subr.mxu0 0.0
    %2666 = vmatpush1.msra.mxu0 0.0
    %2667 = vmatprep.subr.mxu0 0.0
    %2668 = vmatpush1.msra.mxu0 0.0
    %2669 = vmatprep.subr.mxu0 0.0
    %2670 = vmatpush1.msra.mxu0 0.0
    %2671 = vmatprep.subr.mxu0 0.0
    %2672 = vmatpush1.msra.mxu0 0.0
    %2673 = vmatprep.subr.mxu0 0.0
    %2674 = vmatpush1.msra.mxu0 0.0
    %2675 = vmatprep.subr.mxu0 0.0
    %2676 = vmatpush1.msra.mxu0 0.0
    %2677 = vmatprep.subr.mxu0 0.0
    %2678 = vmatpush1.msra.mxu0 0.0
    %2679 = vmatprep.subr.mxu0 0.0
    %2680 = vmatpush1.msra.mxu0 0.0
    %2681 = vmatprep.subr.mxu0 0.0
    %2682 = vmatpush1.msra.mxu0 0.0
    %2683 = vmatprep.subr.mxu0 0.0
    %2684 = vmatpush1.msra.mxu0 0.0
    %2685 = vmatprep.subr.mxu0 0.0
    %2686 = vmatpush1.msra.mxu0 0.0
    %2687 = vmatprep.subr.mxu0 0.0
    %2688 = vmatpush1.msra.mxu0 0.0
    %2689 = vmatprep.subr.mxu0 0.0
    %2690 = vmatpush1.msra.mxu0 0.0
    %2691 = vmatprep.subr.mxu0 0.0
    %2692 = vmatpush1.msra.mxu0 0.0
    %2693 = vmatprep.mubr.f32.mxu0 0.0
    %2694 = vmatmul.mubr.f32.gmra.mrb[0].mxu0 %v1103
    %v2695 = vpop.f32.mrb[0].mxu0
    %v2696 = vadd.f32 0.0, %v2695
    %v2697 = vpop.f32.mrb[0].mxu0
    %v2698 = vadd.f32 0.0, %v2697
    %2699 = vdwg.mxu0
    %v2700 = vadd.f32 %v2617, %v2696
    %v2701 = vadd.f32 %v2619, %v2698
    %2702 = vrot.lane.b32.xlu0 %v2461, 1
    %v2703 = vpop.permute.xlu0 %2702
    %2704 = vrot.lane.b32.xlu0 %v2462, 1
    %v2705 = vpop.permute.xlu0 %2704
    %v2706 = vsel %vm369, %v2703, %v2705
    %v2707 = vsel %vm369, %v2705, %v2703
    %v2708 = vsel %vm374, %v2707, 0.0
    %v2709 = vsel %vm375, %v2706, 0.0
    %2710 = vmatprep.subr.mxu0 %v2709
    %2711 = vmatpush1.msra.mxu0 %v2708
    %2712 = vmatprep.subr.mxu0 0.0
    %2713 = vmatpush1.msra.mxu0 0.0
    %2714 = vmatprep.subr.mxu0 0.0
    %2715 = vmatpush1.msra.mxu0 0.0
    %2716 = vmatprep.subr.mxu0 0.0
    %2717 = vmatpush1.msra.mxu0 0.0
    %2718 = vmatprep.subr.mxu0 0.0
    %2719 = vmatpush1.msra.mxu0 0.0
    %2720 = vmatprep.subr.mxu0 0.0
    %2721 = vmatpush1.msra.mxu0 0.0
    %2722 = vmatprep.subr.mxu0 0.0
    %2723 = vmatpush1.msra.mxu0 0.0
    %2724 = vmatprep.subr.mxu0 0.0
    %2725 = vmatpush1.msra.mxu0 0.0
    %2726 = vmatprep.subr.mxu0 0.0
    %2727 = vmatpush1.msra.mxu0 0.0
    %2728 = vmatprep.subr.mxu0 0.0
    %2729 = vmatpush1.msra.mxu0 0.0
    %2730 = vmatprep.subr.mxu0 0.0
    %2731 = vmatpush1.msra.mxu0 0.0
    %2732 = vmatprep.subr.mxu0 0.0
    %2733 = vmatpush1.msra.mxu0 0.0
    %2734 = vmatprep.subr.mxu0 0.0
    %2735 = vmatpush1.msra.mxu0 0.0
    %2736 = vmatprep.subr.mxu0 0.0
    %2737 = vmatpush1.msra.mxu0 0.0
    %2738 = vmatprep.subr.mxu0 0.0
    %2739 = vmatpush1.msra.mxu0 0.0
    %2740 = vmatprep.subr.mxu0 0.0
    %2741 = vmatpush1.msra.mxu0 0.0
    %2742 = vmatprep.subr.mxu0 0.0
    %2743 = vmatpush1.msra.mxu0 0.0
    %2744 = vmatprep.subr.mxu0 0.0
    %2745 = vmatpush1.msra.mxu0 0.0
    %2746 = vmatprep.subr.mxu0 0.0
    %2747 = vmatpush1.msra.mxu0 0.0
    %2748 = vmatprep.subr.mxu0 0.0
    %2749 = vmatpush1.msra.mxu0 0.0
    %2750 = vmatprep.subr.mxu0 0.0
    %2751 = vmatpush1.msra.mxu0 0.0
    %2752 = vmatprep.subr.mxu0 0.0
    %2753 = vmatpush1.msra.mxu0 0.0
    %2754 = vmatprep.subr.mxu0 0.0
    %2755 = vmatpush1.msra.mxu0 0.0
    %2756 = vmatprep.subr.mxu0 0.0
    %2757 = vmatpush1.msra.mxu0 0.0
    %2758 = vmatprep.subr.mxu0 0.0
    %2759 = vmatpush1.msra.mxu0 0.0
    %2760 = vmatprep.subr.mxu0 0.0
    %2761 = vmatpush1.msra.mxu0 0.0
    %2762 = vmatprep.subr.mxu0 0.0
    %2763 = vmatpush1.msra.mxu0 0.0
    %2764 = vmatprep.subr.mxu0 0.0
    %2765 = vmatpush1.msra.mxu0 0.0
    %2766 = vmatprep.subr.mxu0 0.0
    %2767 = vmatpush1.msra.mxu0 0.0
    %2768 = vmatprep.subr.mxu0 0.0
    %2769 = vmatpush1.msra.mxu0 0.0
    %2770 = vmatprep.subr.mxu0 0.0
    %2771 = vmatpush1.msra.mxu0 0.0
    %2772 = vmatprep.subr.mxu0 0.0
    %2773 = vmatpush1.msra.mxu0 0.0
    %2774 = vmatprep.mubr.f32.mxu0 0.0
    %2775 = vmatmul.mubr.f32.gmra.mrb[0].mxu0 %v1187
    %v2776 = vpop.f32.mrb[0].mxu0
    %v2777 = vadd.f32 0.0, %v2776
    %v2778 = vpop.f32.mrb[0].mxu0
    %v2779 = vadd.f32 0.0, %v2778
    %2780 = vdwg.mxu0
    %v2781 = vadd.f32 %v2700, %v2777
    %v2782 = vadd.f32 %v2701, %v2779
    %2783 = vmatprep.subr.mxu0 %v2462
    %2784 = vmatpush1.msra.mxu0 %v2461
    %2785 = vmatprep.subr.mxu0 0.0
    %2786 = vmatpush1.msra.mxu0 0.0
    %2787 = vmatprep.subr.mxu0 0.0
    %2788 = vmatpush1.msra.mxu0 0.0
    %2789 = vmatprep.subr.mxu0 0.0
    %2790 = vmatpush1.msra.mxu0 0.0
    %2791 = vmatprep.subr.mxu0 0.0
    %2792 = vmatpush1.msra.mxu0 0.0
    %2793 = vmatprep.subr.mxu0 0.0
    %2794 = vmatpush1.msra.mxu0 0.0
    %2795 = vmatprep.subr.mxu0 0.0
    %2796 = vmatpush1.msra.mxu0 0.0
    %2797 = vmatprep.subr.mxu0 0.0
    %2798 = vmatpush1.msra.mxu0 0.0
    %2799 = vmatprep.subr.mxu0 0.0
    %2800 = vmatpush1.msra.mxu0 0.0
    %2801 = vmatprep.subr.mxu0 0.0
    %2802 = vmatpush1.msra.mxu0 0.0
    %2803 = vmatprep.subr.mxu0 0.0
    %2804 = vmatpush1.msra.mxu0 0.0
    %2805 = vmatprep.subr.mxu0 0.0
    %2806 = vmatpush1.msra.mxu0 0.0
    %2807 = vmatprep.subr.mxu0 0.0
    %2808 = vmatpush1.msra.mxu0 0.0
    %2809 = vmatprep.subr.mxu0 0.0
    %2810 = vmatpush1.msra.mxu0 0.0
    %2811 = vmatprep.subr.mxu0 0.0
    %2812 = vmatpush1.msra.mxu0 0.0
    %2813 = vmatprep.subr.mxu0 0.0
    %2814 = vmatpush1.msra.mxu0 0.0
    %2815 = vmatprep.subr.mxu0 0.0
    %2816 = vmatpush1.msra.mxu0 0.0
    %2817 = vmatprep.subr.mxu0 0.0
    %2818 = vmatpush1.msra.mxu0 0.0
    %2819 = vmatprep.subr.mxu0 0.0
    %2820 = vmatpush1.msra.mxu0 0.0
    %2821 = vmatprep.subr.mxu0 0.0
    %2822 = vmatpush1.msra.mxu0 0.0
    %2823 = vmatprep.subr.mxu0 0.0
    %2824 = vmatpush1.msra.mxu0 0.0
    %2825 = vmatprep.subr.mxu0 0.0
    %2826 = vmatpush1.msra.mxu0 0.0
    %2827 = vmatprep.subr.mxu0 0.0
    %2828 = vmatpush1.msra.mxu0 0.0
    %2829 = vmatprep.subr.mxu0 0.0
    %2830 = vmatpush1.msra.mxu0 0.0
    %2831 = vmatprep.subr.mxu0 0.0
    %2832 = vmatpush1.msra.mxu0 0.0
    %2833 = vmatprep.subr.mxu0 0.0
    %2834 = vmatpush1.msra.mxu0 0.0
    %2835 = vmatprep.subr.mxu0 0.0
    %2836 = vmatpush1.msra.mxu0 0.0
    %2837 = vmatprep.subr.mxu0 0.0
    %2838 = vmatpush1.msra.mxu0 0.0
    %2839 = vmatprep.subr.mxu0 0.0
    %2840 = vmatpush1.msra.mxu0 0.0
    %2841 = vmatprep.subr.mxu0 0.0
    %2842 = vmatpush1.msra.mxu0 0.0
    %2843 = vmatprep.subr.mxu0 0.0
    %2844 = vmatpush1.msra.mxu0 0.0
    %2845 = vmatprep.subr.mxu0 0.0
    %2846 = vmatpush1.msra.mxu0 0.0
    %2847 = vmatprep.mubr.f32.mxu0 0.0
    %2848 = vmatmul.mubr.f32.gmra.mrb[0].mxu0 %v1263
    %v2849 = vpop.f32.mrb[0].mxu0
    %v2850 = vadd.f32 0.0, %v2849
    %v2851 = vpop.f32.mrb[0].mxu0
    %v2852 = vadd.f32 0.0, %v2851
    %2853 = vdwg.mxu0
    %v2854 = vadd.f32 %v2781, %v2850
    %v2855 = vadd.f32 %v2782, %v2852
    %2856 = vrot.lane.b32.xlu0 %v2461, 127
    %v2857 = vpop.permute.xlu0 %2856
    %2858 = vrot.lane.b32.xlu0 %v2462, 127
    %v2859 = vpop.permute.xlu0 %2858
    %v2860 = vsel %vm544, %v2857, %v2859
    %v2861 = vsel %vm544, %v2859, %v2857
    %v2862 = vsel %vm549, %v2860, 0.0
    %v2863 = vsel %vm550, %v2861, 0.0
    %2864 = vmatprep.subr.mxu0 %v2863
    %2865 = vmatpush1.msra.mxu0 %v2862
    %2866 = vmatprep.subr.mxu0 0.0
    %2867 = vmatpush1.msra.mxu0 0.0
    %2868 = vmatprep.subr.mxu0 0.0
    %2869 = vmatpush1.msra.mxu0 0.0
    %2870 = vmatprep.subr.mxu0 0.0
    %2871 = vmatpush1.msra.mxu0 0.0
    %2872 = vmatprep.subr.mxu0 0.0
    %2873 = vmatpush1.msra.mxu0 0.0
    %2874 = vmatprep.subr.mxu0 0.0
    %2875 = vmatpush1.msra.mxu0 0.0
    %2876 = vmatprep.subr.mxu0 0.0
    %2877 = vmatpush1.msra.mxu0 0.0
    %2878 = vmatprep.subr.mxu0 0.0
    %2879 = vmatpush1.msra.mxu0 0.0
    %2880 = vmatprep.subr.mxu0 0.0
    %2881 = vmatpush1.msra.mxu0 0.0
    %2882 = vmatprep.subr.mxu0 0.0
    %2883 = vmatpush1.msra.mxu0 0.0
    %2884 = vmatprep.subr.mxu0 0.0
    %2885 = vmatpush1.msra.mxu0 0.0
    %2886 = vmatprep.subr.mxu0 0.0
    %2887 = vmatpush1.msra.mxu0 0.0
    %2888 = vmatprep.subr.mxu0 0.0
    %2889 = vmatpush1.msra.mxu0 0.0
    %2890 = vmatprep.subr.mxu0 0.0
    %2891 = vmatpush1.msra.mxu0 0.0
    %2892 = vmatprep.subr.mxu0 0.0
    %2893 = vmatpush1.msra.mxu0 0.0
    %2894 = vmatprep.subr.mxu0 0.0
    %2895 = vmatpush1.msra.mxu0 0.0
    %2896 = vmatprep.subr.mxu0 0.0
    %2897 = vmatpush1.msra.mxu0 0.0
    %2898 = vmatprep.subr.mxu0 0.0
    %2899 = vmatpush1.msra.mxu0 0.0
    %2900 = vmatprep.subr.mxu0 0.0
    %2901 = vmatpush1.msra.mxu0 0.0
    %2902 = vmatprep.subr.mxu0 0.0
    %2903 = vmatpush1.msra.mxu0 0.0
    %2904 = vmatprep.subr.mxu0 0.0
    %2905 = vmatpush1.msra.mxu0 0.0
    %2906 = vmatprep.subr.mxu0 0.0
    %2907 = vmatpush1.msra.mxu0 0.0
    %2908 = vmatprep.subr.mxu0 0.0
    %2909 = vmatpush1.msra.mxu0 0.0
    %2910 = vmatprep.subr.mxu0 0.0
    %2911 = vmatpush1.msra.mxu0 0.0
    %2912 = vmatprep.subr.mxu0 0.0
    %2913 = vmatpush1.msra.mxu0 0.0
    %2914 = vmatprep.subr.mxu0 0.0
    %2915 = vmatpush1.msra.mxu0 0.0
    %2916 = vmatprep.subr.mxu0 0.0
    %2917 = vmatpush1.msra.mxu0 0.0
    %2918 = vmatprep.subr.mxu0 0.0
    %2919 = vmatpush1.msra.mxu0 0.0
    %2920 = vmatprep.subr.mxu0 0.0
    %2921 = vmatpush1.msra.mxu0 0.0
    %2922 = vmatprep.subr.mxu0 0.0
    %2923 = vmatpush1.msra.mxu0 0.0
    %2924 = vmatprep.subr.mxu0 0.0
    %2925 = vmatpush1.msra.mxu0 0.0
    %2926 = vmatprep.subr.mxu0 0.0
    %2927 = vmatpush1.msra.mxu0 0.0
    %2928 = vmatprep.mubr.f32.mxu0 0.0
    %2929 = vmatmul.mubr.f32.gmra.mrb[0].mxu0 %v1347
    %v2930 = vpop.f32.mrb[0].mxu0
    %v2931 = vadd.f32 0.0, %v2930
    %v2932 = vpop.f32.mrb[0].mxu0
    %v2933 = vadd.f32 0.0, %v2932
    %2934 = vdwg.mxu0
    %v2935 = vadd.f32 %v2854, %v2931
    %v2936 = vadd.f32 %v2855, %v2933
    %2937 = vrot.lane.b32.xlu0 %v2461, 113
    %v2938 = vpop.permute.xlu0 %2937
    %2939 = vrot.lane.b32.xlu0 %v2462, 113
    %v2940 = vpop.permute.xlu0 %2939
    %v2941 = vsel %vm639, %v2938, %v2940
    %v2942 = vsel %vm639, %v2940, %v2938
    %v2943 = vsel %vm644, %v2941, 0.0
    %v2944 = vsel %vm645, %v2942, 0.0
    %2945 = vmatprep.subr.mxu0 %v2944
    %2946 = vmatpush1.msra.mxu0 %v2943
    %2947 = vmatprep.subr.mxu0 0.0
    %2948 = vmatpush1.msra.mxu0 0.0
    %2949 = vmatprep.subr.mxu0 0.0
    %2950 = vmatpush1.msra.mxu0 0.0
    %2951 = vmatprep.subr.mxu0 0.0
    %2952 = vmatpush1.msra.mxu0 0.0
    %2953 = vmatprep.subr.mxu0 0.0
    %2954 = vmatpush1.msra.mxu0 0.0
    %2955 = vmatprep.subr.mxu0 0.0
    %2956 = vmatpush1.msra.mxu0 0.0
    %2957 = vmatprep.subr.mxu0 0.0
    %2958 = vmatpush1.msra.mxu0 0.0
    %2959 = vmatprep.subr.mxu0 0.0
    %2960 = vmatpush1.msra.mxu0 0.0
    %2961 = vmatprep.subr.mxu0 0.0
    %2962 = vmatpush1.msra.mxu0 0.0
    %2963 = vmatprep.subr.mxu0 0.0
    %2964 = vmatpush1.msra.mxu0 0.0
    %2965 = vmatprep.subr.mxu0 0.0
    %2966 = vmatpush1.msra.mxu0 0.0
    %2967 = vmatprep.subr.mxu0 0.0
    %2968 = vmatpush1.msra.mxu0 0.0
    %2969 = vmatprep.subr.mxu0 0.0
    %2970 = vmatpush1.msra.mxu0 0.0
    %2971 = vmatprep.subr.mxu0 0.0
    %2972 = vmatpush1.msra.mxu0 0.0
    %2973 = vmatprep.subr.mxu0 0.0
    %2974 = vmatpush1.msra.mxu0 0.0
    %2975 = vmatprep.subr.mxu0 0.0
    %2976 = vmatpush1.msra.mxu0 0.0
    %2977 = vmatprep.subr.mxu0 0.0
    %2978 = vmatpush1.msra.mxu0 0.0
    %2979 = vmatprep.subr.mxu0 0.0
    %2980 = vmatpush1.msra.mxu0 0.0
    %2981 = vmatprep.subr.mxu0 0.0
    %2982 = vmatpush1.msra.mxu0 0.0
    %2983 = vmatprep.subr.mxu0 0.0
    %2984 = vmatpush1.msra.mxu0 0.0
    %2985 = vmatprep.subr.mxu0 0.0
    %2986 = vmatpush1.msra.mxu0 0.0
    %2987 = vmatprep.subr.mxu0 0.0
    %2988 = vmatpush1.msra.mxu0 0.0
    %2989 = vmatprep.subr.mxu0 0.0
    %2990 = vmatpush1.msra.mxu0 0.0
    %2991 = vmatprep.subr.mxu0 0.0
    %2992 = vmatpush1.msra.mxu0 0.0
    %2993 = vmatprep.subr.mxu0 0.0
    %2994 = vmatpush1.msra.mxu0 0.0
    %2995 = vmatprep.subr.mxu0 0.0
    %2996 = vmatpush1.msra.mxu0 0.0
    %2997 = vmatprep.subr.mxu0 0.0
    %2998 = vmatpush1.msra.mxu0 0.0
    %2999 = vmatprep.subr.mxu0 0.0
    %3000 = vmatpush1.msra.mxu0 0.0
    %3001 = vmatprep.subr.mxu0 0.0
    %3002 = vmatpush1.msra.mxu0 0.0
    %3003 = vmatprep.subr.mxu0 0.0
    %3004 = vmatpush1.msra.mxu0 0.0
    %3005 = vmatprep.subr.mxu0 0.0
    %3006 = vmatpush1.msra.mxu0 0.0
    %3007 = vmatprep.subr.mxu0 0.0
    %3008 = vmatpush1.msra.mxu0 0.0
    %3009 = vmatprep.mubr.f32.mxu0 0.0
    %3010 = vmatmul.mubr.f32.gmra.mrb[0].mxu0 %v1431
    %v3011 = vpop.f32.mrb[0].mxu0
    %v3012 = vadd.f32 0.0, %v3011
    %v3013 = vpop.f32.mrb[0].mxu0
    %v3014 = vadd.f32 0.0, %v3013
    %3015 = vdwg.mxu0
    %v3016 = vadd.f32 %v2935, %v3012
    %v3017 = vadd.f32 %v2936, %v3014
    %3018 = vrot.lane.b32.xlu0 %v2461, 112
    %v3019 = vpop.permute.xlu0 %3018
    %3020 = vrot.lane.b32.xlu0 %v2462, 112
    %v3021 = vpop.permute.xlu0 %3020
    %v3022 = vsel %vm734, %v3019, %v3021
    %v3023 = vsel %vm734, %v3021, %v3019
    %v3024 = vsel %vm739, %v3022, 0.0
    %v3025 = vsel %vm740, %v3023, 0.0
    %3026 = vmatprep.subr.mxu0 %v3025
    %3027 = vmatpush1.msra.mxu0 %v3024
    %3028 = vmatprep.subr.mxu0 0.0
    %3029 = vmatpush1.msra.mxu0 0.0
    %3030 = vmatprep.subr.mxu0 0.0
    %3031 = vmatpush1.msra.mxu0 0.0
    %3032 = vmatprep.subr.mxu0 0.0
    %3033 = vmatpush1.msra.mxu0 0.0
    %3034 = vmatprep.subr.mxu0 0.0
    %3035 = vmatpush1.msra.mxu0 0.0
    %3036 = vmatprep.subr.mxu0 0.0
    %3037 = vmatpush1.msra.mxu0 0.0
    %3038 = vmatprep.subr.mxu0 0.0
    %3039 = vmatpush1.msra.mxu0 0.0
    %3040 = vmatprep.subr.mxu0 0.0
    %3041 = vmatpush1.msra.mxu0 0.0
    %3042 = vmatprep.subr.mxu0 0.0
    %3043 = vmatpush1.msra.mxu0 0.0
    %3044 = vmatprep.subr.mxu0 0.0
    %3045 = vmatpush1.msra.mxu0 0.0
    %3046 = vmatprep.subr.mxu0 0.0
    %3047 = vmatpush1.msra.mxu0 0.0
    %3048 = vmatprep.subr.mxu0 0.0
    %3049 = vmatpush1.msra.mxu0 0.0
    %3050 = vmatprep.subr.mxu0 0.0
    %3051 = vmatpush1.msra.mxu0 0.0
    %3052 = vmatprep.subr.mxu0 0.0
    %3053 = vmatpush1.msra.mxu0 0.0
    %3054 = vmatprep.subr.mxu0 0.0
    %3055 = vmatpush1.msra.mxu0 0.0
    %3056 = vmatprep.subr.mxu0 0.0
    %3057 = vmatpush1.msra.mxu0 0.0
    %3058 = vmatprep.subr.mxu0 0.0
    %3059 = vmatpush1.msra.mxu0 0.0
    %3060 = vmatprep.subr.mxu0 0.0
    %3061 = vmatpush1.msra.mxu0 0.0
    %3062 = vmatprep.subr.mxu0 0.0
    %3063 = vmatpush1.msra.mxu0 0.0
    %3064 = vmatprep.subr.mxu0 0.0
    %3065 = vmatpush1.msra.mxu0 0.0
    %3066 = vmatprep.subr.mxu0 0.0
    %3067 = vmatpush1.msra.mxu0 0.0
    %3068 = vmatprep.subr.mxu0 0.0
    %3069 = vmatpush1.msra.mxu0 0.0
    %3070 = vmatprep.subr.mxu0 0.0
    %3071 = vmatpush1.msra.mxu0 0.0
    %3072 = vmatprep.subr.mxu0 0.0
    %3073 = vmatpush1.msra.mxu0 0.0
    %3074 = vmatprep.subr.mxu0 0.0
    %3075 = vmatpush1.msra.mxu0 0.0
    %3076 = vmatprep.subr.mxu0 0.0
    %3077 = vmatpush1.msra.mxu0 0.0
    %3078 = vmatprep.subr.mxu0 0.0
    %3079 = vmatpush1.msra.mxu0 0.0
    %3080 = vmatprep.subr.mxu0 0.0
    %3081 = vmatpush1.msra.mxu0 0.0
    %3082 = vmatprep.subr.mxu0 0.0
    %3083 = vmatpush1.msra.mxu0 0.0
    %3084 = vmatprep.subr.mxu0 0.0
    %3085 = vmatpush1.msra.mxu0 0.0
    %3086 = vmatprep.subr.mxu0 0.0
    %3087 = vmatpush1.msra.mxu0 0.0
    %3088 = vmatprep.subr.mxu0 0.0
    %3089 = vmatpush1.msra.mxu0 0.0
    %3090 = vmatprep.mubr.f32.mxu0 0.0
    %3091 = vmatmul.mubr.f32.gmra.mrb[0].mxu0 %v1515
    %v3092 = vpop.f32.mrb[0].mxu0
    %v3093 = vadd.f32 0.0, %v3092
    %v3094 = vpop.f32.mrb[0].mxu0
    %v3095 = vadd.f32 0.0, %v3094
    %3096 = vdwg.mxu0
    %v3097 = vadd.f32 %v3016, %v3093
    %v3098 = vadd.f32 %v3017, %v3095
    %3099 = vrot.lane.b32.xlu0 %v2461, 111
    %v3100 = vpop.permute.xlu0 %3099
    %3101 = vrot.lane.b32.xlu0 %v2462, 111
    %v3102 = vpop.permute.xlu0 %3101
    %v3103 = vsel %vm829, %v3100, %v3102
    %v3104 = vsel %vm829, %v3102, %v3100
    %v3105 = vsel %vm834, %v3103, 0.0
    %v3106 = vsel %vm835, %v3104, 0.0
    %3107 = vmatprep.subr.mxu0 %v3106
    %3108 = vmatpush1.msra.mxu0 %v3105
    %3109 = vmatprep.subr.mxu0 0.0
    %3110 = vmatpush1.msra.mxu0 0.0
    %3111 = vmatprep.subr.mxu0 0.0
    %3112 = vmatpush1.msra.mxu0 0.0
    %3113 = vmatprep.subr.mxu0 0.0
    %3114 = vmatpush1.msra.mxu0 0.0
    %3115 = vmatprep.subr.mxu0 0.0
    %3116 = vmatpush1.msra.mxu0 0.0
    %3117 = vmatprep.subr.mxu0 0.0
    %3118 = vmatpush1.msra.mxu0 0.0
    %3119 = vmatprep.subr.mxu0 0.0
    %3120 = vmatpush1.msra.mxu0 0.0
    %3121 = vmatprep.subr.mxu0 0.0
    %3122 = vmatpush1.msra.mxu0 0.0
    %3123 = vmatprep.subr.mxu0 0.0
    %3124 = vmatpush1.msra.mxu0 0.0
    %3125 = vmatprep.subr.mxu0 0.0
    %3126 = vmatpush1.msra.mxu0 0.0
    %3127 = vmatprep.subr.mxu0 0.0
    %3128 = vmatpush1.msra.mxu0 0.0
    %3129 = vmatprep.subr.mxu0 0.0
    %3130 = vmatpush1.msra.mxu0 0.0
    %3131 = vmatprep.subr.mxu0 0.0
    %3132 = vmatpush1.msra.mxu0 0.0
    %3133 = vmatprep.subr.mxu0 0.0
    %3134 = vmatpush1.msra.mxu0 0.0
    %3135 = vmatprep.subr.mxu0 0.0
    %3136 = vmatpush1.msra.mxu0 0.0
    %3137 = vmatprep.subr.mxu0 0.0
    %3138 = vmatpush1.msra.mxu0 0.0
    %3139 = vmatprep.subr.mxu0 0.0
    %3140 = vmatpush1.msra.mxu0 0.0
    %3141 = vmatprep.subr.mxu0 0.0
    %3142 = vmatpush1.msra.mxu0 0.0
    %3143 = vmatprep.subr.mxu0 0.0
    %3144 = vmatpush1.msra.mxu0 0.0
    %3145 = vmatprep.subr.mxu0 0.0
    %3146 = vmatpush1.msra.mxu0 0.0
    %3147 = vmatprep.subr.mxu0 0.0
    %3148 = vmatpush1.msra.mxu0 0.0
    %3149 = vmatprep.subr.mxu0 0.0
    %3150 = vmatpush1.msra.mxu0 0.0
    %3151 = vmatprep.subr.mxu0 0.0
    %3152 = vmatpush1.msra.mxu0 0.0
    %3153 = vmatprep.subr.mxu0 0.0
    %3154 = vmatpush1.msra.mxu0 0.0
    %3155 = vmatprep.subr.mxu0 0.0
    %3156 = vmatpush1.msra.mxu0 0.0
    %3157 = vmatprep.subr.mxu0 0.0
    %3158 = vmatpush1.msra.mxu0 0.0
    %3159 = vmatprep.subr.mxu0 0.0
    %3160 = vmatpush1.msra.mxu0 0.0
    %3161 = vmatprep.subr.mxu0 0.0
    %3162 = vmatpush1.msra.mxu0 0.0
    %3163 = vmatprep.subr.mxu0 0.0
    %3164 = vmatpush1.msra.mxu0 0.0
    %3165 = vmatprep.subr.mxu0 0.0
    %3166 = vmatpush1.msra.mxu0 0.0
    %3167 = vmatprep.subr.mxu0 0.0
    %3168 = vmatpush1.msra.mxu0 0.0
    %3169 = vmatprep.subr.mxu0 0.0
    %3170 = vmatpush1.msra.mxu0 0.0
    %3171 = vmatprep.mubr.f32.mxu0 0.0
    %3172 = vmatmul.mubr.f32.gmra.mrb[0].mxu0 %v1599
    %v3173 = vpop.f32.mrb[0].mxu0
    %v3174 = vadd.f32 0.0, %v3173
    %v3175 = vpop.f32.mrb[0].mxu0
    %v3176 = vadd.f32 0.0, %v3175
    %3177 = vdwg.mxu0
    %v3178 = vadd.f32 %v3097, %v3174
    %v3179 = vadd.f32 %v3098, %v3176
    %v3180 = vadd.f32 %v3178, %v1677
    %v3181 = vadd.f32 %v3179, %v1677
    %v3182 = vmax.f32 %v3180, 0.0
    %v3183 = vmax.f32 %v3181, 0.0
    %s3184 = scalar_lea.vmem [#allocation2], 16
    %3185 = vst [vmem:[%s3184] sm:$0xff] %v3182
    %3186 = vst [vmem:[%s3184 + $0x8] sm:$0xff] %v3183
    // Predicated region
    $region22: #{tpu_custom_call.1} parent=1 // pred_check
      _
    $region23: #{tpu_custom_call.1} parent=1 // pred_check_branch
      %3188 = sbr.rel (0) target = $region25
    $region24: #{tpu_custom_call.1} parent=1 // pred_region
      %s3190 = ssub.s32 512, 512
      %3191 = vsyncadd [#allocation3], %s3190
      %s3192 = sshll.u32 [#allocation2], 4
      %s3193 = int_to_ptr.vmem [resolvable:$true] %s3192
      %3198 = dma.vmem_to_hbm [thread:$0]  %s3193, 512, %s5, [#allocation3], 256, 256, 16
    $region25: #{tpu_custom_call.1} parent=1 // pred_fallthru
      _
    // Predicated region
    $region26: #{tpu_custom_call.1} parent=1 // pred_check
      _
    $region27: #{tpu_custom_call.1} parent=1 // pred_check_branch
      %3200 = sbr.rel (0) target = $region29
    $region28: #{tpu_custom_call.1} parent=1 // pred_region
      %3201 = dma.done [#allocation3], 512
    $region29: #{tpu_custom_call.1} parent=1 // pred_fallthru
      _
    %3202 = vsyncpa [#allocation3], 1

</llo_original>
